<compile_context>
chip_gen: v7x
topology: tpu7x:2x2x1
jax: 0.10.0
libtpu: 0.0.40
codegen_flags: <defaults>
</compile_context>

<pallas_src>
import math

import jax
import jax.numpy as jnp
from jax.experimental import pallas as pl
from jax.experimental.pallas import tpu as pltpu  # noqa: F401  (TPU backend)


# ----------------------------- configuration ------------------------------ #
N_BATCH = 2          # batch size N
SEQ_LEN = 64         # T
DIM = 16             # D
NEI = 8              # C (neighbourhood)
N_HEADS = 2          # nH
DK = 30              # Dk (hard-coded to 30 in the PyTorch Model.build)
DK_PAD = 32          # lane-aligned per-head width (zero-padded, sums unchanged)
RNN_HID = 32         # rnn_hid_size (H)
L_BLOCKS = SEQ_LEN // NEI          # L
FEAT = N_HEADS * DIM               # F = nH * D


# ------------------------------ fused kernel ------------------------------- #
def fused_kernel(x2_ref, x3_ref, wq_ref, wk_ref, gamma_ref, beta_ref,
                 wih_ref, whh_ref, bih_ref, bhh_ref, wout_ref, bout_ref,
                 labels_ref, loss_ref, yh_ref):
    # x2 : (L*N, C*D)        time-major, row = l*N + n
    # x3 : (L*N*C, D)        same ordering, one row per (l, n, c)
    # wq : (C*D, nH*DK_PAD)  both heads stacked on lanes (zero-padded Dk)
    # wk : (D, nH*DK_PAD)
    # gamma/beta : (1, F)    w_ih : (F, 3H)    w_hh : (H, 3H)
    # b_ih/b_hh  : (1, 3H)   w_out: (H, 1)     b_out: (1, 1)
    # labels : (N, 1)        loss : (1, 1)     yh   : (N, 1)
    LN = x2_ref.shape[0]
    C, D, H = NEI, DIM, RNN_HID
    N = labels_ref.shape[0]

    x2 = x2_ref[...]                                   # (LN, C*D)
    x3 = x3_ref[...]                                   # (LN*C, D)

    # ---------------- self-attention (both heads, one MXU pass each) -------- #
    q_all = jnp.dot(x2, wq_ref[...],
                    preferred_element_type=jnp.float32)        # (LN, nH*DK_PAD)
    k_all = jnp.dot(x3, wk_ref[...],
                    preferred_element_type=jnp.float32)        # (LN*C, nH*DK_PAD)
    k_all = k_all.reshape(LN, C, N_HEADS * DK_PAD)             # split leading dim only
    x_lcd = x3.reshape(LN, C, D)

    inv_sqrt_dk = 1.0 / math.sqrt(DK)                          # scale uses true Dk=30
    attns = []
    for h in range(N_HEADS):                                   # static, nH = 2
        lo, hi = h * DK_PAD, (h + 1) * DK_PAD                  # lane-aligned slices
        q_h = q_all[:, lo:hi]                                  # (LN, DK_PAD)
        k_h = k_all[:, :, lo:hi]                               # (LN, C, DK_PAD)
        qk = jnp.sum(k_h * q_h[:, None, :], axis=-1) * inv_sqrt_dk   # (LN, C)
        qk = qk - jnp.max(qk, axis=-1, keepdims=True)
        e = jnp.exp(qk)
        score = e / jnp.sum(e, axis=-1, keepdims=True)          # softmax over C
        attns.append(jnp.sum(score[:, :, None] * x_lcd, axis=1))     # (LN, D)
    att = jnp.concatenate(attns, axis=-1)                       # (LN, F)

    # ---------------- BatchNorm1d (training-mode batch statistics) ---------- #
    mean = jnp.mean(att, axis=0, keepdims=True)                 # over all (N, L) rows
    var = jnp.mean(jnp.square(att - mean), axis=0, keepdims=True)   # biased variance
    vals = (att - mean) * jax.lax.rsqrt(var + 1e-5)
    vals = vals * gamma_ref[...] + beta_ref[...]                 # (LN, F)

    # ---------------- GRU: hoisted input projection + unrolled recurrence --- #
    gi_all = jnp.dot(vals, wih_ref[...],
                     preferred_element_type=jnp.float32) + bih_ref[...]   # (LN, 3H)
    w_hh = whh_ref[...]
    b_hh = bhh_ref[...]
    h_t = jnp.zeros((N, H), jnp.float32)                         # h0 = 0 (PyTorch default)
    for t in range(L_BLOCKS):                                    # static unroll, L = 8
        gi = gi_all[t * N:(t + 1) * N, :]                        # (N, 3H) contiguous rows
        gh = jnp.dot(h_t, w_hh, preferred_element_type=jnp.float32) + b_hh
        i_r, i_z, i_n = gi[:, :H], gi[:, H:2 * H], gi[:, 2 * H:]
        h_r, h_z, h_n = gh[:, :H], gh[:, H:2 * H], gh[:, 2 * H:]
        r = 1.0 / (1.0 + jnp.exp(-(i_r + h_r)))
        z = 1.0 / (1.0 + jnp.exp(-(i_z + h_z)))
        n = jnp.tanh(i_n + r * h_n)
        h_t = (1.0 - z) * n + z * h_t

    # ---------------- output head + BCE-with-logits + sigmoid --------------- #
    logits = jnp.dot(h_t, wout_ref[...],
                     preferred_element_type=jnp.float32) + bout_ref[...]   # (N, 1)
    y = labels_ref[...]
    per = (jnp.maximum(logits, 0.0) - logits * y
           + jnp.log1p(jnp.exp(-jnp.abs(logits))))                # stable BCE w/ logits
    loss_ref[...] = jnp.mean(per, axis=(0, 1), keepdims=True)
    yh_ref[...] = 1.0 / (1.0 + jnp.exp(-logits))


# ------------------------------ model wrapper ------------------------------ #
def model_forward(params, data, labels):
    N = data.shape[0]

    # Pre-shape input on the host: time-major, lane-dense layouts for the kernel.
    x4 = data.reshape(N, L_BLOCKS, NEI, DIM)            # (N, L, C, D)
    x_tm = jnp.transpose(x4, (1, 0, 2, 3))              # (L, N, C, D) time-major
    x2 = x_tm.reshape(L_BLOCKS * N, NEI * DIM)          # (L*N, C*D)   = (16, 128)
    x3 = x_tm.reshape(L_BLOCKS * N * NEI, DIM)          # (L*N*C, D)   = (128, 16)

    # Zero-pad Dk -> DK_PAD (lane-aligned head slices in the kernel) and stack
    # both heads' projection weights along the output-lane axis.
    pad = DK_PAD - DK
    wq_p = jnp.pad(params["wq"], ((0, 0), (0, 0), (0, 0), (0, pad)))
    wk_p = jnp.pad(params["wk"], ((0, 0), (0, 0), (0, pad)))
    wq_all = jnp.transpose(wq_p, (1, 2, 0, 3)).reshape(NEI * DIM, N_HEADS * DK_PAD)
    wk_all = jnp.transpose(wk_p, (1, 0, 2)).reshape(DIM, N_HEADS * DK_PAD)

    loss, yh = pl.pallas_call(
        fused_kernel,
        out_shape=(jax.ShapeDtypeStruct((1, 1), jnp.float32),
                   jax.ShapeDtypeStruct((N, 1), jnp.float32)),
    )(x2, x3, wq_all, wk_all,
      params["bn_gamma"].reshape(1, -1), params["bn_beta"].reshape(1, -1),
      params["w_ih"], params["w_hh"], params["b_ih"], params["b_hh"],
      params["w_out"], params["b_out"], labels)
    return loss[0, 0], yh, 1.0


model_forward_jit = jax.jit(model_forward)


def init_params(key):
    ks = jax.random.split(key, 10)
    stdv_q = 1.0 / math.sqrt(NEI)
    stdv_k = 1.0 / math.sqrt(DIM)
    stdv_r = 1.0 / math.sqrt(RNN_HID)
    u = lambda k, shape, s: jax.random.uniform(k, shape, jnp.float32, -s, s)
    return {
        "wq": u(ks[0], (N_HEADS, NEI, DIM, DK), stdv_q),
        "wk": u(ks[1], (N_HEADS, DIM, DK), stdv_k),
        "bn_gamma": jnp.ones((FEAT,), jnp.float32),
        "bn_beta": jnp.zeros((FEAT,), jnp.float32),
        "w_ih": u(ks[2], (FEAT, 3 * RNN_HID), stdv_r),       # transposed vs PyTorch
        "w_hh": u(ks[3], (RNN_HID, 3 * RNN_HID), stdv_r),
        "b_ih": u(ks[4], (1, 3 * RNN_HID), stdv_r),
        "b_hh": u(ks[5], (1, 3 * RNN_HID), stdv_r),
        "w_out": u(ks[6], (RNN_HID, 1), stdv_r),
        "b_out": u(ks[7], (1, 1), stdv_r),
    }


if __name__ == "__main__":
    key = jax.random.PRNGKey(0)
    k_param, k_data, k_lab = jax.random.split(key, 3)
    params = init_params(k_param)

    data = jax.random.normal(k_data, (N_BATCH, SEQ_LEN, DIM), jnp.float32)
    labels = (jax.random.uniform(k_lab, (N_BATCH, 1)) < 0.5).astype(jnp.float32)

    loss, y_h, const = model_forward_jit(params, data, labels)
    jax.block_until_ready((loss, y_h))
    # TODO(synk): nn.Dropout(p=0.2) is defined in the module but never used in
    # forward(), so it is intentionally omitted here.
    print("KERNEL_OK")
</pallas_src>

<mosaic_0001>
module attributes {stable_mosaic.version = 11 : i64} {
  func.func @fused_kernel(%arg0: memref<16x128xf32, #tpu.memory_space<vmem>>, %arg1: memref<128x16xf32, #tpu.memory_space<vmem>>, %arg2: memref<128x64xf32, #tpu.memory_space<vmem>>, %arg3: memref<16x64xf32, #tpu.memory_space<vmem>>, %arg4: memref<1x32xf32, #tpu.memory_space<vmem>>, %arg5: memref<1x32xf32, #tpu.memory_space<vmem>>, %arg6: memref<32x96xf32, #tpu.memory_space<vmem>>, %arg7: memref<32x96xf32, #tpu.memory_space<vmem>>, %arg8: memref<1x96xf32, #tpu.memory_space<vmem>>, %arg9: memref<1x96xf32, #tpu.memory_space<vmem>>, %arg10: memref<32x1xf32, #tpu.memory_space<vmem>>, %arg11: memref<1x1xf32, #tpu.memory_space<vmem>>, %arg12: memref<2x1xf32, #tpu.memory_space<vmem>>, %arg13: memref<1x1xf32, #tpu.memory_space<vmem>>, %arg14: memref<2x1xf32, #tpu.memory_space<vmem>>) attributes {dimension_semantics = [], scalar_prefetch = 0 : i64, scratch_operands = 0 : i64, tpu.core_type = #tpu.core_type<tc>} {
    %c0 = arith.constant 0 : index
    %c0_0 = arith.constant 0 : index
    %0 = vector.load %arg0[%c0, %c0_0] : memref<16x128xf32, #tpu.memory_space<vmem>>, vector<16x128xf32>
    %c0_1 = arith.constant 0 : index
    %c0_2 = arith.constant 0 : index
    %1 = vector.load %arg1[%c0_1, %c0_2] : memref<128x16xf32, #tpu.memory_space<vmem>>, vector<128x16xf32>
    %c0_3 = arith.constant 0 : index
    %c0_4 = arith.constant 0 : index
    %2 = vector.load %arg2[%c0_3, %c0_4] : memref<128x64xf32, #tpu.memory_space<vmem>>, vector<128x64xf32>
    %cst = arith.constant dense<0.000000e+00> : vector<16x64xf32>
    %3 = tpu.matmul %0, %2, %cst {dimension_numbers = #tpu.dot_dimension_numbers<[1], [0], [0], [1], [0, 0, 1, 1], [], []>} : vector<16x128xf32>, vector<128x64xf32>, vector<16x64xf32> -> vector<16x64xf32>
    %c0_5 = arith.constant 0 : index
    %c0_6 = arith.constant 0 : index
    %4 = vector.load %arg3[%c0_5, %c0_6] : memref<16x64xf32, #tpu.memory_space<vmem>>, vector<16x64xf32>
    %cst_7 = arith.constant dense<0.000000e+00> : vector<128x64xf32>
    %5 = tpu.matmul %1, %4, %cst_7 {dimension_numbers = #tpu.dot_dimension_numbers<[1], [0], [0], [1], [0, 0, 1, 1], [], []>} : vector<128x16xf32>, vector<16x64xf32>, vector<128x64xf32> -> vector<128x64xf32>
    %6 = vector.shape_cast %5 : vector<128x64xf32> to vector<16x8x64xf32>
    %7 = vector.shape_cast %1 : vector<128x16xf32> to vector<16x8x16xf32>
    %8 = vector.extract_strided_slice %3 {offsets = [0, 0], sizes = [16, 32], strides = [1, 1]} : vector<16x64xf32> to vector<16x32xf32>
    %9 = vector.extract_strided_slice %6 {offsets = [0, 0, 0], sizes = [16, 8, 32], strides = [1, 1, 1]} : vector<16x8x64xf32> to vector<16x8x32xf32>
    %10 = vector.shape_cast %8 : vector<16x32xf32> to vector<16x1x32xf32>
    %11 = vector.broadcast %10 : vector<16x1x32xf32> to vector<16x8x32xf32>
    %12 = arith.mulf %9, %11 : vector<16x8x32xf32>
    %cst_8 = arith.constant dense<0.000000e+00> : vector<16x8xf32>
    %13 = vector.multi_reduction <add>, %12, %cst_8 [2] : vector<16x8x32xf32> to vector<16x8xf32>
    %cst_9 = arith.constant 0.182574183 : f32
    %14 = vector.broadcast %cst_9 : f32 to vector<16x8xf32>
    %15 = arith.mulf %13, %14 : vector<16x8xf32>
    %cst_10 = arith.constant dense<0xFF800000> : vector<16xf32>
    %16 = vector.multi_reduction <maximumf>, %15, %cst_10 [1] : vector<16x8xf32> to vector<16xf32>
    %17 = vector.shape_cast %16 : vector<16xf32> to vector<16x1xf32>
    %18 = vector.broadcast %17 : vector<16x1xf32> to vector<16x8xf32>
    %19 = arith.subf %15, %18 : vector<16x8xf32>
    %20 = math.exp %19 : vector<16x8xf32>
    %cst_11 = arith.constant dense<0.000000e+00> : vector<16xf32>
    %21 = vector.multi_reduction <add>, %20, %cst_11 [1] : vector<16x8xf32> to vector<16xf32>
    %22 = vector.shape_cast %21 : vector<16xf32> to vector<16x1xf32>
    %23 = vector.broadcast %22 : vector<16x1xf32> to vector<16x8xf32>
    %24 = arith.divf %20, %23 : vector<16x8xf32>
    %25 = vector.shape_cast %24 : vector<16x8xf32> to vector<16x8x1xf32>
    %26 = vector.broadcast %25 : vector<16x8x1xf32> to vector<16x8x16xf32>
    %27 = arith.mulf %26, %7 : vector<16x8x16xf32>
    %cst_12 = arith.constant dense<0.000000e+00> : vector<16x16xf32>
    %28 = vector.multi_reduction <add>, %27, %cst_12 [1] : vector<16x8x16xf32> to vector<16x16xf32>
    %29 = vector.extract_strided_slice %3 {offsets = [0, 32], sizes = [16, 32], strides = [1, 1]} : vector<16x64xf32> to vector<16x32xf32>
    %30 = vector.extract_strided_slice %6 {offsets = [0, 0, 32], sizes = [16, 8, 32], strides = [1, 1, 1]} : vector<16x8x64xf32> to vector<16x8x32xf32>
    %31 = vector.shape_cast %29 : vector<16x32xf32> to vector<16x1x32xf32>
    %32 = vector.broadcast %31 : vector<16x1x32xf32> to vector<16x8x32xf32>
    %33 = arith.mulf %30, %32 : vector<16x8x32xf32>
    %cst_13 = arith.constant dense<0.000000e+00> : vector<16x8xf32>
    %34 = vector.multi_reduction <add>, %33, %cst_13 [2] : vector<16x8x32xf32> to vector<16x8xf32>
    %cst_14 = arith.constant 0.182574183 : f32
    %35 = vector.broadcast %cst_14 : f32 to vector<16x8xf32>
    %36 = arith.mulf %34, %35 : vector<16x8xf32>
    %cst_15 = arith.constant dense<0xFF800000> : vector<16xf32>
    %37 = vector.multi_reduction <maximumf>, %36, %cst_15 [1] : vector<16x8xf32> to vector<16xf32>
    %38 = vector.shape_cast %37 : vector<16xf32> to vector<16x1xf32>
    %39 = vector.broadcast %38 : vector<16x1xf32> to vector<16x8xf32>
    %40 = arith.subf %36, %39 : vector<16x8xf32>
    %41 = math.exp %40 : vector<16x8xf32>
    %cst_16 = arith.constant dense<0.000000e+00> : vector<16xf32>
    %42 = vector.multi_reduction <add>, %41, %cst_16 [1] : vector<16x8xf32> to vector<16xf32>
    %43 = vector.shape_cast %42 : vector<16xf32> to vector<16x1xf32>
    %44 = vector.broadcast %43 : vector<16x1xf32> to vector<16x8xf32>
    %45 = arith.divf %41, %44 : vector<16x8xf32>
    %46 = vector.shape_cast %45 : vector<16x8xf32> to vector<16x8x1xf32>
    %47 = vector.broadcast %46 : vector<16x8x1xf32> to vector<16x8x16xf32>
    %48 = arith.mulf %47, %7 : vector<16x8x16xf32>
    %cst_17 = arith.constant dense<0.000000e+00> : vector<16x16xf32>
    %49 = vector.multi_reduction <add>, %48, %cst_17 [1] : vector<16x8x16xf32> to vector<16x16xf32>
    %50 = tpu.concatenate %28, %49 in 1 : vector<16x16xf32>, vector<16x16xf32> -> vector<16x32xf32>
    %cst_18 = arith.constant dense<0.000000e+00> : vector<32xf32>
    %51 = vector.multi_reduction <add>, %50, %cst_18 [0] : vector<16x32xf32> to vector<32xf32>
    %52 = vector.shape_cast %51 : vector<32xf32> to vector<1x32xf32>
    %cst_19 = arith.constant 1.600000e+01 : f32
    %53 = vector.broadcast %cst_19 : f32 to vector<1x32xf32>
    %54 = arith.divf %52, %53 : vector<1x32xf32>
    %55 = vector.broadcast %54 : vector<1x32xf32> to vector<16x32xf32>
    %56 = arith.subf %50, %55 : vector<16x32xf32>
    %57 = arith.mulf %56, %56 : vector<16x32xf32>
    %cst_20 = arith.constant dense<0.000000e+00> : vector<32xf32>
    %58 = vector.multi_reduction <add>, %57, %cst_20 [0] : vector<16x32xf32> to vector<32xf32>
    %59 = vector.shape_cast %58 : vector<32xf32> to vector<1x32xf32>
    %cst_21 = arith.constant 1.600000e+01 : f32
    %60 = vector.broadcast %cst_21 : f32 to vector<1x32xf32>
    %61 = arith.divf %59, %60 : vector<1x32xf32>
    %62 = vector.broadcast %54 : vector<1x32xf32> to vector<16x32xf32>
    %63 = arith.subf %50, %62 : vector<16x32xf32>
    %cst_22 = arith.constant 9.99999974E-6 : f32
    %64 = vector.broadcast %cst_22 : f32 to vector<1x32xf32>
    %65 = arith.addf %61, %64 : vector<1x32xf32>
    %66 = math.rsqrt %65 : vector<1x32xf32>
    %67 = vector.broadcast %66 : vector<1x32xf32> to vector<16x32xf32>
    %68 = arith.mulf %63, %67 : vector<16x32xf32>
    %c0_23 = arith.constant 0 : index
    %c0_24 = arith.constant 0 : index
    %69 = vector.load %arg4[%c0_23, %c0_24] : memref<1x32xf32, #tpu.memory_space<vmem>>, vector<1x32xf32>
    %70 = vector.broadcast %69 : vector<1x32xf32> to vector<16x32xf32>
    %71 = arith.mulf %68, %70 : vector<16x32xf32>
    %c0_25 = arith.constant 0 : index
    %c0_26 = arith.constant 0 : index
    %72 = vector.load %arg5[%c0_25, %c0_26] : memref<1x32xf32, #tpu.memory_space<vmem>>, vector<1x32xf32>
    %73 = vector.broadcast %72 : vector<1x32xf32> to vector<16x32xf32>
    %74 = arith.addf %71, %73 : vector<16x32xf32>
    %c0_27 = arith.constant 0 : index
    %c0_28 = arith.constant 0 : index
    %75 = vector.load %arg6[%c0_27, %c0_28] : memref<32x96xf32, #tpu.memory_space<vmem>>, vector<32x96xf32>
    %cst_29 = arith.constant dense<0.000000e+00> : vector<16x96xf32>
    %76 = tpu.matmul %74, %75, %cst_29 {dimension_numbers = #tpu.dot_dimension_numbers<[1], [0], [0], [1], [0, 0, 1, 1], [], []>} : vector<16x32xf32>, vector<32x96xf32>, vector<16x96xf32> -> vector<16x96xf32>
    %c0_30 = arith.constant 0 : index
    %c0_31 = arith.constant 0 : index
    %77 = vector.load %arg8[%c0_30, %c0_31] : memref<1x96xf32, #tpu.memory_space<vmem>>, vector<1x96xf32>
    %78 = vector.broadcast %77 : vector<1x96xf32> to vector<16x96xf32>
    %79 = arith.addf %76, %78 : vector<16x96xf32>
    %c0_32 = arith.constant 0 : index
    %c0_33 = arith.constant 0 : index
    %80 = vector.load %arg7[%c0_32, %c0_33] : memref<32x96xf32, #tpu.memory_space<vmem>>, vector<32x96xf32>
    %c0_34 = arith.constant 0 : index
    %c0_35 = arith.constant 0 : index
    %81 = vector.load %arg9[%c0_34, %c0_35] : memref<1x96xf32, #tpu.memory_space<vmem>>, vector<1x96xf32>
    %cst_36 = arith.constant 0.000000e+00 : f32
    %82 = vector.broadcast %cst_36 : f32 to vector<2x32xf32>
    %83 = vector.extract_strided_slice %79 {offsets = [0, 0], sizes = [2, 96], strides = [1, 1]} : vector<16x96xf32> to vector<2x96xf32>
    %cst_37 = arith.constant dense<0.000000e+00> : vector<2x96xf32>
    %84 = tpu.matmul %82, %80, %cst_37 {dimension_numbers = #tpu.dot_dimension_numbers<[1], [0], [0], [1], [0, 0, 1, 1], [], []>} : vector<2x32xf32>, vector<32x96xf32>, vector<2x96xf32> -> vector<2x96xf32>
    %85 = vector.broadcast %81 : vector<1x96xf32> to vector<2x96xf32>
    %86 = arith.addf %84, %85 : vector<2x96xf32>
    %87 = vector.extract_strided_slice %83 {offsets = [0, 0], sizes = [2, 32], strides = [1, 1]} : vector<2x96xf32> to vector<2x32xf32>
    %88 = vector.extract_strided_slice %83 {offsets = [0, 32], sizes = [2, 32], strides = [1, 1]} : vector<2x96xf32> to vector<2x32xf32>
    %89 = vector.extract_strided_slice %83 {offsets = [0, 64], sizes = [2, 32], strides = [1, 1]} : vector<2x96xf32> to vector<2x32xf32>
    %90 = vector.extract_strided_slice %86 {offsets = [0, 0], sizes = [2, 32], strides = [1, 1]} : vector<2x96xf32> to vector<2x32xf32>
    %91 = vector.extract_strided_slice %86 {offsets = [0, 32], sizes = [2, 32], strides = [1, 1]} : vector<2x96xf32> to vector<2x32xf32>
    %92 = vector.extract_strided_slice %86 {offsets = [0, 64], sizes = [2, 32], strides = [1, 1]} : vector<2x96xf32> to vector<2x32xf32>
    %93 = arith.addf %87, %90 : vector<2x32xf32>
    %cst_38 = arith.constant 0.000000e+00 : f32
    %94 = vector.broadcast %cst_38 : f32 to vector<2x32xf32>
    %95 = arith.subf %94, %93 : vector<2x32xf32>
    %96 = math.exp %95 : vector<2x32xf32>
    %cst_39 = arith.constant 1.000000e+00 : f32
    %97 = vector.broadcast %cst_39 : f32 to vector<2x32xf32>
    %98 = arith.addf %97, %96 : vector<2x32xf32>
    %cst_40 = arith.constant 1.000000e+00 : f32
    %99 = vector.broadcast %cst_40 : f32 to vector<2x32xf32>
    %100 = arith.divf %99, %98 : vector<2x32xf32>
    %101 = arith.addf %88, %91 : vector<2x32xf32>
    %cst_41 = arith.constant 0.000000e+00 : f32
    %102 = vector.broadcast %cst_41 : f32 to vector<2x32xf32>
    %103 = arith.subf %102, %101 : vector<2x32xf32>
    %104 = math.exp %103 : vector<2x32xf32>
    %cst_42 = arith.constant 1.000000e+00 : f32
    %105 = vector.broadcast %cst_42 : f32 to vector<2x32xf32>
    %106 = arith.addf %105, %104 : vector<2x32xf32>
    %cst_43 = arith.constant 1.000000e+00 : f32
    %107 = vector.broadcast %cst_43 : f32 to vector<2x32xf32>
    %108 = arith.divf %107, %106 : vector<2x32xf32>
    %109 = arith.mulf %100, %92 : vector<2x32xf32>
    %110 = arith.addf %89, %109 : vector<2x32xf32>
    %111 = math.tanh %110 : vector<2x32xf32>
    %cst_44 = arith.constant 1.000000e+00 : f32
    %112 = vector.broadcast %cst_44 : f32 to vector<2x32xf32>
    %113 = arith.subf %112, %108 : vector<2x32xf32>
    %114 = arith.mulf %113, %111 : vector<2x32xf32>
    %115 = arith.mulf %108, %82 : vector<2x32xf32>
    %116 = arith.addf %114, %115 : vector<2x32xf32>
    %117 = vector.extract_strided_slice %79 {offsets = [2, 0], sizes = [2, 96], strides = [1, 1]} : vector<16x96xf32> to vector<2x96xf32>
    %cst_45 = arith.constant dense<0.000000e+00> : vector<2x96xf32>
    %118 = tpu.matmul %116, %80, %cst_45 {dimension_numbers = #tpu.dot_dimension_numbers<[1], [0], [0], [1], [0, 0, 1, 1], [], []>} : vector<2x32xf32>, vector<32x96xf32>, vector<2x96xf32> -> vector<2x96xf32>
    %119 = vector.broadcast %81 : vector<1x96xf32> to vector<2x96xf32>
    %120 = arith.addf %118, %119 : vector<2x96xf32>
    %121 = vector.extract_strided_slice %117 {offsets = [0, 0], sizes = [2, 32], strides = [1, 1]} : vector<2x96xf32> to vector<2x32xf32>
    %122 = vector.extract_strided_slice %117 {offsets = [0, 32], sizes = [2, 32], strides = [1, 1]} : vector<2x96xf32> to vector<2x32xf32>
    %123 = vector.extract_strided_slice %117 {offsets = [0, 64], sizes = [2, 32], strides = [1, 1]} : vector<2x96xf32> to vector<2x32xf32>
    %124 = vector.extract_strided_slice %120 {offsets = [0, 0], sizes = [2, 32], strides = [1, 1]} : vector<2x96xf32> to vector<2x32xf32>
    %125 = vector.extract_strided_slice %120 {offsets = [0, 32], sizes = [2, 32], strides = [1, 1]} : vector<2x96xf32> to vector<2x32xf32>
    %126 = vector.extract_strided_slice %120 {offsets = [0, 64], sizes = [2, 32], strides = [1, 1]} : vector<2x96xf32> to vector<2x32xf32>
    %127 = arith.addf %121, %124 : vector<2x32xf32>
    %cst_46 = arith.constant 0.000000e+00 : f32
    %128 = vector.broadcast %cst_46 : f32 to vector<2x32xf32>
    %129 = arith.subf %128, %127 : vector<2x32xf32>
    %130 = math.exp %129 : vector<2x32xf32>
    %cst_47 = arith.constant 1.000000e+00 : f32
    %131 = vector.broadcast %cst_47 : f32 to vector<2x32xf32>
    %132 = arith.addf %131, %130 : vector<2x32xf32>
    %cst_48 = arith.constant 1.000000e+00 : f32
    %133 = vector.broadcast %cst_48 : f32 to vector<2x32xf32>
    %134 = arith.divf %133, %132 : vector<2x32xf32>
    %135 = arith.addf %122, %125 : vector<2x32xf32>
    %cst_49 = arith.constant 0.000000e+00 : f32
    %136 = vector.broadcast %cst_49 : f32 to vector<2x32xf32>
    %137 = arith.subf %136, %135 : vector<2x32xf32>
    %138 = math.exp %137 : vector<2x32xf32>
    %cst_50 = arith.constant 1.000000e+00 : f32
    %139 = vector.broadcast %cst_50 : f32 to vector<2x32xf32>
    %140 = arith.addf %139, %138 : vector<2x32xf32>
    %cst_51 = arith.constant 1.000000e+00 : f32
    %141 = vector.broadcast %cst_51 : f32 to vector<2x32xf32>
    %142 = arith.divf %141, %140 : vector<2x32xf32>
    %143 = arith.mulf %134, %126 : vector<2x32xf32>
    %144 = arith.addf %123, %143 : vector<2x32xf32>
    %145 = math.tanh %144 : vector<2x32xf32>
    %cst_52 = arith.constant 1.000000e+00 : f32
    %146 = vector.broadcast %cst_52 : f32 to vector<2x32xf32>
    %147 = arith.subf %146, %142 : vector<2x32xf32>
    %148 = arith.mulf %147, %145 : vector<2x32xf32>
    %149 = arith.mulf %142, %116 : vector<2x32xf32>
    %150 = arith.addf %148, %149 : vector<2x32xf32>
    %151 = vector.extract_strided_slice %79 {offsets = [4, 0], sizes = [2, 96], strides = [1, 1]} : vector<16x96xf32> to vector<2x96xf32>
    %cst_53 = arith.constant dense<0.000000e+00> : vector<2x96xf32>
    %152 = tpu.matmul %150, %80, %cst_53 {dimension_numbers = #tpu.dot_dimension_numbers<[1], [0], [0], [1], [0, 0, 1, 1], [], []>} : vector<2x32xf32>, vector<32x96xf32>, vector<2x96xf32> -> vector<2x96xf32>
    %153 = vector.broadcast %81 : vector<1x96xf32> to vector<2x96xf32>
    %154 = arith.addf %152, %153 : vector<2x96xf32>
    %155 = vector.extract_strided_slice %151 {offsets = [0, 0], sizes = [2, 32], strides = [1, 1]} : vector<2x96xf32> to vector<2x32xf32>
    %156 = vector.extract_strided_slice %151 {offsets = [0, 32], sizes = [2, 32], strides = [1, 1]} : vector<2x96xf32> to vector<2x32xf32>
    %157 = vector.extract_strided_slice %151 {offsets = [0, 64], sizes = [2, 32], strides = [1, 1]} : vector<2x96xf32> to vector<2x32xf32>
    %158 = vector.extract_strided_slice %154 {offsets = [0, 0], sizes = [2, 32], strides = [1, 1]} : vector<2x96xf32> to vector<2x32xf32>
    %159 = vector.extract_strided_slice %154 {offsets = [0, 32], sizes = [2, 32], strides = [1, 1]} : vector<2x96xf32> to vector<2x32xf32>
    %160 = vector.extract_strided_slice %154 {offsets = [0, 64], sizes = [2, 32], strides = [1, 1]} : vector<2x96xf32> to vector<2x32xf32>
    %161 = arith.addf %155, %158 : vector<2x32xf32>
    %cst_54 = arith.constant 0.000000e+00 : f32
    %162 = vector.broadcast %cst_54 : f32 to vector<2x32xf32>
    %163 = arith.subf %162, %161 : vector<2x32xf32>
    %164 = math.exp %163 : vector<2x32xf32>
    %cst_55 = arith.constant 1.000000e+00 : f32
    %165 = vector.broadcast %cst_55 : f32 to vector<2x32xf32>
    %166 = arith.addf %165, %164 : vector<2x32xf32>
    %cst_56 = arith.constant 1.000000e+00 : f32
    %167 = vector.broadcast %cst_56 : f32 to vector<2x32xf32>
    %168 = arith.divf %167, %166 : vector<2x32xf32>
    %169 = arith.addf %156, %159 : vector<2x32xf32>
    %cst_57 = arith.constant 0.000000e+00 : f32
    %170 = vector.broadcast %cst_57 : f32 to vector<2x32xf32>
    %171 = arith.subf %170, %169 : vector<2x32xf32>
    %172 = math.exp %171 : vector<2x32xf32>
    %cst_58 = arith.constant 1.000000e+00 : f32
    %173 = vector.broadcast %cst_58 : f32 to vector<2x32xf32>
    %174 = arith.addf %173, %172 : vector<2x32xf32>
    %cst_59 = arith.constant 1.000000e+00 : f32
    %175 = vector.broadcast %cst_59 : f32 to vector<2x32xf32>
    %176 = arith.divf %175, %174 : vector<2x32xf32>
    %177 = arith.mulf %168, %160 : vector<2x32xf32>
    %178 = arith.addf %157, %177 : vector<2x32xf32>
    %179 = math.tanh %178 : vector<2x32xf32>
    %cst_60 = arith.constant 1.000000e+00 : f32
    %180 = vector.broadcast %cst_60 : f32 to vector<2x32xf32>
    %181 = arith.subf %180, %176 : vector<2x32xf32>
    %182 = arith.mulf %181, %179 : vector<2x32xf32>
    %183 = arith.mulf %176, %150 : vector<2x32xf32>
    %184 = arith.addf %182, %183 : vector<2x32xf32>
    %185 = vector.extract_strided_slice %79 {offsets = [6, 0], sizes = [2, 96], strides = [1, 1]} : vector<16x96xf32> to vector<2x96xf32>
    %cst_61 = arith.constant dense<0.000000e+00> : vector<2x96xf32>
    %186 = tpu.matmul %184, %80, %cst_61 {dimension_numbers = #tpu.dot_dimension_numbers<[1], [0], [0], [1], [0, 0, 1, 1], [], []>} : vector<2x32xf32>, vector<32x96xf32>, vector<2x96xf32> -> vector<2x96xf32>
    %187 = vector.broadcast %81 : vector<1x96xf32> to vector<2x96xf32>
    %188 = arith.addf %186, %187 : vector<2x96xf32>
    %189 = vector.extract_strided_slice %185 {offsets = [0, 0], sizes = [2, 32], strides = [1, 1]} : vector<2x96xf32> to vector<2x32xf32>
    %190 = vector.extract_strided_slice %185 {offsets = [0, 32], sizes = [2, 32], strides = [1, 1]} : vector<2x96xf32> to vector<2x32xf32>
    %191 = vector.extract_strided_slice %185 {offsets = [0, 64], sizes = [2, 32], strides = [1, 1]} : vector<2x96xf32> to vector<2x32xf32>
    %192 = vector.extract_strided_slice %188 {offsets = [0, 0], sizes = [2, 32], strides = [1, 1]} : vector<2x96xf32> to vector<2x32xf32>
    %193 = vector.extract_strided_slice %188 {offsets = [0, 32], sizes = [2, 32], strides = [1, 1]} : vector<2x96xf32> to vector<2x32xf32>
    %194 = vector.extract_strided_slice %188 {offsets = [0, 64], sizes = [2, 32], strides = [1, 1]} : vector<2x96xf32> to vector<2x32xf32>
    %195 = arith.addf %189, %192 : vector<2x32xf32>
    %cst_62 = arith.constant 0.000000e+00 : f32
    %196 = vector.broadcast %cst_62 : f32 to vector<2x32xf32>
    %197 = arith.subf %196, %195 : vector<2x32xf32>
    %198 = math.exp %197 : vector<2x32xf32>
    %cst_63 = arith.constant 1.000000e+00 : f32
    %199 = vector.broadcast %cst_63 : f32 to vector<2x32xf32>
    %200 = arith.addf %199, %198 : vector<2x32xf32>
    %cst_64 = arith.constant 1.000000e+00 : f32
    %201 = vector.broadcast %cst_64 : f32 to vector<2x32xf32>
    %202 = arith.divf %201, %200 : vector<2x32xf32>
    %203 = arith.addf %190, %193 : vector<2x32xf32>
    %cst_65 = arith.constant 0.000000e+00 : f32
    %204 = vector.broadcast %cst_65 : f32 to vector<2x32xf32>
    %205 = arith.subf %204, %203 : vector<2x32xf32>
    %206 = math.exp %205 : vector<2x32xf32>
    %cst_66 = arith.constant 1.000000e+00 : f32
    %207 = vector.broadcast %cst_66 : f32 to vector<2x32xf32>
    %208 = arith.addf %207, %206 : vector<2x32xf32>
    %cst_67 = arith.constant 1.000000e+00 : f32
    %209 = vector.broadcast %cst_67 : f32 to vector<2x32xf32>
    %210 = arith.divf %209, %208 : vector<2x32xf32>
    %211 = arith.mulf %202, %194 : vector<2x32xf32>
    %212 = arith.addf %191, %211 : vector<2x32xf32>
    %213 = math.tanh %212 : vector<2x32xf32>
    %cst_68 = arith.constant 1.000000e+00 : f32
    %214 = vector.broadcast %cst_68 : f32 to vector<2x32xf32>
    %215 = arith.subf %214, %210 : vector<2x32xf32>
    %216 = arith.mulf %215, %213 : vector<2x32xf32>
    %217 = arith.mulf %210, %184 : vector<2x32xf32>
    %218 = arith.addf %216, %217 : vector<2x32xf32>
    %219 = vector.extract_strided_slice %79 {offsets = [8, 0], sizes = [2, 96], strides = [1, 1]} : vector<16x96xf32> to vector<2x96xf32>
    %cst_69 = arith.constant dense<0.000000e+00> : vector<2x96xf32>
    %220 = tpu.matmul %218, %80, %cst_69 {dimension_numbers = #tpu.dot_dimension_numbers<[1], [0], [0], [1], [0, 0, 1, 1], [], []>} : vector<2x32xf32>, vector<32x96xf32>, vector<2x96xf32> -> vector<2x96xf32>
    %221 = vector.broadcast %81 : vector<1x96xf32> to vector<2x96xf32>
    %222 = arith.addf %220, %221 : vector<2x96xf32>
    %223 = vector.extract_strided_slice %219 {offsets = [0, 0], sizes = [2, 32], strides = [1, 1]} : vector<2x96xf32> to vector<2x32xf32>
    %224 = vector.extract_strided_slice %219 {offsets = [0, 32], sizes = [2, 32], strides = [1, 1]} : vector<2x96xf32> to vector<2x32xf32>
    %225 = vector.extract_strided_slice %219 {offsets = [0, 64], sizes = [2, 32], strides = [1, 1]} : vector<2x96xf32> to vector<2x32xf32>
    %226 = vector.extract_strided_slice %222 {offsets = [0, 0], sizes = [2, 32], strides = [1, 1]} : vector<2x96xf32> to vector<2x32xf32>
    %227 = vector.extract_strided_slice %222 {offsets = [0, 32], sizes = [2, 32], strides = [1, 1]} : vector<2x96xf32> to vector<2x32xf32>
    %228 = vector.extract_strided_slice %222 {offsets = [0, 64], sizes = [2, 32], strides = [1, 1]} : vector<2x96xf32> to vector<2x32xf32>
    %229 = arith.addf %223, %226 : vector<2x32xf32>
    %cst_70 = arith.constant 0.000000e+00 : f32
    %230 = vector.broadcast %cst_70 : f32 to vector<2x32xf32>
    %231 = arith.subf %230, %229 : vector<2x32xf32>
    %232 = math.exp %231 : vector<2x32xf32>
    %cst_71 = arith.constant 1.000000e+00 : f32
    %233 = vector.broadcast %cst_71 : f32 to vector<2x32xf32>
    %234 = arith.addf %233, %232 : vector<2x32xf32>
    %cst_72 = arith.constant 1.000000e+00 : f32
    %235 = vector.broadcast %cst_72 : f32 to vector<2x32xf32>
    %236 = arith.divf %235, %234 : vector<2x32xf32>
    %237 = arith.addf %224, %227 : vector<2x32xf32>
    %cst_73 = arith.constant 0.000000e+00 : f32
    %238 = vector.broadcast %cst_73 : f32 to vector<2x32xf32>
    %239 = arith.subf %238, %237 : vector<2x32xf32>
    %240 = math.exp %239 : vector<2x32xf32>
    %cst_74 = arith.constant 1.000000e+00 : f32
    %241 = vector.broadcast %cst_74 : f32 to vector<2x32xf32>
    %242 = arith.addf %241, %240 : vector<2x32xf32>
    %cst_75 = arith.constant 1.000000e+00 : f32
    %243 = vector.broadcast %cst_75 : f32 to vector<2x32xf32>
    %244 = arith.divf %243, %242 : vector<2x32xf32>
    %245 = arith.mulf %236, %228 : vector<2x32xf32>
    %246 = arith.addf %225, %245 : vector<2x32xf32>
    %247 = math.tanh %246 : vector<2x32xf32>
    %cst_76 = arith.constant 1.000000e+00 : f32
    %248 = vector.broadcast %cst_76 : f32 to vector<2x32xf32>
    %249 = arith.subf %248, %244 : vector<2x32xf32>
    %250 = arith.mulf %249, %247 : vector<2x32xf32>
    %251 = arith.mulf %244, %218 : vector<2x32xf32>
    %252 = arith.addf %250, %251 : vector<2x32xf32>
    %253 = vector.extract_strided_slice %79 {offsets = [10, 0], sizes = [2, 96], strides = [1, 1]} : vector<16x96xf32> to vector<2x96xf32>
    %cst_77 = arith.constant dense<0.000000e+00> : vector<2x96xf32>
    %254 = tpu.matmul %252, %80, %cst_77 {dimension_numbers = #tpu.dot_dimension_numbers<[1], [0], [0], [1], [0, 0, 1, 1], [], []>} : vector<2x32xf32>, vector<32x96xf32>, vector<2x96xf32> -> vector<2x96xf32>
    %255 = vector.broadcast %81 : vector<1x96xf32> to vector<2x96xf32>
    %256 = arith.addf %254, %255 : vector<2x96xf32>
    %257 = vector.extract_strided_slice %253 {offsets = [0, 0], sizes = [2, 32], strides = [1, 1]} : vector<2x96xf32> to vector<2x32xf32>
    %258 = vector.extract_strided_slice %253 {offsets = [0, 32], sizes = [2, 32], strides = [1, 1]} : vector<2x96xf32> to vector<2x32xf32>
    %259 = vector.extract_strided_slice %253 {offsets = [0, 64], sizes = [2, 32], strides = [1, 1]} : vector<2x96xf32> to vector<2x32xf32>
    %260 = vector.extract_strided_slice %256 {offsets = [0, 0], sizes = [2, 32], strides = [1, 1]} : vector<2x96xf32> to vector<2x32xf32>
    %261 = vector.extract_strided_slice %256 {offsets = [0, 32], sizes = [2, 32], strides = [1, 1]} : vector<2x96xf32> to vector<2x32xf32>
    %262 = vector.extract_strided_slice %256 {offsets = [0, 64], sizes = [2, 32], strides = [1, 1]} : vector<2x96xf32> to vector<2x32xf32>
    %263 = arith.addf %257, %260 : vector<2x32xf32>
    %cst_78 = arith.constant 0.000000e+00 : f32
    %264 = vector.broadcast %cst_78 : f32 to vector<2x32xf32>
    %265 = arith.subf %264, %263 : vector<2x32xf32>
    %266 = math.exp %265 : vector<2x32xf32>
    %cst_79 = arith.constant 1.000000e+00 : f32
    %267 = vector.broadcast %cst_79 : f32 to vector<2x32xf32>
    %268 = arith.addf %267, %266 : vector<2x32xf32>
    %cst_80 = arith.constant 1.000000e+00 : f32
    %269 = vector.broadcast %cst_80 : f32 to vector<2x32xf32>
    %270 = arith.divf %269, %268 : vector<2x32xf32>
    %271 = arith.addf %258, %261 : vector<2x32xf32>
    %cst_81 = arith.constant 0.000000e+00 : f32
    %272 = vector.broadcast %cst_81 : f32 to vector<2x32xf32>
    %273 = arith.subf %272, %271 : vector<2x32xf32>
    %274 = math.exp %273 : vector<2x32xf32>
    %cst_82 = arith.constant 1.000000e+00 : f32
    %275 = vector.broadcast %cst_82 : f32 to vector<2x32xf32>
    %276 = arith.addf %275, %274 : vector<2x32xf32>
    %cst_83 = arith.constant 1.000000e+00 : f32
    %277 = vector.broadcast %cst_83 : f32 to vector<2x32xf32>
    %278 = arith.divf %277, %276 : vector<2x32xf32>
    %279 = arith.mulf %270, %262 : vector<2x32xf32>
    %280 = arith.addf %259, %279 : vector<2x32xf32>
    %281 = math.tanh %280 : vector<2x32xf32>
    %cst_84 = arith.constant 1.000000e+00 : f32
    %282 = vector.broadcast %cst_84 : f32 to vector<2x32xf32>
    %283 = arith.subf %282, %278 : vector<2x32xf32>
    %284 = arith.mulf %283, %281 : vector<2x32xf32>
    %285 = arith.mulf %278, %252 : vector<2x32xf32>
    %286 = arith.addf %284, %285 : vector<2x32xf32>
    %287 = vector.extract_strided_slice %79 {offsets = [12, 0], sizes = [2, 96], strides = [1, 1]} : vector<16x96xf32> to vector<2x96xf32>
    %cst_85 = arith.constant dense<0.000000e+00> : vector<2x96xf32>
    %288 = tpu.matmul %286, %80, %cst_85 {dimension_numbers = #tpu.dot_dimension_numbers<[1], [0], [0], [1], [0, 0, 1, 1], [], []>} : vector<2x32xf32>, vector<32x96xf32>, vector<2x96xf32> -> vector<2x96xf32>
    %289 = vector.broadcast %81 : vector<1x96xf32> to vector<2x96xf32>
    %290 = arith.addf %288, %289 : vector<2x96xf32>
    %291 = vector.extract_strided_slice %287 {offsets = [0, 0], sizes = [2, 32], strides = [1, 1]} : vector<2x96xf32> to vector<2x32xf32>
    %292 = vector.extract_strided_slice %287 {offsets = [0, 32], sizes = [2, 32], strides = [1, 1]} : vector<2x96xf32> to vector<2x32xf32>
    %293 = vector.extract_strided_slice %287 {offsets = [0, 64], sizes = [2, 32], strides = [1, 1]} : vector<2x96xf32> to vector<2x32xf32>
    %294 = vector.extract_strided_slice %290 {offsets = [0, 0], sizes = [2, 32], strides = [1, 1]} : vector<2x96xf32> to vector<2x32xf32>
    %295 = vector.extract_strided_slice %290 {offsets = [0, 32], sizes = [2, 32], strides = [1, 1]} : vector<2x96xf32> to vector<2x32xf32>
    %296 = vector.extract_strided_slice %290 {offsets = [0, 64], sizes = [2, 32], strides = [1, 1]} : vector<2x96xf32> to vector<2x32xf32>
    %297 = arith.addf %291, %294 : vector<2x32xf32>
    %cst_86 = arith.constant 0.000000e+00 : f32
    %298 = vector.broadcast %cst_86 : f32 to vector<2x32xf32>
    %299 = arith.subf %298, %297 : vector<2x32xf32>
    %300 = math.exp %299 : vector<2x32xf32>
    %cst_87 = arith.constant 1.000000e+00 : f32
    %301 = vector.broadcast %cst_87 : f32 to vector<2x32xf32>
    %302 = arith.addf %301, %300 : vector<2x32xf32>
    %cst_88 = arith.constant 1.000000e+00 : f32
    %303 = vector.broadcast %cst_88 : f32 to vector<2x32xf32>
    %304 = arith.divf %303, %302 : vector<2x32xf32>
    %305 = arith.addf %292, %295 : vector<2x32xf32>
    %cst_89 = arith.constant 0.000000e+00 : f32
    %306 = vector.broadcast %cst_89 : f32 to vector<2x32xf32>
    %307 = arith.subf %306, %305 : vector<2x32xf32>
    %308 = math.exp %307 : vector<2x32xf32>
    %cst_90 = arith.constant 1.000000e+00 : f32
    %309 = vector.broadcast %cst_90 : f32 to vector<2x32xf32>
    %310 = arith.addf %309, %308 : vector<2x32xf32>
    %cst_91 = arith.constant 1.000000e+00 : f32
    %311 = vector.broadcast %cst_91 : f32 to vector<2x32xf32>
    %312 = arith.divf %311, %310 : vector<2x32xf32>
    %313 = arith.mulf %304, %296 : vector<2x32xf32>
    %314 = arith.addf %293, %313 : vector<2x32xf32>
    %315 = math.tanh %314 : vector<2x32xf32>
    %cst_92 = arith.constant 1.000000e+00 : f32
    %316 = vector.broadcast %cst_92 : f32 to vector<2x32xf32>
    %317 = arith.subf %316, %312 : vector<2x32xf32>
    %318 = arith.mulf %317, %315 : vector<2x32xf32>
    %319 = arith.mulf %312, %286 : vector<2x32xf32>
    %320 = arith.addf %318, %319 : vector<2x32xf32>
    %321 = vector.extract_strided_slice %79 {offsets = [14, 0], sizes = [2, 96], strides = [1, 1]} : vector<16x96xf32> to vector<2x96xf32>
    %cst_93 = arith.constant dense<0.000000e+00> : vector<2x96xf32>
    %322 = tpu.matmul %320, %80, %cst_93 {dimension_numbers = #tpu.dot_dimension_numbers<[1], [0], [0], [1], [0, 0, 1, 1], [], []>} : vector<2x32xf32>, vector<32x96xf32>, vector<2x96xf32> -> vector<2x96xf32>
    %323 = vector.broadcast %81 : vector<1x96xf32> to vector<2x96xf32>
    %324 = arith.addf %322, %323 : vector<2x96xf32>
    %325 = vector.extract_strided_slice %321 {offsets = [0, 0], sizes = [2, 32], strides = [1, 1]} : vector<2x96xf32> to vector<2x32xf32>
    %326 = vector.extract_strided_slice %321 {offsets = [0, 32], sizes = [2, 32], strides = [1, 1]} : vector<2x96xf32> to vector<2x32xf32>
    %327 = vector.extract_strided_slice %321 {offsets = [0, 64], sizes = [2, 32], strides = [1, 1]} : vector<2x96xf32> to vector<2x32xf32>
    %328 = vector.extract_strided_slice %324 {offsets = [0, 0], sizes = [2, 32], strides = [1, 1]} : vector<2x96xf32> to vector<2x32xf32>
    %329 = vector.extract_strided_slice %324 {offsets = [0, 32], sizes = [2, 32], strides = [1, 1]} : vector<2x96xf32> to vector<2x32xf32>
    %330 = vector.extract_strided_slice %324 {offsets = [0, 64], sizes = [2, 32], strides = [1, 1]} : vector<2x96xf32> to vector<2x32xf32>
    %331 = arith.addf %325, %328 : vector<2x32xf32>
    %cst_94 = arith.constant 0.000000e+00 : f32
    %332 = vector.broadcast %cst_94 : f32 to vector<2x32xf32>
    %333 = arith.subf %332, %331 : vector<2x32xf32>
    %334 = math.exp %333 : vector<2x32xf32>
    %cst_95 = arith.constant 1.000000e+00 : f32
    %335 = vector.broadcast %cst_95 : f32 to vector<2x32xf32>
    %336 = arith.addf %335, %334 : vector<2x32xf32>
    %cst_96 = arith.constant 1.000000e+00 : f32
    %337 = vector.broadcast %cst_96 : f32 to vector<2x32xf32>
    %338 = arith.divf %337, %336 : vector<2x32xf32>
    %339 = arith.addf %326, %329 : vector<2x32xf32>
    %cst_97 = arith.constant 0.000000e+00 : f32
    %340 = vector.broadcast %cst_97 : f32 to vector<2x32xf32>
    %341 = arith.subf %340, %339 : vector<2x32xf32>
    %342 = math.exp %341 : vector<2x32xf32>
    %cst_98 = arith.constant 1.000000e+00 : f32
    %343 = vector.broadcast %cst_98 : f32 to vector<2x32xf32>
    %344 = arith.addf %343, %342 : vector<2x32xf32>
    %cst_99 = arith.constant 1.000000e+00 : f32
    %345 = vector.broadcast %cst_99 : f32 to vector<2x32xf32>
    %346 = arith.divf %345, %344 : vector<2x32xf32>
    %347 = arith.mulf %338, %330 : vector<2x32xf32>
    %348 = arith.addf %327, %347 : vector<2x32xf32>
    %349 = math.tanh %348 : vector<2x32xf32>
    %cst_100 = arith.constant 1.000000e+00 : f32
    %350 = vector.broadcast %cst_100 : f32 to vector<2x32xf32>
    %351 = arith.subf %350, %346 : vector<2x32xf32>
    %352 = arith.mulf %351, %349 : vector<2x32xf32>
    %353 = arith.mulf %346, %320 : vector<2x32xf32>
    %354 = arith.addf %352, %353 : vector<2x32xf32>
    %c0_101 = arith.constant 0 : index
    %c0_102 = arith.constant 0 : index
    %355 = vector.load %arg10[%c0_101, %c0_102] : memref<32x1xf32, #tpu.memory_space<vmem>>, vector<32x1xf32>
    %cst_103 = arith.constant dense<0.000000e+00> : vector<2x1xf32>
    %356 = tpu.matmul %354, %355, %cst_103 {dimension_numbers = #tpu.dot_dimension_numbers<[1], [0], [0], [1], [0, 0, 1, 1], [], []>} : vector<2x32xf32>, vector<32x1xf32>, vector<2x1xf32> -> vector<2x1xf32>
    %c0_104 = arith.constant 0 : index
    %c0_105 = arith.constant 0 : index
    %357 = vector.load %arg11[%c0_104, %c0_105] : memref<1x1xf32, #tpu.memory_space<vmem>>, vector<1x1xf32>
    %358 = vector.broadcast %357 : vector<1x1xf32> to vector<2x1xf32>
    %359 = arith.addf %356, %358 : vector<2x1xf32>
    %c0_106 = arith.constant 0 : index
    %c0_107 = arith.constant 0 : index
    %360 = vector.load %arg12[%c0_106, %c0_107] : memref<2x1xf32, #tpu.memory_space<vmem>>, vector<2x1xf32>
    %cst_108 = arith.constant 0.000000e+00 : f32
    %361 = vector.broadcast %cst_108 : f32 to vector<2x1xf32>
    %362 = arith.maximumf %359, %361 : vector<2x1xf32>
    %363 = arith.mulf %359, %360 : vector<2x1xf32>
    %364 = arith.subf %362, %363 : vector<2x1xf32>
    %365 = math.absf %359 : vector<2x1xf32>
    %cst_109 = arith.constant 0.000000e+00 : f32
    %366 = vector.broadcast %cst_109 : f32 to vector<2x1xf32>
    %367 = arith.subf %366, %365 : vector<2x1xf32>
    %368 = math.exp %367 : vector<2x1xf32>
    %369 = math.log1p %368 : vector<2x1xf32>
    %370 = arith.addf %364, %369 : vector<2x1xf32>
    %371 = vector.shape_cast %370 : vector<2x1xf32> to vector<1x2x1xf32>
    %cst_110 = arith.constant dense<0.000000e+00> : vector<1xf32>
    %372 = vector.multi_reduction <add>, %371, %cst_110 [1, 2] : vector<1x2x1xf32> to vector<1xf32>
    %373 = vector.shape_cast %372 : vector<1xf32> to vector<1x1x1xf32>
    %374 = vector.extract %373[0, 0, 0] : f32 from vector<1x1x1xf32>
    %375 = vector.broadcast %374 : f32 to vector<1x1xf32>
    %cst_111 = arith.constant 2.000000e+00 : f32
    %376 = vector.broadcast %cst_111 : f32 to vector<1x1xf32>
    %377 = arith.divf %375, %376 : vector<1x1xf32>
    %c0_112 = arith.constant 0 : index
    %c0_113 = arith.constant 0 : index
    %378 = vector.load %arg13[%c0_112, %c0_113] : memref<1x1xf32, #tpu.memory_space<vmem>>, vector<1x1xf32>
    tpu.vector_store %arg13[%c0_112, %c0_113], %377 {strides = array<i32>} : memref<1x1xf32, #tpu.memory_space<vmem>>, vector<1x1xf32>,
    %cst_114 = arith.constant 0.000000e+00 : f32
    %379 = vector.broadcast %cst_114 : f32 to vector<2x1xf32>
    %380 = arith.subf %379, %359 : vector<2x1xf32>
    %381 = math.exp %380 : vector<2x1xf32>
    %cst_115 = arith.constant 1.000000e+00 : f32
    %382 = vector.broadcast %cst_115 : f32 to vector<2x1xf32>
    %383 = arith.addf %382, %381 : vector<2x1xf32>
    %cst_116 = arith.constant 1.000000e+00 : f32
    %384 = vector.broadcast %cst_116 : f32 to vector<2x1xf32>
    %385 = arith.divf %384, %383 : vector<2x1xf32>
    %c0_117 = arith.constant 0 : index
    %c0_118 = arith.constant 0 : index
    %386 = vector.load %arg14[%c0_117, %c0_118] : memref<2x1xf32, #tpu.memory_space<vmem>>, vector<2x1xf32>
    tpu.vector_store %arg14[%c0_117, %c0_118], %385 {strides = array<i32>} : memref<2x1xf32, #tpu.memory_space<vmem>>, vector<2x1xf32>,
    return
  }
}

</mosaic_0001>

<llo_original>
// kernel: model_forward.1
$region0: #{model_forward.1}
  #allocation0 [shape = 'u32[]', space=smem, size = 0x4, offset = 0x4, fixed_abs, tag = 'smem constant byte address 0x4 - core index']
  #allocation1 [shape = 'u32[144,128]{1,0:T(1,128)}', space=vmem, size = 0x12000, scoped, tag = 'internal scratch']
  #allocation2 [shape = 'f32[1,1]{1,0:T(1,128)S(1)}', space=vmem, size = 0x200, scoped, tag = 'scoped memory for model_forward.1']
  %s0 = inlined_call_operand.vmem [shape: f32[16,128], index: 0, kind: input, shape index: {}]
  %s1 = inlined_call_operand.vmem [shape: f32[128,16], index: 1, kind: input, shape index: {}]
  %s2 = inlined_call_operand.vmem [shape: f32[128,64], index: 2, kind: input, shape index: {}]
  %s3 = inlined_call_operand.vmem [shape: f32[16,64], index: 3, kind: input, shape index: {}]
  %s4 = inlined_call_operand.vmem [shape: f32[1,32], index: 4, kind: input, shape index: {}]
  %s5 = inlined_call_operand.vmem [shape: f32[1,32], index: 5, kind: input, shape index: {}]
  %s6 = inlined_call_operand.vmem [shape: f32[32,96], index: 6, kind: input, shape index: {}]
  %s7 = inlined_call_operand.vmem [shape: f32[32,96], index: 7, kind: input, shape index: {}]
  %s8 = inlined_call_operand.vmem [shape: f32[1,96], index: 8, kind: input, shape index: {}]
  %s9 = inlined_call_operand.vmem [shape: f32[1,96], index: 9, kind: input, shape index: {}]
  %s10 = inlined_call_operand.vmem [shape: f32[32,1], index: 10, kind: input, shape index: {}]
  %s11 = inlined_call_operand.<no memory space> [shape: f32[1,1], index: 11, kind: input, shape index: {}]
  %s12 = inlined_call_operand.vmem [shape: f32[2,1], index: 12, kind: input, shape index: {}]
  %s13 = inlined_call_operand.hbm [shape: f32[1,1], index: 13, kind: output, shape index: {0}]
  %s14 = inlined_call_operand.vmem [shape: f32[2,1], index: 14, kind: output, shape index: {1}]
  %15 = xla_tuple %s13, %s14
  %s16 = sld [smem:[#allocation0]]
  $region70: #{model_forward.1} parent=0
    _
  %s18 = ssub.s32 1, %s16
  %s19 = scalar_select 0, %s18, %s16
  %v20 = vstv %s11
  %21 = vst [vmem:[#allocation2] sm:$0x1] %v20
  $region1: #{model_forward.1} parent=0
    #allocation3 [shape = 'u8[512]{0}', space=vmem, size = 0x400, scoped, tag = 'output window, operand 0, single buffered']
    #allocation4 [shape = 's32[1]{0}', space=sflag, size = 0x4, scoped, tag = 'scoped memory for model_forward.1']
    %22 = vsyncpa [#allocation4], 0
    // Predicated region
    $region2: #{model_forward.1} parent=1 // pred_check
      _
    $region3: #{model_forward.1} parent=1 // pred_check_branch
      %24 = sbr.rel (0) target = $region5
    $region4: #{model_forward.1} parent=1 // pred_region
      _
    $region5: #{model_forward.1} parent=1 // pred_fallthru
      _
    // Predicated region
    $region6: #{model_forward.1} parent=1 // pred_check
      _
    $region7: #{model_forward.1} parent=1 // pred_check_branch
      %26 = sbr.rel (0) target = $region9
    $region8: #{model_forward.1} parent=1 // pred_region
      _
    $region9: #{model_forward.1} parent=1 // pred_fallthru
      _
    // Predicated region
    $region10: #{model_forward.1} parent=1 // pred_check
      _
    $region11: #{model_forward.1} parent=1 // pred_check_branch
      %28 = sbr.rel (0) target = $region13
    $region12: #{model_forward.1} parent=1 // pred_region
      _
    $region13: #{model_forward.1} parent=1 // pred_fallthru
      _
    // Predicated region
    $region14: #{model_forward.1} parent=1 // pred_check
      _
    $region15: #{model_forward.1} parent=1 // pred_check_branch
      %30 = sbr.rel (0) target = $region17
    $region16: #{model_forward.1} parent=1 // pred_region
      _
    $region17: #{model_forward.1} parent=1 // pred_fallthru
      _
    // Predicated region
    $region18: #{model_forward.1} parent=1 // pred_check
      _
    $region19: #{model_forward.1} parent=1 // pred_check_branch
      %32 = sbr.rel (0) target = $region21
    $region20: #{model_forward.1} parent=1 // pred_region
      _
    $region21: #{model_forward.1} parent=1 // pred_fallthru
      _
    // Predicated region
    $region22: #{model_forward.1} parent=1 // pred_check
      _
    $region23: #{model_forward.1} parent=1 // pred_check_branch
      %34 = sbr.rel (0) target = $region25
    $region24: #{model_forward.1} parent=1 // pred_region
      _
    $region25: #{model_forward.1} parent=1 // pred_fallthru
      _
    // Predicated region
    $region26: #{model_forward.1} parent=1 // pred_check
      _
    $region27: #{model_forward.1} parent=1 // pred_check_branch
      %36 = sbr.rel (0) target = $region29
    $region28: #{model_forward.1} parent=1 // pred_region
      _
    $region29: #{model_forward.1} parent=1 // pred_fallthru
      _
    // Predicated region
    $region30: #{model_forward.1} parent=1 // pred_check
      _
    $region31: #{model_forward.1} parent=1 // pred_check_branch
      %38 = sbr.rel (0) target = $region33
    $region32: #{model_forward.1} parent=1 // pred_region
      _
    $region33: #{model_forward.1} parent=1 // pred_fallthru
      _
    // Predicated region
    $region34: #{model_forward.1} parent=1 // pred_check
      _
    $region35: #{model_forward.1} parent=1 // pred_check_branch
      %40 = sbr.rel (0) target = $region37
    $region36: #{model_forward.1} parent=1 // pred_region
      _
    $region37: #{model_forward.1} parent=1 // pred_fallthru
      _
    // Predicated region
    $region38: #{model_forward.1} parent=1 // pred_check
      _
    $region39: #{model_forward.1} parent=1 // pred_check_branch
      %42 = sbr.rel (0) target = $region41
    $region40: #{model_forward.1} parent=1 // pred_region
      _
    $region41: #{model_forward.1} parent=1 // pred_fallthru
      _
    // Predicated region
    $region42: #{model_forward.1} parent=1 // pred_check
      _
    $region43: #{model_forward.1} parent=1 // pred_check_branch
      %44 = sbr.rel (0) target = $region45
    $region44: #{model_forward.1} parent=1 // pred_region
      _
    $region45: #{model_forward.1} parent=1 // pred_fallthru
      _
    // Predicated region
    $region46: #{model_forward.1} parent=1 // pred_check
      _
    $region47: #{model_forward.1} parent=1 // pred_check_branch
      %46 = sbr.rel (0) target = $region49
    $region48: #{model_forward.1} parent=1 // pred_region
      _
    $region49: #{model_forward.1} parent=1 // pred_fallthru
      _
    // Predicated region
    $region50: #{model_forward.1} parent=1 // pred_check
      _
    $region51: #{model_forward.1} parent=1 // pred_check_branch
      %48 = sbr.rel (0) target = $region53
    $region52: #{model_forward.1} parent=1 // pred_region
      _
    $region53: #{model_forward.1} parent=1 // pred_fallthru
      _
    %v49 = vld [vmem:[%s0] sm:$0xff]
    %v50 = vld [vmem:[%s0 + $0x8] sm:$0xff]
    %v51 = vld [vmem:[%s1] sm:$0xff]
    %v52 = vld [vmem:[%s1 + $0x8] sm:$0xff]
    %v53 = vld [vmem:[%s1 + $0x10] sm:$0xff]
    %v54 = vld [vmem:[%s1 + $0x18] sm:$0xff]
    %v55 = vld [vmem:[%s1 + $0x20] sm:$0xff]
    %v56 = vld [vmem:[%s1 + $0x28] sm:$0xff]
    %v57 = vld [vmem:[%s1 + $0x30] sm:$0xff]
    %v58 = vld [vmem:[%s1 + $0x38] sm:$0xff]
    %v59 = vld [vmem:[%s1 + $0x40] sm:$0xff]
    %v60 = vld [vmem:[%s1 + $0x48] sm:$0xff]
    %v61 = vld [vmem:[%s1 + $0x50] sm:$0xff]
    %v62 = vld [vmem:[%s1 + $0x58] sm:$0xff]
    %v63 = vld [vmem:[%s1 + $0x60] sm:$0xff]
    %v64 = vld [vmem:[%s1 + $0x68] sm:$0xff]
    %v65 = vld [vmem:[%s1 + $0x70] sm:$0xff]
    %v66 = vld [vmem:[%s1 + $0x78] sm:$0xff]
    %v67 = vld [vmem:[%s2] sm:$0xff]
    %v68 = vld [vmem:[%s2 + $0x8] sm:$0xff]
    %v69 = vld [vmem:[%s2 + $0x10] sm:$0xff]
    %v70 = vld [vmem:[%s2 + $0x18] sm:$0xff]
    %v71 = vld [vmem:[%s2 + $0x20] sm:$0xff]
    %v72 = vld [vmem:[%s2 + $0x28] sm:$0xff]
    %v73 = vld [vmem:[%s2 + $0x30] sm:$0xff]
    %v74 = vld [vmem:[%s2 + $0x38] sm:$0xff]
    %v75 = vld [vmem:[%s2 + $0x40] sm:$0xff]
    %v76 = vld [vmem:[%s2 + $0x48] sm:$0xff]
    %v77 = vld [vmem:[%s2 + $0x50] sm:$0xff]
    %v78 = vld [vmem:[%s2 + $0x58] sm:$0xff]
    %v79 = vld [vmem:[%s2 + $0x60] sm:$0xff]
    %v80 = vld [vmem:[%s2 + $0x68] sm:$0xff]
    %v81 = vld [vmem:[%s2 + $0x70] sm:$0xff]
    %v82 = vld [vmem:[%s2 + $0x78] sm:$0xff]
    %83 = vmatprep.subr.mxu0 0.0
    %84 = vmatpush1.msra.mxu0 %v67
    %85 = vmatprep.subr.mxu0 0.0
    %86 = vmatpush1.msra.mxu0 %v68
    %87 = vmatprep.subr.mxu0 0.0
    %88 = vmatpush1.msra.mxu0 %v69
    %89 = vmatprep.subr.mxu0 0.0
    %90 = vmatpush1.msra.mxu0 %v70
    %91 = vmatprep.subr.mxu0 0.0
    %92 = vmatpush1.msra.mxu0 %v71
    %93 = vmatprep.subr.mxu0 0.0
    %94 = vmatpush1.msra.mxu0 %v72
    %95 = vmatprep.subr.mxu0 0.0
    %96 = vmatpush1.msra.mxu0 %v73
    %97 = vmatprep.subr.mxu0 0.0
    %98 = vmatpush1.msra.mxu0 %v74
    %99 = vmatprep.subr.mxu0 0.0
    %100 = vmatpush1.msra.mxu0 %v75
    %101 = vmatprep.subr.mxu0 0.0
    %102 = vmatpush1.msra.mxu0 %v76
    %103 = vmatprep.subr.mxu0 0.0
    %104 = vmatpush1.msra.mxu0 %v77
    %105 = vmatprep.subr.mxu0 0.0
    %106 = vmatpush1.msra.mxu0 %v78
    %107 = vmatprep.subr.mxu0 0.0
    %108 = vmatpush1.msra.mxu0 %v79
    %109 = vmatprep.subr.mxu0 0.0
    %110 = vmatpush1.msra.mxu0 %v80
    %111 = vmatprep.subr.mxu0 0.0
    %112 = vmatpush1.msra.mxu0 %v81
    %113 = vmatprep.subr.mxu0 0.0
    %114 = vmatpush1.msra.mxu0 %v82
    %115 = vmatprep.subr.mxu0 0.0
    %116 = vmatpush1.msra.mxu0 0.0
    %117 = vmatprep.subr.mxu0 0.0
    %118 = vmatpush1.msra.mxu0 0.0
    %119 = vmatprep.subr.mxu0 0.0
    %120 = vmatpush1.msra.mxu0 0.0
    %121 = vmatprep.subr.mxu0 0.0
    %122 = vmatpush1.msra.mxu0 0.0
    %123 = vmatprep.subr.mxu0 0.0
    %124 = vmatpush1.msra.mxu0 0.0
    %125 = vmatprep.subr.mxu0 0.0
    %126 = vmatpush1.msra.mxu0 0.0
    %127 = vmatprep.subr.mxu0 0.0
    %128 = vmatpush1.msra.mxu0 0.0
    %129 = vmatprep.subr.mxu0 0.0
    %130 = vmatpush1.msra.mxu0 0.0
    %131 = vmatprep.subr.mxu0 0.0
    %132 = vmatpush1.msra.mxu0 0.0
    %133 = vmatprep.subr.mxu0 0.0
    %134 = vmatpush1.msra.mxu0 0.0
    %135 = vmatprep.subr.mxu0 0.0
    %136 = vmatpush1.msra.mxu0 0.0
    %137 = vmatprep.subr.mxu0 0.0
    %138 = vmatpush1.msra.mxu0 0.0
    %139 = vmatprep.subr.mxu0 0.0
    %140 = vmatpush1.msra.mxu0 0.0
    %141 = vmatprep.subr.mxu0 0.0
    %142 = vmatpush1.msra.mxu0 0.0
    %143 = vmatprep.subr.mxu0 0.0
    %144 = vmatpush1.msra.mxu0 0.0
    %145 = vmatprep.subr.mxu0 0.0
    %146 = vmatpush1.msra.mxu0 0.0
    %147 = vmatprep.mubr.f32.mxu0 0.0
    %148 = vmatmul.mubr.f32.gmra.mrb[0].mxu0 %v49
    %v149 = vpop.f32.mrb[0].mxu0
    %v150 = vadd.f32 0.0, %v149
    %v151 = vpop.f32.mrb[0].mxu0
    %152 = vmatprep.mubr.f32.mxu0 0.0
    %153 = vmatmul.mubr.f32.gmra.mrb[0].mxu0 %v50
    %v154 = vpop.f32.mrb[0].mxu0
    %v155 = vadd.f32 0.0, %v154
    %v156 = vpop.f32.mrb[0].mxu0
    %157 = vdwg.mxu0
    %v158 = vld [vmem:[%s3] sm:$0xff]
    %v159 = vld [vmem:[%s3 + $0x8] sm:$0xff]
    %vm160 = vcmask 130048
    %v162 = vsel %vm160, %v51, 0
    %v165 = vsel %vm160, %v52, 0
    %v168 = vsel %vm160, %v53, 0
    %v171 = vsel %vm160, %v54, 0
    %v174 = vsel %vm160, %v55, 0
    %v177 = vsel %vm160, %v56, 0
    %v180 = vsel %vm160, %v57, 0
    %v183 = vsel %vm160, %v58, 0
    %v186 = vsel %vm160, %v59, 0
    %v189 = vsel %vm160, %v60, 0
    %v192 = vsel %vm160, %v61, 0
    %v195 = vsel %vm160, %v62, 0
    %v198 = vsel %vm160, %v63, 0
    %v201 = vsel %vm160, %v64, 0
    %v204 = vsel %vm160, %v65, 0
    %v207 = vsel %vm160, %v66, 0
    %209 = vmatprep.subr.mxu0 0.0
    %210 = vmatpush1.msra.mxu0 %v158
    %211 = vmatprep.subr.mxu0 0.0
    %212 = vmatpush1.msra.mxu0 %v159
    %213 = vmatprep.subr.mxu0 0.0
    %214 = vmatpush1.msra.mxu0 0.0
    %215 = vmatprep.subr.mxu0 0.0
    %216 = vmatpush1.msra.mxu0 0.0
    %217 = vmatprep.subr.mxu0 0.0
    %218 = vmatpush1.msra.mxu0 0.0
    %219 = vmatprep.subr.mxu0 0.0
    %220 = vmatpush1.msra.mxu0 0.0
    %221 = vmatprep.subr.mxu0 0.0
    %222 = vmatpush1.msra.mxu0 0.0
    %223 = vmatprep.subr.mxu0 0.0
    %224 = vmatpush1.msra.mxu0 0.0
    %225 = vmatprep.subr.mxu0 0.0
    %226 = vmatpush1.msra.mxu0 0.0
    %227 = vmatprep.subr.mxu0 0.0
    %228 = vmatpush1.msra.mxu0 0.0
    %229 = vmatprep.subr.mxu0 0.0
    %230 = vmatpush1.msra.mxu0 0.0
    %231 = vmatprep.subr.mxu0 0.0
    %232 = vmatpush1.msra.mxu0 0.0
    %233 = vmatprep.subr.mxu0 0.0
    %234 = vmatpush1.msra.mxu0 0.0
    %235 = vmatprep.subr.mxu0 0.0
    %236 = vmatpush1.msra.mxu0 0.0
    %237 = vmatprep.subr.mxu0 0.0
    %238 = vmatpush1.msra.mxu0 0.0
    %239 = vmatprep.subr.mxu0 0.0
    %240 = vmatpush1.msra.mxu0 0.0
    %241 = vmatprep.subr.mxu0 0.0
    %242 = vmatpush1.msra.mxu0 0.0
    %243 = vmatprep.subr.mxu0 0.0
    %244 = vmatpush1.msra.mxu0 0.0
    %245 = vmatprep.subr.mxu0 0.0
    %246 = vmatpush1.msra.mxu0 0.0
    %247 = vmatprep.subr.mxu0 0.0
    %248 = vmatpush1.msra.mxu0 0.0
    %249 = vmatprep.subr.mxu0 0.0
    %250 = vmatpush1.msra.mxu0 0.0
    %251 = vmatprep.subr.mxu0 0.0
    %252 = vmatpush1.msra.mxu0 0.0
    %253 = vmatprep.subr.mxu0 0.0
    %254 = vmatpush1.msra.mxu0 0.0
    %255 = vmatprep.subr.mxu0 0.0
    %256 = vmatpush1.msra.mxu0 0.0
    %257 = vmatprep.subr.mxu0 0.0
    %258 = vmatpush1.msra.mxu0 0.0
    %259 = vmatprep.subr.mxu0 0.0
    %260 = vmatpush1.msra.mxu0 0.0
    %261 = vmatprep.subr.mxu0 0.0
    %262 = vmatpush1.msra.mxu0 0.0
    %263 = vmatprep.subr.mxu0 0.0
    %264 = vmatpush1.msra.mxu0 0.0
    %265 = vmatprep.subr.mxu0 0.0
    %266 = vmatpush1.msra.mxu0 0.0
    %267 = vmatprep.subr.mxu0 0.0
    %268 = vmatpush1.msra.mxu0 0.0
    %269 = vmatprep.subr.mxu0 0.0
    %270 = vmatpush1.msra.mxu0 0.0
    %271 = vmatprep.subr.mxu0 0.0
    %272 = vmatpush1.msra.mxu0 0.0
    %273 = vmatprep.mubr.f32.mxu0 0.0
    %274 = vmatmul.mubr.f32.gmra.mrb[0].mxu0 %v162
    %v275 = vpop.f32.mrb[0].mxu0
    %v276 = vadd.f32 0.0, %v275
    %v277 = vpop.f32.mrb[0].mxu0
    %278 = vmatprep.mubr.f32.mxu0 0.0
    %279 = vmatmul.mubr.f32.gmra.mrb[0].mxu0 %v165
    %v280 = vpop.f32.mrb[0].mxu0
    %v281 = vadd.f32 0.0, %v280
    %v282 = vpop.f32.mrb[0].mxu0
    %283 = vmatprep.mubr.f32.mxu0 0.0
    %284 = vmatmul.mubr.f32.gmra.mrb[0].mxu0 %v168
    %v285 = vpop.f32.mrb[0].mxu0
    %v286 = vadd.f32 0.0, %v285
    %v287 = vpop.f32.mrb[0].mxu0
    %288 = vmatprep.mubr.f32.mxu0 0.0
    %289 = vmatmul.mubr.f32.gmra.mrb[0].mxu0 %v171
    %v290 = vpop.f32.mrb[0].mxu0
    %v291 = vadd.f32 0.0, %v290
    %v292 = vpop.f32.mrb[0].mxu0
    %293 = vmatprep.mubr.f32.mxu0 0.0
    %294 = vmatmul.mubr.f32.gmra.mrb[0].mxu0 %v174
    %v295 = vpop.f32.mrb[0].mxu0
    %v296 = vadd.f32 0.0, %v295
    %v297 = vpop.f32.mrb[0].mxu0
    %298 = vmatprep.mubr.f32.mxu0 0.0
    %299 = vmatmul.mubr.f32.gmra.mrb[0].mxu0 %v177
    %v300 = vpop.f32.mrb[0].mxu0
    %v301 = vadd.f32 0.0, %v300
    %v302 = vpop.f32.mrb[0].mxu0
    %303 = vmatprep.mubr.f32.mxu0 0.0
    %304 = vmatmul.mubr.f32.gmra.mrb[0].mxu0 %v180
    %v305 = vpop.f32.mrb[0].mxu0
    %v306 = vadd.f32 0.0, %v305
    %v307 = vpop.f32.mrb[0].mxu0
    %308 = vmatprep.mubr.f32.mxu0 0.0
    %309 = vmatmul.mubr.f32.gmra.mrb[0].mxu0 %v183
    %v310 = vpop.f32.mrb[0].mxu0
    %v311 = vadd.f32 0.0, %v310
    %v312 = vpop.f32.mrb[0].mxu0
    %313 = vmatprep.mubr.f32.mxu0 0.0
    %314 = vmatmul.mubr.f32.gmra.mrb[0].mxu0 %v186
    %v315 = vpop.f32.mrb[0].mxu0
    %v316 = vadd.f32 0.0, %v315
    %v317 = vpop.f32.mrb[0].mxu0
    %318 = vmatprep.mubr.f32.mxu0 0.0
    %319 = vmatmul.mubr.f32.gmra.mrb[0].mxu0 %v189
    %v320 = vpop.f32.mrb[0].mxu0
    %v321 = vadd.f32 0.0, %v320
    %v322 = vpop.f32.mrb[0].mxu0
    %323 = vmatprep.mubr.f32.mxu0 0.0
    %324 = vmatmul.mubr.f32.gmra.mrb[0].mxu0 %v192
    %v325 = vpop.f32.mrb[0].mxu0
    %v326 = vadd.f32 0.0, %v325
    %v327 = vpop.f32.mrb[0].mxu0
    %328 = vmatprep.mubr.f32.mxu0 0.0
    %329 = vmatmul.mubr.f32.gmra.mrb[0].mxu0 %v195
    %v330 = vpop.f32.mrb[0].mxu0
    %v331 = vadd.f32 0.0, %v330
    %v332 = vpop.f32.mrb[0].mxu0
    %333 = vmatprep.mubr.f32.mxu0 0.0
    %334 = vmatmul.mubr.f32.gmra.mrb[0].mxu0 %v198
    %v335 = vpop.f32.mrb[0].mxu0
    %v336 = vadd.f32 0.0, %v335
    %v337 = vpop.f32.mrb[0].mxu0
    %338 = vmatprep.mubr.f32.mxu0 0.0
    %339 = vmatmul.mubr.f32.gmra.mrb[0].mxu0 %v201
    %v340 = vpop.f32.mrb[0].mxu0
    %v341 = vadd.f32 0.0, %v340
    %v342 = vpop.f32.mrb[0].mxu0
    %343 = vmatprep.mubr.f32.mxu0 0.0
    %344 = vmatmul.mubr.f32.gmra.mrb[0].mxu0 %v204
    %v345 = vpop.f32.mrb[0].mxu0
    %v346 = vadd.f32 0.0, %v345
    %v347 = vpop.f32.mrb[0].mxu0
    %348 = vmatprep.mubr.f32.mxu0 0.0
    %349 = vmatmul.mubr.f32.gmra.mrb[0].mxu0 %v207
    %v350 = vpop.f32.mrb[0].mxu0
    %v351 = vadd.f32 0.0, %v350
    %v352 = vpop.f32.mrb[0].mxu0
    %353 = vdwg.mxu0
    %v356 = vcombine.high %v150, %v150
    %v358 = vunpack.c.l.s4 1966171168
    %v359 = vunpack.c.0.s8 %v358
    %v360 = vlaneseq
    %v361 = vshrl.u32 %v360, 7
    %v362 = vsub.s32 %v359, %v361
    %v363 = vrot.slane %v150, %v362
    %v365 = vunpack.c.l.s4 1966171168
    %v366 = vunpack.c.0.s8 %v365
    %v367 = vlaneseq
    %v368 = vshrl.u32 %v367, 7
    %v369 = vsub.s32 %v366, %v368
    %v370 = vrot.slane %v356, %v369
    %v371 = vcombine.high %v363, %v363
    %v372 = vcombine.high %v370, %v370
    %v374 = vunpack.c.l.s4 1966171168
    %v375 = vunpack.c.0.s8 %v374
    %v376 = vlaneseq
    %v377 = vshrl.u32 %v376, 7
    %v378 = vsub.s32 %v375, %v377
    %v379 = vrot.slane %v363, %v378
    %v381 = vunpack.c.l.s4 1966171168
    %v382 = vunpack.c.0.s8 %v381
    %v383 = vlaneseq
    %v384 = vshrl.u32 %v383, 7
    %v385 = vsub.s32 %v382, %v384
    %v386 = vrot.slane %v370, %v385
    %v388 = vunpack.c.l.s4 1966171168
    %v389 = vunpack.c.0.s8 %v388
    %v390 = vlaneseq
    %v391 = vshrl.u32 %v390, 7
    %v392 = vsub.s32 %v389, %v391
    %v393 = vrot.slane %v371, %v392
    %v395 = vunpack.c.l.s4 1966171168
    %v396 = vunpack.c.0.s8 %v395
    %v397 = vlaneseq
    %v398 = vshrl.u32 %v397, 7
    %v399 = vsub.s32 %v396, %v398
    %v400 = vrot.slane %v372, %v399
    %v401 = vcombine.high %v379, %v379
    %v402 = vcombine.high %v386, %v386
    %v403 = vcombine.high %v393, %v393
    %v404 = vcombine.high %v400, %v400
    %v405 = vcombine.high %v155, %v155
    %v407 = vunpack.c.l.s4 1966171168
    %v408 = vunpack.c.0.s8 %v407
    %v409 = vlaneseq
    %v410 = vshrl.u32 %v409, 7
    %v411 = vsub.s32 %v408, %v410
    %v412 = vrot.slane %v155, %v411
    %v414 = vunpack.c.l.s4 1966171168
    %v415 = vunpack.c.0.s8 %v414
    %v416 = vlaneseq
    %v417 = vshrl.u32 %v416, 7
    %v418 = vsub.s32 %v415, %v417
    %v419 = vrot.slane %v405, %v418
    %v420 = vcombine.high %v412, %v412
    %v421 = vcombine.high %v419, %v419
    %v423 = vunpack.c.l.s4 1966171168
    %v424 = vunpack.c.0.s8 %v423
    %v425 = vlaneseq
    %v426 = vshrl.u32 %v425, 7
    %v427 = vsub.s32 %v424, %v426
    %v428 = vrot.slane %v412, %v427
    %v430 = vunpack.c.l.s4 1966171168
    %v431 = vunpack.c.0.s8 %v430
    %v432 = vlaneseq
    %v433 = vshrl.u32 %v432, 7
    %v434 = vsub.s32 %v431, %v433
    %v435 = vrot.slane %v419, %v434
    %v437 = vunpack.c.l.s4 1966171168
    %v438 = vunpack.c.0.s8 %v437
    %v439 = vlaneseq
    %v440 = vshrl.u32 %v439, 7
    %v441 = vsub.s32 %v438, %v440
    %v442 = vrot.slane %v420, %v441
    %v444 = vunpack.c.l.s4 1966171168
    %v445 = vunpack.c.0.s8 %v444
    %v446 = vlaneseq
    %v447 = vshrl.u32 %v446, 7
    %v448 = vsub.s32 %v445, %v447
    %v449 = vrot.slane %v421, %v448
    %v450 = vcombine.high %v428, %v428
    %v451 = vcombine.high %v435, %v435
    %v452 = vcombine.high %v442, %v442
    %v453 = vcombine.high %v449, %v449
    %v454 = vlaneseq
    %v455 = vshrl.u32 %v454, 7
    %v456 = vsub.s32 0, %v455
    %v457 = vrot.slane %v379, %v456
    %v458 = vlaneseq
    %v459 = vshrl.u32 %v458, 7
    %v460 = vsub.s32 0, %v459
    %v461 = vrot.slane %v393, %v460
    %v462 = vlaneseq
    %v463 = vshrl.u32 %v462, 7
    %v464 = vsub.s32 0, %v463
    %v465 = vrot.slane %v401, %v464
    %v466 = vlaneseq
    %v467 = vshrl.u32 %v466, 7
    %v468 = vsub.s32 0, %v467
    %v469 = vrot.slane %v403, %v468
    %v470 = vlaneseq
    %v471 = vshrl.u32 %v470, 7
    %v472 = vsub.s32 0, %v471
    %v473 = vrot.slane %v386, %v472
    %v474 = vlaneseq
    %v475 = vshrl.u32 %v474, 7
    %v476 = vsub.s32 0, %v475
    %v477 = vrot.slane %v400, %v476
    %v478 = vlaneseq
    %v479 = vshrl.u32 %v478, 7
    %v480 = vsub.s32 0, %v479
    %v481 = vrot.slane %v402, %v480
    %v482 = vlaneseq
    %v483 = vshrl.u32 %v482, 7
    %v484 = vsub.s32 0, %v483
    %v485 = vrot.slane %v404, %v484
    %v486 = vlaneseq
    %v487 = vshrl.u32 %v486, 7
    %v488 = vsub.s32 0, %v487
    %v489 = vrot.slane %v428, %v488
    %v490 = vlaneseq
    %v491 = vshrl.u32 %v490, 7
    %v492 = vsub.s32 0, %v491
    %v493 = vrot.slane %v442, %v492
    %v494 = vlaneseq
    %v495 = vshrl.u32 %v494, 7
    %v496 = vsub.s32 0, %v495
    %v497 = vrot.slane %v450, %v496
    %v498 = vlaneseq
    %v499 = vshrl.u32 %v498, 7
    %v500 = vsub.s32 0, %v499
    %v501 = vrot.slane %v452, %v500
    %v502 = vlaneseq
    %v503 = vshrl.u32 %v502, 7
    %v504 = vsub.s32 0, %v503
    %v505 = vrot.slane %v435, %v504
    %v506 = vlaneseq
    %v507 = vshrl.u32 %v506, 7
    %v508 = vsub.s32 0, %v507
    %v509 = vrot.slane %v449, %v508
    %v510 = vlaneseq
    %v511 = vshrl.u32 %v510, 7
    %v512 = vsub.s32 0, %v511
    %v513 = vrot.slane %v451, %v512
    %v514 = vlaneseq
    %v515 = vshrl.u32 %v514, 7
    %v516 = vsub.s32 0, %v515
    %v517 = vrot.slane %v453, %v516
    %v534 = vmul.f32 %v276, %v457
    %v535 = vmul.f32 %v281, %v461
    %v536 = vmul.f32 %v286, %v465
    %v537 = vmul.f32 %v291, %v469
    %v538 = vmul.f32 %v296, %v473
    %v539 = vmul.f32 %v301, %v477
    %v540 = vmul.f32 %v306, %v481
    %v541 = vmul.f32 %v311, %v485
    %v542 = vmul.f32 %v316, %v489
    %v543 = vmul.f32 %v321, %v493
    %v544 = vmul.f32 %v326, %v497
    %v545 = vmul.f32 %v331, %v501
    %v546 = vmul.f32 %v336, %v505
    %v547 = vmul.f32 %v341, %v509
    %v548 = vmul.f32 %v346, %v513
    %v549 = vmul.f32 %v351, %v517
    %vm550 = vcmask 261120
    %v551 = vsel %vm550, %v534, 0.0
    %552 = vadd.xlane.f32.xlu0 %v551
    %v553 = vpop.xlane.xlu0 %552
    %v554 = vsel %vm550, %v535, 0.0
    %555 = vadd.xlane.f32.xlu0 %v554
    %v556 = vpop.xlane.xlu0 %555
    %v557 = vsel %vm550, %v536, 0.0
    %558 = vadd.xlane.f32.xlu0 %v557
    %v559 = vpop.xlane.xlu0 %558
    %v560 = vsel %vm550, %v537, 0.0
    %561 = vadd.xlane.f32.xlu0 %v560
    %v562 = vpop.xlane.xlu0 %561
    %v563 = vsel %vm550, %v538, 0.0
    %564 = vadd.xlane.f32.xlu0 %v563
    %v565 = vpop.xlane.xlu0 %564
    %v566 = vsel %vm550, %v539, 0.0
    %567 = vadd.xlane.f32.xlu0 %v566
    %v568 = vpop.xlane.xlu0 %567
    %v569 = vsel %vm550, %v540, 0.0
    %570 = vadd.xlane.f32.xlu0 %v569
    %v571 = vpop.xlane.xlu0 %570
    %v572 = vsel %vm550, %v541, 0.0
    %573 = vadd.xlane.f32.xlu0 %v572
    %v574 = vpop.xlane.xlu0 %573
    %v575 = vsel %vm550, %v542, 0.0
    %576 = vadd.xlane.f32.xlu0 %v575
    %v577 = vpop.xlane.xlu0 %576
    %v578 = vsel %vm550, %v543, 0.0
    %579 = vadd.xlane.f32.xlu0 %v578
    %v580 = vpop.xlane.xlu0 %579
    %v581 = vsel %vm550, %v544, 0.0
    %582 = vadd.xlane.f32.xlu0 %v581
    %v583 = vpop.xlane.xlu0 %582
    %v584 = vsel %vm550, %v545, 0.0
    %585 = vadd.xlane.f32.xlu0 %v584
    %v586 = vpop.xlane.xlu0 %585
    %v587 = vsel %vm550, %v546, 0.0
    %588 = vadd.xlane.f32.xlu0 %v587
    %v589 = vpop.xlane.xlu0 %588
    %v590 = vsel %vm550, %v547, 0.0
    %591 = vadd.xlane.f32.xlu0 %v590
    %v592 = vpop.xlane.xlu0 %591
    %v593 = vsel %vm550, %v548, 0.0
    %594 = vadd.xlane.f32.xlu0 %v593
    %v595 = vpop.xlane.xlu0 %594
    %v596 = vsel %vm550, %v549, 0.0
    %597 = vadd.xlane.f32.xlu0 %v596
    %v598 = vpop.xlane.xlu0 %597
    %v599 = vmul.f32 %v553, 0.18257418
    %v600 = vmul.f32 %v556, 0.18257418
    %v601 = vmul.f32 %v559, 0.18257418
    %v602 = vmul.f32 %v562, 0.18257418
    %v603 = vmul.f32 %v565, 0.18257418
    %v604 = vmul.f32 %v568, 0.18257418
    %v605 = vmul.f32 %v571, 0.18257418
    %v606 = vmul.f32 %v574, 0.18257418
    %v607 = vmul.f32 %v577, 0.18257418
    %v608 = vmul.f32 %v580, 0.18257418
    %v609 = vmul.f32 %v583, 0.18257418
    %v610 = vmul.f32 %v586, 0.18257418
    %v611 = vmul.f32 %v589, 0.18257418
    %v612 = vmul.f32 %v592, 0.18257418
    %v613 = vmul.f32 %v595, 0.18257418
    %v614 = vmul.f32 %v598, 0.18257418
    %v631 = vlaneseq
    %v632 = vand.u32 %v631, 127
    %v633 = vlaneseq
    %v634 = vshrl.u32 %v633, 7
    %v635 = vsub.s32 %v632, %v634
    %v636 = vrot.slane %v599, %v635
    %v637 = vlaneseq
    %v638 = vshrl.u32 %v637, 7
    %v639 = vsub.s32 %v632, %v638
    %v640 = vrot.slane %v600, %v639
    %v641 = vlaneseq
    %v642 = vshrl.u32 %v641, 7
    %v643 = vsub.s32 %v632, %v642
    %v644 = vrot.slane %v601, %v643
    %v645 = vlaneseq
    %v646 = vshrl.u32 %v645, 7
    %v647 = vsub.s32 %v632, %v646
    %v648 = vrot.slane %v602, %v647
    %v649 = vlaneseq
    %v650 = vshrl.u32 %v649, 7
    %v651 = vsub.s32 %v632, %v650
    %v652 = vrot.slane %v603, %v651
    %v653 = vlaneseq
    %v654 = vshrl.u32 %v653, 7
    %v655 = vsub.s32 %v632, %v654
    %v656 = vrot.slane %v604, %v655
    %v657 = vlaneseq
    %v658 = vshrl.u32 %v657, 7
    %v659 = vsub.s32 %v632, %v658
    %v660 = vrot.slane %v605, %v659
    %v661 = vlaneseq
    %v662 = vshrl.u32 %v661, 7
    %v663 = vsub.s32 %v632, %v662
    %v664 = vrot.slane %v606, %v663
    %v665 = vlaneseq
    %v666 = vshrl.u32 %v665, 7
    %v667 = vsub.s32 %v632, %v666
    %v668 = vrot.slane %v607, %v667
    %v669 = vlaneseq
    %v670 = vshrl.u32 %v669, 7
    %v671 = vsub.s32 %v632, %v670
    %v672 = vrot.slane %v608, %v671
    %v673 = vlaneseq
    %v674 = vshrl.u32 %v673, 7
    %v675 = vsub.s32 %v632, %v674
    %v676 = vrot.slane %v609, %v675
    %v677 = vlaneseq
    %v678 = vshrl.u32 %v677, 7
    %v679 = vsub.s32 %v632, %v678
    %v680 = vrot.slane %v610, %v679
    %v681 = vlaneseq
    %v682 = vshrl.u32 %v681, 7
    %v683 = vsub.s32 %v632, %v682
    %v684 = vrot.slane %v611, %v683
    %v685 = vlaneseq
    %v686 = vshrl.u32 %v685, 7
    %v687 = vsub.s32 %v632, %v686
    %v688 = vrot.slane %v612, %v687
    %v689 = vlaneseq
    %v690 = vshrl.u32 %v689, 7
    %v691 = vsub.s32 %v632, %v690
    %v692 = vrot.slane %v613, %v691
    %v693 = vlaneseq
    %v694 = vshrl.u32 %v693, 7
    %v695 = vsub.s32 %v632, %v694
    %v696 = vrot.slane %v614, %v695
    %vm697 = vcmask 1041409
    %v698 = vsel %vm697, %v640, %v636
    %vm699 = vcmask 1042434
    %v700 = vsel %vm699, %v644, %v698
    %vm701 = vcmask 1043459
    %v702 = vsel %vm701, %v648, %v700
    %vm703 = vcmask 1044484
    %v704 = vsel %vm703, %v652, %v702
    %vm705 = vcmask 1045509
    %v706 = vsel %vm705, %v656, %v704
    %vm707 = vcmask 1046534
    %v708 = vsel %vm707, %v660, %v706
    %vm709 = vcmask 1047559
    %v710 = vsel %vm709, %v664, %v708
    %v711 = vsel %vm697, %v672, %v668
    %v712 = vsel %vm699, %v676, %v711
    %v713 = vsel %vm701, %v680, %v712
    %v714 = vsel %vm703, %v684, %v713
    %v715 = vsel %vm705, %v688, %v714
    %v716 = vsel %vm707, %v692, %v715
    %v717 = vsel %vm709, %v696, %v716
    %vm720 = vcmask 64512
    %v721 = vsel %vm720, %v710, -inf
    %722 = vmax.xlane.f32.xlu0 %v721
    %v723 = vpop.xlane.xlu0 %722
    %v724 = vsel %vm720, %v717, -inf
    %725 = vmax.xlane.f32.xlu0 %v724
    %v726 = vpop.xlane.xlu0 %725
    %v729 = vlaneseq
    %v730 = vshrl.u32 %v729, 7
    %v731 = vsub.s32 0, %v730
    %v732 = vrot.slane %v723, %v731
    %v733 = vlaneseq
    %v734 = vshrl.u32 %v733, 7
    %v735 = vsub.s32 1, %v734
    %v736 = vrot.slane %v723, %v735
    %v737 = vlaneseq
    %v738 = vshrl.u32 %v737, 7
    %v739 = vsub.s32 2, %v738
    %v740 = vrot.slane %v723, %v739
    %v741 = vlaneseq
    %v742 = vshrl.u32 %v741, 7
    %v743 = vsub.s32 3, %v742
    %v744 = vrot.slane %v723, %v743
    %v745 = vlaneseq
    %v746 = vshrl.u32 %v745, 7
    %v747 = vsub.s32 4, %v746
    %v748 = vrot.slane %v723, %v747
    %v749 = vlaneseq
    %v750 = vshrl.u32 %v749, 7
    %v751 = vsub.s32 5, %v750
    %v752 = vrot.slane %v723, %v751
    %v753 = vlaneseq
    %v754 = vshrl.u32 %v753, 7
    %v755 = vsub.s32 6, %v754
    %v756 = vrot.slane %v723, %v755
    %v757 = vlaneseq
    %v758 = vshrl.u32 %v757, 7
    %v759 = vsub.s32 7, %v758
    %v760 = vrot.slane %v723, %v759
    %v761 = vlaneseq
    %v762 = vshrl.u32 %v761, 7
    %v763 = vsub.s32 0, %v762
    %v764 = vrot.slane %v726, %v763
    %v765 = vlaneseq
    %v766 = vshrl.u32 %v765, 7
    %v767 = vsub.s32 1, %v766
    %v768 = vrot.slane %v726, %v767
    %v769 = vlaneseq
    %v770 = vshrl.u32 %v769, 7
    %v771 = vsub.s32 2, %v770
    %v772 = vrot.slane %v726, %v771
    %v773 = vlaneseq
    %v774 = vshrl.u32 %v773, 7
    %v775 = vsub.s32 3, %v774
    %v776 = vrot.slane %v726, %v775
    %v777 = vlaneseq
    %v778 = vshrl.u32 %v777, 7
    %v779 = vsub.s32 4, %v778
    %v780 = vrot.slane %v726, %v779
    %v781 = vlaneseq
    %v782 = vshrl.u32 %v781, 7
    %v783 = vsub.s32 5, %v782
    %v784 = vrot.slane %v726, %v783
    %v785 = vlaneseq
    %v786 = vshrl.u32 %v785, 7
    %v787 = vsub.s32 6, %v786
    %v788 = vrot.slane %v726, %v787
    %v789 = vlaneseq
    %v790 = vshrl.u32 %v789, 7
    %v791 = vsub.s32 7, %v790
    %v792 = vrot.slane %v726, %v791
    %v809 = vsub.f32 %v599, %v732
    %v810 = vsub.f32 %v600, %v736
    %v811 = vsub.f32 %v601, %v740
    %v812 = vsub.f32 %v602, %v744
    %v813 = vsub.f32 %v603, %v748
    %v814 = vsub.f32 %v604, %v752
    %v815 = vsub.f32 %v605, %v756
    %v816 = vsub.f32 %v606, %v760
    %v817 = vsub.f32 %v607, %v764
    %v818 = vsub.f32 %v608, %v768
    %v819 = vsub.f32 %v609, %v772
    %v820 = vsub.f32 %v610, %v776
    %v821 = vsub.f32 %v611, %v780
    %v822 = vsub.f32 %v612, %v784
    %v823 = vsub.f32 %v613, %v788
    %v824 = vsub.f32 %v614, %v792
    %v825 = vmul.f32 %v809, 1.442695
    %v826 = vpow.pop %v825
    %v827 = vmul.f32 %v810, 1.442695
    %v828 = vpow.pop %v827
    %v829 = vmul.f32 %v811, 1.442695
    %v830 = vpow.pop %v829
    %v831 = vmul.f32 %v812, 1.442695
    %v832 = vpow.pop %v831
    %v833 = vmul.f32 %v813, 1.442695
    %v834 = vpow.pop %v833
    %v835 = vmul.f32 %v814, 1.442695
    %v836 = vpow.pop %v835
    %v837 = vmul.f32 %v815, 1.442695
    %v838 = vpow.pop %v837
    %v839 = vmul.f32 %v816, 1.442695
    %v840 = vpow.pop %v839
    %v841 = vmul.f32 %v817, 1.442695
    %v842 = vpow.pop %v841
    %v843 = vmul.f32 %v818, 1.442695
    %v844 = vpow.pop %v843
    %v845 = vmul.f32 %v819, 1.442695
    %v846 = vpow.pop %v845
    %v847 = vmul.f32 %v820, 1.442695
    %v848 = vpow.pop %v847
    %v849 = vmul.f32 %v821, 1.442695
    %v850 = vpow.pop %v849
    %v851 = vmul.f32 %v822, 1.442695
    %v852 = vpow.pop %v851
    %v853 = vmul.f32 %v823, 1.442695
    %v854 = vpow.pop %v853
    %v855 = vmul.f32 %v824, 1.442695
    %v856 = vpow.pop %v855
    %873 = vset.pattern.permute.xlu0 0
    %874 = vperm.xlu0 %873, %v826
    %v875 = vpop.permute.xlu0 %874
    %876 = vset.pattern.permute.xlu0 0
    %877 = vperm.xlu0 %876, %v828
    %v878 = vpop.permute.xlu0 %877
    %879 = vset.pattern.permute.xlu0 0
    %880 = vperm.xlu0 %879, %v830
    %v881 = vpop.permute.xlu0 %880
    %882 = vset.pattern.permute.xlu0 0
    %883 = vperm.xlu0 %882, %v832
    %v884 = vpop.permute.xlu0 %883
    %885 = vset.pattern.permute.xlu0 0
    %886 = vperm.xlu0 %885, %v834
    %v887 = vpop.permute.xlu0 %886
    %888 = vset.pattern.permute.xlu0 0
    %889 = vperm.xlu0 %888, %v836
    %v890 = vpop.permute.xlu0 %889
    %891 = vset.pattern.permute.xlu0 0
    %892 = vperm.xlu0 %891, %v838
    %v893 = vpop.permute.xlu0 %892
    %894 = vset.pattern.permute.xlu0 0
    %895 = vperm.xlu0 %894, %v840
    %v896 = vpop.permute.xlu0 %895
    %897 = vset.pattern.permute.xlu0 0
    %898 = vperm.xlu0 %897, %v842
    %v899 = vpop.permute.xlu0 %898
    %900 = vset.pattern.permute.xlu0 0
    %901 = vperm.xlu0 %900, %v844
    %v902 = vpop.permute.xlu0 %901
    %903 = vset.pattern.permute.xlu0 0
    %904 = vperm.xlu0 %903, %v846
    %v905 = vpop.permute.xlu0 %904
    %906 = vset.pattern.permute.xlu0 0
    %907 = vperm.xlu0 %906, %v848
    %v908 = vpop.permute.xlu0 %907
    %909 = vset.pattern.permute.xlu0 0
    %910 = vperm.xlu0 %909, %v850
    %v911 = vpop.permute.xlu0 %910
    %912 = vset.pattern.permute.xlu0 0
    %913 = vperm.xlu0 %912, %v852
    %v914 = vpop.permute.xlu0 %913
    %915 = vset.pattern.permute.xlu0 0
    %916 = vperm.xlu0 %915, %v854
    %v917 = vpop.permute.xlu0 %916
    %918 = vset.pattern.permute.xlu0 0
    %919 = vperm.xlu0 %918, %v856
    %v920 = vpop.permute.xlu0 %919
    %v921 = vlaneseq
    %v922 = vshrl.u32 %v921, 7
    %v923 = vsub.s32 %v632, %v922
    %v924 = vrot.slane %v875, %v923
    %v925 = vlaneseq
    %v926 = vshrl.u32 %v925, 7
    %v927 = vsub.s32 %v632, %v926
    %v928 = vrot.slane %v878, %v927
    %v929 = vlaneseq
    %v930 = vshrl.u32 %v929, 7
    %v931 = vsub.s32 %v632, %v930
    %v932 = vrot.slane %v881, %v931
    %v933 = vlaneseq
    %v934 = vshrl.u32 %v933, 7
    %v935 = vsub.s32 %v632, %v934
    %v936 = vrot.slane %v884, %v935
    %v937 = vlaneseq
    %v938 = vshrl.u32 %v937, 7
    %v939 = vsub.s32 %v632, %v938
    %v940 = vrot.slane %v887, %v939
    %v941 = vlaneseq
    %v942 = vshrl.u32 %v941, 7
    %v943 = vsub.s32 %v632, %v942
    %v944 = vrot.slane %v890, %v943
    %v945 = vlaneseq
    %v946 = vshrl.u32 %v945, 7
    %v947 = vsub.s32 %v632, %v946
    %v948 = vrot.slane %v893, %v947
    %v949 = vlaneseq
    %v950 = vshrl.u32 %v949, 7
    %v951 = vsub.s32 %v632, %v950
    %v952 = vrot.slane %v896, %v951
    %v953 = vlaneseq
    %v954 = vshrl.u32 %v953, 7
    %v955 = vsub.s32 %v632, %v954
    %v956 = vrot.slane %v899, %v955
    %v957 = vlaneseq
    %v958 = vshrl.u32 %v957, 7
    %v959 = vsub.s32 %v632, %v958
    %v960 = vrot.slane %v902, %v959
    %v961 = vlaneseq
    %v962 = vshrl.u32 %v961, 7
    %v963 = vsub.s32 %v632, %v962
    %v964 = vrot.slane %v905, %v963
    %v965 = vlaneseq
    %v966 = vshrl.u32 %v965, 7
    %v967 = vsub.s32 %v632, %v966
    %v968 = vrot.slane %v908, %v967
    %v969 = vlaneseq
    %v970 = vshrl.u32 %v969, 7
    %v971 = vsub.s32 %v632, %v970
    %v972 = vrot.slane %v911, %v971
    %v973 = vlaneseq
    %v974 = vshrl.u32 %v973, 7
    %v975 = vsub.s32 %v632, %v974
    %v976 = vrot.slane %v914, %v975
    %v977 = vlaneseq
    %v978 = vshrl.u32 %v977, 7
    %v979 = vsub.s32 %v632, %v978
    %v980 = vrot.slane %v917, %v979
    %v981 = vlaneseq
    %v982 = vshrl.u32 %v981, 7
    %v983 = vsub.s32 %v632, %v982
    %v984 = vrot.slane %v920, %v983
    %v985 = vsel %vm697, %v928, %v924
    %v986 = vsel %vm699, %v932, %v985
    %v987 = vsel %vm701, %v936, %v986
    %v988 = vsel %vm703, %v940, %v987
    %v989 = vsel %vm705, %v944, %v988
    %v990 = vsel %vm707, %v948, %v989
    %v991 = vsel %vm709, %v952, %v990
    %v992 = vsel %vm697, %v960, %v956
    %v993 = vsel %vm699, %v964, %v992
    %v994 = vsel %vm701, %v968, %v993
    %v995 = vsel %vm703, %v972, %v994
    %v996 = vsel %vm705, %v976, %v995
    %v997 = vsel %vm707, %v980, %v996
    %v998 = vsel %vm709, %v984, %v997
    %v1001 = vsel %vm720, %v991, 0.0
    %1002 = vadd.xlane.f32.xlu0 %v1001
    %v1003 = vpop.xlane.xlu0 %1002
    %v1004 = vsel %vm720, %v998, 0.0
    %1005 = vadd.xlane.f32.xlu0 %v1004
    %v1006 = vpop.xlane.xlu0 %1005
    %v1009 = vlaneseq
    %v1010 = vshrl.u32 %v1009, 7
    %v1011 = vsub.s32 0, %v1010
    %v1012 = vrot.slane %v1003, %v1011
    %v1013 = vlaneseq
    %v1014 = vshrl.u32 %v1013, 7
    %v1015 = vsub.s32 1, %v1014
    %v1016 = vrot.slane %v1003, %v1015
    %v1017 = vlaneseq
    %v1018 = vshrl.u32 %v1017, 7
    %v1019 = vsub.s32 2, %v1018
    %v1020 = vrot.slane %v1003, %v1019
    %v1021 = vlaneseq
    %v1022 = vshrl.u32 %v1021, 7
    %v1023 = vsub.s32 3, %v1022
    %v1024 = vrot.slane %v1003, %v1023
    %v1025 = vlaneseq
    %v1026 = vshrl.u32 %v1025, 7
    %v1027 = vsub.s32 4, %v1026
    %v1028 = vrot.slane %v1003, %v1027
    %v1029 = vlaneseq
    %v1030 = vshrl.u32 %v1029, 7
    %v1031 = vsub.s32 5, %v1030
    %v1032 = vrot.slane %v1003, %v1031
    %v1033 = vlaneseq
    %v1034 = vshrl.u32 %v1033, 7
    %v1035 = vsub.s32 6, %v1034
    %v1036 = vrot.slane %v1003, %v1035
    %v1037 = vlaneseq
    %v1038 = vshrl.u32 %v1037, 7
    %v1039 = vsub.s32 7, %v1038
    %v1040 = vrot.slane %v1003, %v1039
    %v1041 = vlaneseq
    %v1042 = vshrl.u32 %v1041, 7
    %v1043 = vsub.s32 0, %v1042
    %v1044 = vrot.slane %v1006, %v1043
    %v1045 = vlaneseq
    %v1046 = vshrl.u32 %v1045, 7
    %v1047 = vsub.s32 1, %v1046
    %v1048 = vrot.slane %v1006, %v1047
    %v1049 = vlaneseq
    %v1050 = vshrl.u32 %v1049, 7
    %v1051 = vsub.s32 2, %v1050
    %v1052 = vrot.slane %v1006, %v1051
    %v1053 = vlaneseq
    %v1054 = vshrl.u32 %v1053, 7
    %v1055 = vsub.s32 3, %v1054
    %v1056 = vrot.slane %v1006, %v1055
    %v1057 = vlaneseq
    %v1058 = vshrl.u32 %v1057, 7
    %v1059 = vsub.s32 4, %v1058
    %v1060 = vrot.slane %v1006, %v1059
    %v1061 = vlaneseq
    %v1062 = vshrl.u32 %v1061, 7
    %v1063 = vsub.s32 5, %v1062
    %v1064 = vrot.slane %v1006, %v1063
    %v1065 = vlaneseq
    %v1066 = vshrl.u32 %v1065, 7
    %v1067 = vsub.s32 6, %v1066
    %v1068 = vrot.slane %v1006, %v1067
    %v1069 = vlaneseq
    %v1070 = vshrl.u32 %v1069, 7
    %v1071 = vsub.s32 7, %v1070
    %v1072 = vrot.slane %v1006, %v1071
    %v1089 = vrcp.pop %v1012
    %v1090 = vmul.f32 %v826, %v1089
    %v1091 = vrcp.pop %v1016
    %v1092 = vmul.f32 %v828, %v1091
    %v1093 = vrcp.pop %v1020
    %v1094 = vmul.f32 %v830, %v1093
    %v1095 = vrcp.pop %v1024
    %v1096 = vmul.f32 %v832, %v1095
    %v1097 = vrcp.pop %v1028
    %v1098 = vmul.f32 %v834, %v1097
    %v1099 = vrcp.pop %v1032
    %v1100 = vmul.f32 %v836, %v1099
    %v1101 = vrcp.pop %v1036
    %v1102 = vmul.f32 %v838, %v1101
    %v1103 = vrcp.pop %v1040
    %v1104 = vmul.f32 %v840, %v1103
    %v1105 = vrcp.pop %v1044
    %v1106 = vmul.f32 %v842, %v1105
    %v1107 = vrcp.pop %v1048
    %v1108 = vmul.f32 %v844, %v1107
    %v1109 = vrcp.pop %v1052
    %v1110 = vmul.f32 %v846, %v1109
    %v1111 = vrcp.pop %v1056
    %v1112 = vmul.f32 %v848, %v1111
    %v1113 = vrcp.pop %v1060
    %v1114 = vmul.f32 %v850, %v1113
    %v1115 = vrcp.pop %v1064
    %v1116 = vmul.f32 %v852, %v1115
    %v1117 = vrcp.pop %v1068
    %v1118 = vmul.f32 %v854, %v1117
    %v1119 = vrcp.pop %v1072
    %v1120 = vmul.f32 %v856, %v1119
    %1122 = vset.pattern.permute.xlu0 0
    %1123 = vperm.xlu0 %1122, %v1090
    %v1124 = vpop.permute.xlu0 %1123
    %1127 = vset.pattern.permute.xlu0 0
    %1128 = vperm.xlu0 %1127, %v1092
    %v1129 = vpop.permute.xlu0 %1128
    %1132 = vset.pattern.permute.xlu0 0
    %1133 = vperm.xlu0 %1132, %v1094
    %v1134 = vpop.permute.xlu0 %1133
    %1137 = vset.pattern.permute.xlu0 0
    %1138 = vperm.xlu0 %1137, %v1096
    %v1139 = vpop.permute.xlu0 %1138
    %1142 = vset.pattern.permute.xlu0 0
    %1143 = vperm.xlu0 %1142, %v1098
    %v1144 = vpop.permute.xlu0 %1143
    %1147 = vset.pattern.permute.xlu0 0
    %1148 = vperm.xlu0 %1147, %v1100
    %v1149 = vpop.permute.xlu0 %1148
    %1152 = vset.pattern.permute.xlu0 0
    %1153 = vperm.xlu0 %1152, %v1102
    %v1154 = vpop.permute.xlu0 %1153
    %1157 = vset.pattern.permute.xlu0 0
    %1158 = vperm.xlu0 %1157, %v1104
    %v1159 = vpop.permute.xlu0 %1158
    %1162 = vset.pattern.permute.xlu0 0
    %1163 = vperm.xlu0 %1162, %v1106
    %v1164 = vpop.permute.xlu0 %1163
    %1167 = vset.pattern.permute.xlu0 0
    %1168 = vperm.xlu0 %1167, %v1108
    %v1169 = vpop.permute.xlu0 %1168
    %1172 = vset.pattern.permute.xlu0 0
    %1173 = vperm.xlu0 %1172, %v1110
    %v1174 = vpop.permute.xlu0 %1173
    %1177 = vset.pattern.permute.xlu0 0
    %1178 = vperm.xlu0 %1177, %v1112
    %v1179 = vpop.permute.xlu0 %1178
    %1182 = vset.pattern.permute.xlu0 0
    %1183 = vperm.xlu0 %1182, %v1114
    %v1184 = vpop.permute.xlu0 %1183
    %1187 = vset.pattern.permute.xlu0 0
    %1188 = vperm.xlu0 %1187, %v1116
    %v1189 = vpop.permute.xlu0 %1188
    %1192 = vset.pattern.permute.xlu0 0
    %1193 = vperm.xlu0 %1192, %v1118
    %v1194 = vpop.permute.xlu0 %1193
    %1197 = vset.pattern.permute.xlu0 0
    %1198 = vperm.xlu0 %1197, %v1120
    %v1199 = vpop.permute.xlu0 %1198
    %v1201 = vmul.f32 %v1124, %v51
    %v1202 = vmul.f32 %v1129, %v52
    %v1203 = vmul.f32 %v1134, %v53
    %v1204 = vmul.f32 %v1139, %v54
    %v1205 = vmul.f32 %v1144, %v55
    %v1206 = vmul.f32 %v1149, %v56
    %v1207 = vmul.f32 %v1154, %v57
    %v1208 = vmul.f32 %v1159, %v58
    %v1209 = vmul.f32 %v1164, %v59
    %v1210 = vmul.f32 %v1169, %v60
    %v1211 = vmul.f32 %v1174, %v61
    %v1212 = vmul.f32 %v1179, %v62
    %v1213 = vmul.f32 %v1184, %v63
    %v1214 = vmul.f32 %v1189, %v64
    %v1215 = vmul.f32 %v1194, %v65
    %v1216 = vmul.f32 %v1199, %v66
    %v1217 = vsel %vm160, %v1201, 0.0
    %v1218 = vrot.slane %v1217, 4
    %v1219 = vadd.f32 %v1217, %v1218
    %v1220 = vrot.slane %v1219, 2
    %v1221 = vadd.f32 %v1219, %v1220
    %v1222 = vrot.slane %v1221, 1
    %v1223 = vadd.f32 %v1221, %v1222
    %v1224 = vsel %vm160, %v1202, 0.0
    %v1225 = vrot.slane %v1224, 4
    %v1226 = vadd.f32 %v1224, %v1225
    %v1227 = vrot.slane %v1226, 2
    %v1228 = vadd.f32 %v1226, %v1227
    %v1229 = vrot.slane %v1228, 1
    %v1230 = vadd.f32 %v1228, %v1229
    %v1231 = vsel %vm160, %v1203, 0.0
    %v1232 = vrot.slane %v1231, 4
    %v1233 = vadd.f32 %v1231, %v1232
    %v1234 = vrot.slane %v1233, 2
    %v1235 = vadd.f32 %v1233, %v1234
    %v1236 = vrot.slane %v1235, 1
    %v1237 = vadd.f32 %v1235, %v1236
    %v1238 = vsel %vm160, %v1204, 0.0
    %v1239 = vrot.slane %v1238, 4
    %v1240 = vadd.f32 %v1238, %v1239
    %v1241 = vrot.slane %v1240, 2
    %v1242 = vadd.f32 %v1240, %v1241
    %v1243 = vrot.slane %v1242, 1
    %v1244 = vadd.f32 %v1242, %v1243
    %v1245 = vsel %vm160, %v1205, 0.0
    %v1246 = vrot.slane %v1245, 4
    %v1247 = vadd.f32 %v1245, %v1246
    %v1248 = vrot.slane %v1247, 2
    %v1249 = vadd.f32 %v1247, %v1248
    %v1250 = vrot.slane %v1249, 1
    %v1251 = vadd.f32 %v1249, %v1250
    %v1252 = vsel %vm160, %v1206, 0.0
    %v1253 = vrot.slane %v1252, 4
    %v1254 = vadd.f32 %v1252, %v1253
    %v1255 = vrot.slane %v1254, 2
    %v1256 = vadd.f32 %v1254, %v1255
    %v1257 = vrot.slane %v1256, 1
    %v1258 = vadd.f32 %v1256, %v1257
    %v1259 = vsel %vm160, %v1207, 0.0
    %v1260 = vrot.slane %v1259, 4
    %v1261 = vadd.f32 %v1259, %v1260
    %v1262 = vrot.slane %v1261, 2
    %v1263 = vadd.f32 %v1261, %v1262
    %v1264 = vrot.slane %v1263, 1
    %v1265 = vadd.f32 %v1263, %v1264
    %v1266 = vsel %vm160, %v1208, 0.0
    %v1267 = vrot.slane %v1266, 4
    %v1268 = vadd.f32 %v1266, %v1267
    %v1269 = vrot.slane %v1268, 2
    %v1270 = vadd.f32 %v1268, %v1269
    %v1271 = vrot.slane %v1270, 1
    %v1272 = vadd.f32 %v1270, %v1271
    %v1273 = vsel %vm160, %v1209, 0.0
    %v1274 = vrot.slane %v1273, 4
    %v1275 = vadd.f32 %v1273, %v1274
    %v1276 = vrot.slane %v1275, 2
    %v1277 = vadd.f32 %v1275, %v1276
    %v1278 = vrot.slane %v1277, 1
    %v1279 = vadd.f32 %v1277, %v1278
    %v1280 = vsel %vm160, %v1210, 0.0
    %v1281 = vrot.slane %v1280, 4
    %v1282 = vadd.f32 %v1280, %v1281
    %v1283 = vrot.slane %v1282, 2
    %v1284 = vadd.f32 %v1282, %v1283
    %v1285 = vrot.slane %v1284, 1
    %v1286 = vadd.f32 %v1284, %v1285
    %v1287 = vsel %vm160, %v1211, 0.0
    %v1288 = vrot.slane %v1287, 4
    %v1289 = vadd.f32 %v1287, %v1288
    %v1290 = vrot.slane %v1289, 2
    %v1291 = vadd.f32 %v1289, %v1290
    %v1292 = vrot.slane %v1291, 1
    %v1293 = vadd.f32 %v1291, %v1292
    %v1294 = vsel %vm160, %v1212, 0.0
    %v1295 = vrot.slane %v1294, 4
    %v1296 = vadd.f32 %v1294, %v1295
    %v1297 = vrot.slane %v1296, 2
    %v1298 = vadd.f32 %v1296, %v1297
    %v1299 = vrot.slane %v1298, 1
    %v1300 = vadd.f32 %v1298, %v1299
    %v1301 = vsel %vm160, %v1213, 0.0
    %v1302 = vrot.slane %v1301, 4
    %v1303 = vadd.f32 %v1301, %v1302
    %v1304 = vrot.slane %v1303, 2
    %v1305 = vadd.f32 %v1303, %v1304
    %v1306 = vrot.slane %v1305, 1
    %v1307 = vadd.f32 %v1305, %v1306
    %v1308 = vsel %vm160, %v1214, 0.0
    %v1309 = vrot.slane %v1308, 4
    %v1310 = vadd.f32 %v1308, %v1309
    %v1311 = vrot.slane %v1310, 2
    %v1312 = vadd.f32 %v1310, %v1311
    %v1313 = vrot.slane %v1312, 1
    %v1314 = vadd.f32 %v1312, %v1313
    %v1315 = vsel %vm160, %v1215, 0.0
    %v1316 = vrot.slane %v1315, 4
    %v1317 = vadd.f32 %v1315, %v1316
    %v1318 = vrot.slane %v1317, 2
    %v1319 = vadd.f32 %v1317, %v1318
    %v1320 = vrot.slane %v1319, 1
    %v1321 = vadd.f32 %v1319, %v1320
    %v1322 = vsel %vm160, %v1216, 0.0
    %v1323 = vrot.slane %v1322, 4
    %v1324 = vadd.f32 %v1322, %v1323
    %v1325 = vrot.slane %v1324, 2
    %v1326 = vadd.f32 %v1324, %v1325
    %v1327 = vrot.slane %v1326, 1
    %v1328 = vadd.f32 %v1326, %v1327
    %1345 = vrot.lane.b32.xlu0 %v534, 96
    %v1346 = vpop.permute.xlu0 %1345
    %1347 = vrot.lane.b32.xlu0 %v535, 96
    %v1348 = vpop.permute.xlu0 %1347
    %1349 = vrot.lane.b32.xlu0 %v536, 96
    %v1350 = vpop.permute.xlu0 %1349
    %1351 = vrot.lane.b32.xlu0 %v537, 96
    %v1352 = vpop.permute.xlu0 %1351
    %1353 = vrot.lane.b32.xlu0 %v538, 96
    %v1354 = vpop.permute.xlu0 %1353
    %1355 = vrot.lane.b32.xlu0 %v539, 96
    %v1356 = vpop.permute.xlu0 %1355
    %1357 = vrot.lane.b32.xlu0 %v540, 96
    %v1358 = vpop.permute.xlu0 %1357
    %1359 = vrot.lane.b32.xlu0 %v541, 96
    %v1360 = vpop.permute.xlu0 %1359
    %1361 = vrot.lane.b32.xlu0 %v542, 96
    %v1362 = vpop.permute.xlu0 %1361
    %1363 = vrot.lane.b32.xlu0 %v543, 96
    %v1364 = vpop.permute.xlu0 %1363
    %1365 = vrot.lane.b32.xlu0 %v544, 96
    %v1366 = vpop.permute.xlu0 %1365
    %1367 = vrot.lane.b32.xlu0 %v545, 96
    %v1368 = vpop.permute.xlu0 %1367
    %1369 = vrot.lane.b32.xlu0 %v546, 96
    %v1370 = vpop.permute.xlu0 %1369
    %1371 = vrot.lane.b32.xlu0 %v547, 96
    %v1372 = vpop.permute.xlu0 %1371
    %1373 = vrot.lane.b32.xlu0 %v548, 96
    %v1374 = vpop.permute.xlu0 %1373
    %1375 = vrot.lane.b32.xlu0 %v549, 96
    %v1376 = vpop.permute.xlu0 %1375
    %v1393 = vsel %vm550, %v1346, 0.0
    %1394 = vadd.xlane.f32.xlu0 %v1393
    %v1395 = vpop.xlane.xlu0 %1394
    %v1396 = vsel %vm550, %v1348, 0.0
    %1397 = vadd.xlane.f32.xlu0 %v1396
    %v1398 = vpop.xlane.xlu0 %1397
    %v1399 = vsel %vm550, %v1350, 0.0
    %1400 = vadd.xlane.f32.xlu0 %v1399
    %v1401 = vpop.xlane.xlu0 %1400
    %v1402 = vsel %vm550, %v1352, 0.0
    %1403 = vadd.xlane.f32.xlu0 %v1402
    %v1404 = vpop.xlane.xlu0 %1403
    %v1405 = vsel %vm550, %v1354, 0.0
    %1406 = vadd.xlane.f32.xlu0 %v1405
    %v1407 = vpop.xlane.xlu0 %1406
    %v1408 = vsel %vm550, %v1356, 0.0
    %1409 = vadd.xlane.f32.xlu0 %v1408
    %v1410 = vpop.xlane.xlu0 %1409
    %v1411 = vsel %vm550, %v1358, 0.0
    %1412 = vadd.xlane.f32.xlu0 %v1411
    %v1413 = vpop.xlane.xlu0 %1412
    %v1414 = vsel %vm550, %v1360, 0.0
    %1415 = vadd.xlane.f32.xlu0 %v1414
    %v1416 = vpop.xlane.xlu0 %1415
    %v1417 = vsel %vm550, %v1362, 0.0
    %1418 = vadd.xlane.f32.xlu0 %v1417
    %v1419 = vpop.xlane.xlu0 %1418
    %v1420 = vsel %vm550, %v1364, 0.0
    %1421 = vadd.xlane.f32.xlu0 %v1420
    %v1422 = vpop.xlane.xlu0 %1421
    %v1423 = vsel %vm550, %v1366, 0.0
    %1424 = vadd.xlane.f32.xlu0 %v1423
    %v1425 = vpop.xlane.xlu0 %1424
    %v1426 = vsel %vm550, %v1368, 0.0
    %1427 = vadd.xlane.f32.xlu0 %v1426
    %v1428 = vpop.xlane.xlu0 %1427
    %v1429 = vsel %vm550, %v1370, 0.0
    %1430 = vadd.xlane.f32.xlu0 %v1429
    %v1431 = vpop.xlane.xlu0 %1430
    %v1432 = vsel %vm550, %v1372, 0.0
    %1433 = vadd.xlane.f32.xlu0 %v1432
    %v1434 = vpop.xlane.xlu0 %1433
    %v1435 = vsel %vm550, %v1374, 0.0
    %1436 = vadd.xlane.f32.xlu0 %v1435
    %v1437 = vpop.xlane.xlu0 %1436
    %v1438 = vsel %vm550, %v1376, 0.0
    %1439 = vadd.xlane.f32.xlu0 %v1438
    %v1440 = vpop.xlane.xlu0 %1439
    %v1441 = vmul.f32 %v1395, 0.18257418
    %v1442 = vmul.f32 %v1398, 0.18257418
    %v1443 = vmul.f32 %v1401, 0.18257418
    %v1444 = vmul.f32 %v1404, 0.18257418
    %v1445 = vmul.f32 %v1407, 0.18257418
    %v1446 = vmul.f32 %v1410, 0.18257418
    %v1447 = vmul.f32 %v1413, 0.18257418
    %v1448 = vmul.f32 %v1416, 0.18257418
    %v1449 = vmul.f32 %v1419, 0.18257418
    %v1450 = vmul.f32 %v1422, 0.18257418
    %v1451 = vmul.f32 %v1425, 0.18257418
    %v1452 = vmul.f32 %v1428, 0.18257418
    %v1453 = vmul.f32 %v1431, 0.18257418
    %v1454 = vmul.f32 %v1434, 0.18257418
    %v1455 = vmul.f32 %v1437, 0.18257418
    %v1456 = vmul.f32 %v1440, 0.18257418
    %v1473 = vlaneseq
    %v1474 = vshrl.u32 %v1473, 7
    %v1475 = vsub.s32 %v632, %v1474
    %v1476 = vrot.slane %v1441, %v1475
    %v1477 = vlaneseq
    %v1478 = vshrl.u32 %v1477, 7
    %v1479 = vsub.s32 %v632, %v1478
    %v1480 = vrot.slane %v1442, %v1479
    %v1481 = vlaneseq
    %v1482 = vshrl.u32 %v1481, 7
    %v1483 = vsub.s32 %v632, %v1482
    %v1484 = vrot.slane %v1443, %v1483
    %v1485 = vlaneseq
    %v1486 = vshrl.u32 %v1485, 7
    %v1487 = vsub.s32 %v632, %v1486
    %v1488 = vrot.slane %v1444, %v1487
    %v1489 = vlaneseq
    %v1490 = vshrl.u32 %v1489, 7
    %v1491 = vsub.s32 %v632, %v1490
    %v1492 = vrot.slane %v1445, %v1491
    %v1493 = vlaneseq
    %v1494 = vshrl.u32 %v1493, 7
    %v1495 = vsub.s32 %v632, %v1494
    %v1496 = vrot.slane %v1446, %v1495
    %v1497 = vlaneseq
    %v1498 = vshrl.u32 %v1497, 7
    %v1499 = vsub.s32 %v632, %v1498
    %v1500 = vrot.slane %v1447, %v1499
    %v1501 = vlaneseq
    %v1502 = vshrl.u32 %v1501, 7
    %v1503 = vsub.s32 %v632, %v1502
    %v1504 = vrot.slane %v1448, %v1503
    %v1505 = vlaneseq
    %v1506 = vshrl.u32 %v1505, 7
    %v1507 = vsub.s32 %v632, %v1506
    %v1508 = vrot.slane %v1449, %v1507
    %v1509 = vlaneseq
    %v1510 = vshrl.u32 %v1509, 7
    %v1511 = vsub.s32 %v632, %v1510
    %v1512 = vrot.slane %v1450, %v1511
    %v1513 = vlaneseq
    %v1514 = vshrl.u32 %v1513, 7
    %v1515 = vsub.s32 %v632, %v1514
    %v1516 = vrot.slane %v1451, %v1515
    %v1517 = vlaneseq
    %v1518 = vshrl.u32 %v1517, 7
    %v1519 = vsub.s32 %v632, %v1518
    %v1520 = vrot.slane %v1452, %v1519
    %v1521 = vlaneseq
    %v1522 = vshrl.u32 %v1521, 7
    %v1523 = vsub.s32 %v632, %v1522
    %v1524 = vrot.slane %v1453, %v1523
    %v1525 = vlaneseq
    %v1526 = vshrl.u32 %v1525, 7
    %v1527 = vsub.s32 %v632, %v1526
    %v1528 = vrot.slane %v1454, %v1527
    %v1529 = vlaneseq
    %v1530 = vshrl.u32 %v1529, 7
    %v1531 = vsub.s32 %v632, %v1530
    %v1532 = vrot.slane %v1455, %v1531
    %v1533 = vlaneseq
    %v1534 = vshrl.u32 %v1533, 7
    %v1535 = vsub.s32 %v632, %v1534
    %v1536 = vrot.slane %v1456, %v1535
    %v1537 = vsel %vm697, %v1480, %v1476
    %v1538 = vsel %vm699, %v1484, %v1537
    %v1539 = vsel %vm701, %v1488, %v1538
    %v1540 = vsel %vm703, %v1492, %v1539
    %v1541 = vsel %vm705, %v1496, %v1540
    %v1542 = vsel %vm707, %v1500, %v1541
    %v1543 = vsel %vm709, %v1504, %v1542
    %v1544 = vsel %vm697, %v1512, %v1508
    %v1545 = vsel %vm699, %v1516, %v1544
    %v1546 = vsel %vm701, %v1520, %v1545
    %v1547 = vsel %vm703, %v1524, %v1546
    %v1548 = vsel %vm705, %v1528, %v1547
    %v1549 = vsel %vm707, %v1532, %v1548
    %v1550 = vsel %vm709, %v1536, %v1549
    %v1553 = vsel %vm720, %v1543, -inf
    %1554 = vmax.xlane.f32.xlu0 %v1553
    %v1555 = vpop.xlane.xlu0 %1554
    %v1556 = vsel %vm720, %v1550, -inf
    %1557 = vmax.xlane.f32.xlu0 %v1556
    %v1558 = vpop.xlane.xlu0 %1557
    %v1561 = vlaneseq
    %v1562 = vshrl.u32 %v1561, 7
    %v1563 = vsub.s32 0, %v1562
    %v1564 = vrot.slane %v1555, %v1563
    %v1565 = vlaneseq
    %v1566 = vshrl.u32 %v1565, 7
    %v1567 = vsub.s32 1, %v1566
    %v1568 = vrot.slane %v1555, %v1567
    %v1569 = vlaneseq
    %v1570 = vshrl.u32 %v1569, 7
    %v1571 = vsub.s32 2, %v1570
    %v1572 = vrot.slane %v1555, %v1571
    %v1573 = vlaneseq
    %v1574 = vshrl.u32 %v1573, 7
    %v1575 = vsub.s32 3, %v1574
    %v1576 = vrot.slane %v1555, %v1575
    %v1577 = vlaneseq
    %v1578 = vshrl.u32 %v1577, 7
    %v1579 = vsub.s32 4, %v1578
    %v1580 = vrot.slane %v1555, %v1579
    %v1581 = vlaneseq
    %v1582 = vshrl.u32 %v1581, 7
    %v1583 = vsub.s32 5, %v1582
    %v1584 = vrot.slane %v1555, %v1583
    %v1585 = vlaneseq
    %v1586 = vshrl.u32 %v1585, 7
    %v1587 = vsub.s32 6, %v1586
    %v1588 = vrot.slane %v1555, %v1587
    %v1589 = vlaneseq
    %v1590 = vshrl.u32 %v1589, 7
    %v1591 = vsub.s32 7, %v1590
    %v1592 = vrot.slane %v1555, %v1591
    %v1593 = vlaneseq
    %v1594 = vshrl.u32 %v1593, 7
    %v1595 = vsub.s32 0, %v1594
    %v1596 = vrot.slane %v1558, %v1595
    %v1597 = vlaneseq
    %v1598 = vshrl.u32 %v1597, 7
    %v1599 = vsub.s32 1, %v1598
    %v1600 = vrot.slane %v1558, %v1599
    %v1601 = vlaneseq
    %v1602 = vshrl.u32 %v1601, 7
    %v1603 = vsub.s32 2, %v1602
    %v1604 = vrot.slane %v1558, %v1603
    %v1605 = vlaneseq
    %v1606 = vshrl.u32 %v1605, 7
    %v1607 = vsub.s32 3, %v1606
    %v1608 = vrot.slane %v1558, %v1607
    %v1609 = vlaneseq
    %v1610 = vshrl.u32 %v1609, 7
    %v1611 = vsub.s32 4, %v1610
    %v1612 = vrot.slane %v1558, %v1611
    %v1613 = vlaneseq
    %v1614 = vshrl.u32 %v1613, 7
    %v1615 = vsub.s32 5, %v1614
    %v1616 = vrot.slane %v1558, %v1615
    %v1617 = vlaneseq
    %v1618 = vshrl.u32 %v1617, 7
    %v1619 = vsub.s32 6, %v1618
    %v1620 = vrot.slane %v1558, %v1619
    %v1621 = vlaneseq
    %v1622 = vshrl.u32 %v1621, 7
    %v1623 = vsub.s32 7, %v1622
    %v1624 = vrot.slane %v1558, %v1623
    %v1641 = vsub.f32 %v1441, %v1564
    %v1642 = vsub.f32 %v1442, %v1568
    %v1643 = vsub.f32 %v1443, %v1572
    %v1644 = vsub.f32 %v1444, %v1576
    %v1645 = vsub.f32 %v1445, %v1580
    %v1646 = vsub.f32 %v1446, %v1584
    %v1647 = vsub.f32 %v1447, %v1588
    %v1648 = vsub.f32 %v1448, %v1592
    %v1649 = vsub.f32 %v1449, %v1596
    %v1650 = vsub.f32 %v1450, %v1600
    %v1651 = vsub.f32 %v1451, %v1604
    %v1652 = vsub.f32 %v1452, %v1608
    %v1653 = vsub.f32 %v1453, %v1612
    %v1654 = vsub.f32 %v1454, %v1616
    %v1655 = vsub.f32 %v1455, %v1620
    %v1656 = vsub.f32 %v1456, %v1624
    %v1657 = vmul.f32 %v1641, 1.442695
    %v1658 = vpow.pop %v1657
    %v1659 = vmul.f32 %v1642, 1.442695
    %v1660 = vpow.pop %v1659
    %v1661 = vmul.f32 %v1643, 1.442695
    %v1662 = vpow.pop %v1661
    %v1663 = vmul.f32 %v1644, 1.442695
    %v1664 = vpow.pop %v1663
    %v1665 = vmul.f32 %v1645, 1.442695
    %v1666 = vpow.pop %v1665
    %v1667 = vmul.f32 %v1646, 1.442695
    %v1668 = vpow.pop %v1667
    %v1669 = vmul.f32 %v1647, 1.442695
    %v1670 = vpow.pop %v1669
    %v1671 = vmul.f32 %v1648, 1.442695
    %v1672 = vpow.pop %v1671
    %v1673 = vmul.f32 %v1649, 1.442695
    %v1674 = vpow.pop %v1673
    %v1675 = vmul.f32 %v1650, 1.442695
    %v1676 = vpow.pop %v1675
    %v1677 = vmul.f32 %v1651, 1.442695
    %v1678 = vpow.pop %v1677
    %v1679 = vmul.f32 %v1652, 1.442695
    %v1680 = vpow.pop %v1679
    %v1681 = vmul.f32 %v1653, 1.442695
    %v1682 = vpow.pop %v1681
    %v1683 = vmul.f32 %v1654, 1.442695
    %v1684 = vpow.pop %v1683
    %v1685 = vmul.f32 %v1655, 1.442695
    %v1686 = vpow.pop %v1685
    %v1687 = vmul.f32 %v1656, 1.442695
    %v1688 = vpow.pop %v1687
    %1705 = vset.pattern.permute.xlu0 0
    %1706 = vperm.xlu0 %1705, %v1658
    %v1707 = vpop.permute.xlu0 %1706
    %1708 = vset.pattern.permute.xlu0 0
    %1709 = vperm.xlu0 %1708, %v1660
    %v1710 = vpop.permute.xlu0 %1709
    %1711 = vset.pattern.permute.xlu0 0
    %1712 = vperm.xlu0 %1711, %v1662
    %v1713 = vpop.permute.xlu0 %1712
    %1714 = vset.pattern.permute.xlu0 0
    %1715 = vperm.xlu0 %1714, %v1664
    %v1716 = vpop.permute.xlu0 %1715
    %1717 = vset.pattern.permute.xlu0 0
    %1718 = vperm.xlu0 %1717, %v1666
    %v1719 = vpop.permute.xlu0 %1718
    %1720 = vset.pattern.permute.xlu0 0
    %1721 = vperm.xlu0 %1720, %v1668
    %v1722 = vpop.permute.xlu0 %1721
    %1723 = vset.pattern.permute.xlu0 0
    %1724 = vperm.xlu0 %1723, %v1670
    %v1725 = vpop.permute.xlu0 %1724
    %1726 = vset.pattern.permute.xlu0 0
    %1727 = vperm.xlu0 %1726, %v1672
    %v1728 = vpop.permute.xlu0 %1727
    %1729 = vset.pattern.permute.xlu0 0
    %1730 = vperm.xlu0 %1729, %v1674
    %v1731 = vpop.permute.xlu0 %1730
    %1732 = vset.pattern.permute.xlu0 0
    %1733 = vperm.xlu0 %1732, %v1676
    %v1734 = vpop.permute.xlu0 %1733
    %1735 = vset.pattern.permute.xlu0 0
    %1736 = vperm.xlu0 %1735, %v1678
    %v1737 = vpop.permute.xlu0 %1736
    %1738 = vset.pattern.permute.xlu0 0
    %1739 = vperm.xlu0 %1738, %v1680
    %v1740 = vpop.permute.xlu0 %1739
    %1741 = vset.pattern.permute.xlu0 0
    %1742 = vperm.xlu0 %1741, %v1682
    %v1743 = vpop.permute.xlu0 %1742
    %1744 = vset.pattern.permute.xlu0 0
    %1745 = vperm.xlu0 %1744, %v1684
    %v1746 = vpop.permute.xlu0 %1745
    %1747 = vset.pattern.permute.xlu0 0
    %1748 = vperm.xlu0 %1747, %v1686
    %v1749 = vpop.permute.xlu0 %1748
    %1750 = vset.pattern.permute.xlu0 0
    %1751 = vperm.xlu0 %1750, %v1688
    %v1752 = vpop.permute.xlu0 %1751
    %v1753 = vlaneseq
    %v1754 = vshrl.u32 %v1753, 7
    %v1755 = vsub.s32 %v632, %v1754
    %v1756 = vrot.slane %v1707, %v1755
    %v1757 = vlaneseq
    %v1758 = vshrl.u32 %v1757, 7
    %v1759 = vsub.s32 %v632, %v1758
    %v1760 = vrot.slane %v1710, %v1759
    %v1761 = vlaneseq
    %v1762 = vshrl.u32 %v1761, 7
    %v1763 = vsub.s32 %v632, %v1762
    %v1764 = vrot.slane %v1713, %v1763
    %v1765 = vlaneseq
    %v1766 = vshrl.u32 %v1765, 7
    %v1767 = vsub.s32 %v632, %v1766
    %v1768 = vrot.slane %v1716, %v1767
    %v1769 = vlaneseq
    %v1770 = vshrl.u32 %v1769, 7
    %v1771 = vsub.s32 %v632, %v1770
    %v1772 = vrot.slane %v1719, %v1771
    %v1773 = vlaneseq
    %v1774 = vshrl.u32 %v1773, 7
    %v1775 = vsub.s32 %v632, %v1774
    %v1776 = vrot.slane %v1722, %v1775
    %v1777 = vlaneseq
    %v1778 = vshrl.u32 %v1777, 7
    %v1779 = vsub.s32 %v632, %v1778
    %v1780 = vrot.slane %v1725, %v1779
    %v1781 = vlaneseq
    %v1782 = vshrl.u32 %v1781, 7
    %v1783 = vsub.s32 %v632, %v1782
    %v1784 = vrot.slane %v1728, %v1783
    %v1785 = vlaneseq
    %v1786 = vshrl.u32 %v1785, 7
    %v1787 = vsub.s32 %v632, %v1786
    %v1788 = vrot.slane %v1731, %v1787
    %v1789 = vlaneseq
    %v1790 = vshrl.u32 %v1789, 7
    %v1791 = vsub.s32 %v632, %v1790
    %v1792 = vrot.slane %v1734, %v1791
    %v1793 = vlaneseq
    %v1794 = vshrl.u32 %v1793, 7
    %v1795 = vsub.s32 %v632, %v1794
    %v1796 = vrot.slane %v1737, %v1795
    %v1797 = vlaneseq
    %v1798 = vshrl.u32 %v1797, 7
    %v1799 = vsub.s32 %v632, %v1798
    %v1800 = vrot.slane %v1740, %v1799
    %v1801 = vlaneseq
    %v1802 = vshrl.u32 %v1801, 7
    %v1803 = vsub.s32 %v632, %v1802
    %v1804 = vrot.slane %v1743, %v1803
    %v1805 = vlaneseq
    %v1806 = vshrl.u32 %v1805, 7
    %v1807 = vsub.s32 %v632, %v1806
    %v1808 = vrot.slane %v1746, %v1807
    %v1809 = vlaneseq
    %v1810 = vshrl.u32 %v1809, 7
    %v1811 = vsub.s32 %v632, %v1810
    %v1812 = vrot.slane %v1749, %v1811
    %v1813 = vlaneseq
    %v1814 = vshrl.u32 %v1813, 7
    %v1815 = vsub.s32 %v632, %v1814
    %v1816 = vrot.slane %v1752, %v1815
    %v1817 = vsel %vm697, %v1760, %v1756
    %v1818 = vsel %vm699, %v1764, %v1817
    %v1819 = vsel %vm701, %v1768, %v1818
    %v1820 = vsel %vm703, %v1772, %v1819
    %v1821 = vsel %vm705, %v1776, %v1820
    %v1822 = vsel %vm707, %v1780, %v1821
    %v1823 = vsel %vm709, %v1784, %v1822
    %v1824 = vsel %vm697, %v1792, %v1788
    %v1825 = vsel %vm699, %v1796, %v1824
    %v1826 = vsel %vm701, %v1800, %v1825
    %v1827 = vsel %vm703, %v1804, %v1826
    %v1828 = vsel %vm705, %v1808, %v1827
    %v1829 = vsel %vm707, %v1812, %v1828
    %v1830 = vsel %vm709, %v1816, %v1829
    %v1833 = vsel %vm720, %v1823, 0.0
    %1834 = vadd.xlane.f32.xlu0 %v1833
    %v1835 = vpop.xlane.xlu0 %1834
    %v1836 = vsel %vm720, %v1830, 0.0
    %1837 = vadd.xlane.f32.xlu0 %v1836
    %v1838 = vpop.xlane.xlu0 %1837
    %v1841 = vlaneseq
    %v1842 = vshrl.u32 %v1841, 7
    %v1843 = vsub.s32 0, %v1842
    %v1844 = vrot.slane %v1835, %v1843
    %v1845 = vlaneseq
    %v1846 = vshrl.u32 %v1845, 7
    %v1847 = vsub.s32 1, %v1846
    %v1848 = vrot.slane %v1835, %v1847
    %v1849 = vlaneseq
    %v1850 = vshrl.u32 %v1849, 7
    %v1851 = vsub.s32 2, %v1850
    %v1852 = vrot.slane %v1835, %v1851
    %v1853 = vlaneseq
    %v1854 = vshrl.u32 %v1853, 7
    %v1855 = vsub.s32 3, %v1854
    %v1856 = vrot.slane %v1835, %v1855
    %v1857 = vlaneseq
    %v1858 = vshrl.u32 %v1857, 7
    %v1859 = vsub.s32 4, %v1858
    %v1860 = vrot.slane %v1835, %v1859
    %v1861 = vlaneseq
    %v1862 = vshrl.u32 %v1861, 7
    %v1863 = vsub.s32 5, %v1862
    %v1864 = vrot.slane %v1835, %v1863
    %v1865 = vlaneseq
    %v1866 = vshrl.u32 %v1865, 7
    %v1867 = vsub.s32 6, %v1866
    %v1868 = vrot.slane %v1835, %v1867
    %v1869 = vlaneseq
    %v1870 = vshrl.u32 %v1869, 7
    %v1871 = vsub.s32 7, %v1870
    %v1872 = vrot.slane %v1835, %v1871
    %v1873 = vlaneseq
    %v1874 = vshrl.u32 %v1873, 7
    %v1875 = vsub.s32 0, %v1874
    %v1876 = vrot.slane %v1838, %v1875
    %v1877 = vlaneseq
    %v1878 = vshrl.u32 %v1877, 7
    %v1879 = vsub.s32 1, %v1878
    %v1880 = vrot.slane %v1838, %v1879
    %v1881 = vlaneseq
    %v1882 = vshrl.u32 %v1881, 7
    %v1883 = vsub.s32 2, %v1882
    %v1884 = vrot.slane %v1838, %v1883
    %v1885 = vlaneseq
    %v1886 = vshrl.u32 %v1885, 7
    %v1887 = vsub.s32 3, %v1886
    %v1888 = vrot.slane %v1838, %v1887
    %v1889 = vlaneseq
    %v1890 = vshrl.u32 %v1889, 7
    %v1891 = vsub.s32 4, %v1890
    %v1892 = vrot.slane %v1838, %v1891
    %v1893 = vlaneseq
    %v1894 = vshrl.u32 %v1893, 7
    %v1895 = vsub.s32 5, %v1894
    %v1896 = vrot.slane %v1838, %v1895
    %v1897 = vlaneseq
    %v1898 = vshrl.u32 %v1897, 7
    %v1899 = vsub.s32 6, %v1898
    %v1900 = vrot.slane %v1838, %v1899
    %v1901 = vlaneseq
    %v1902 = vshrl.u32 %v1901, 7
    %v1903 = vsub.s32 7, %v1902
    %v1904 = vrot.slane %v1838, %v1903
    %v1921 = vrcp.pop %v1844
    %v1922 = vmul.f32 %v1658, %v1921
    %v1923 = vrcp.pop %v1848
    %v1924 = vmul.f32 %v1660, %v1923
    %v1925 = vrcp.pop %v1852
    %v1926 = vmul.f32 %v1662, %v1925
    %v1927 = vrcp.pop %v1856
    %v1928 = vmul.f32 %v1664, %v1927
    %v1929 = vrcp.pop %v1860
    %v1930 = vmul.f32 %v1666, %v1929
    %v1931 = vrcp.pop %v1864
    %v1932 = vmul.f32 %v1668, %v1931
    %v1933 = vrcp.pop %v1868
    %v1934 = vmul.f32 %v1670, %v1933
    %v1935 = vrcp.pop %v1872
    %v1936 = vmul.f32 %v1672, %v1935
    %v1937 = vrcp.pop %v1876
    %v1938 = vmul.f32 %v1674, %v1937
    %v1939 = vrcp.pop %v1880
    %v1940 = vmul.f32 %v1676, %v1939
    %v1941 = vrcp.pop %v1884
    %v1942 = vmul.f32 %v1678, %v1941
    %v1943 = vrcp.pop %v1888
    %v1944 = vmul.f32 %v1680, %v1943
    %v1945 = vrcp.pop %v1892
    %v1946 = vmul.f32 %v1682, %v1945
    %v1947 = vrcp.pop %v1896
    %v1948 = vmul.f32 %v1684, %v1947
    %v1949 = vrcp.pop %v1900
    %v1950 = vmul.f32 %v1686, %v1949
    %v1951 = vrcp.pop %v1904
    %v1952 = vmul.f32 %v1688, %v1951
    %1954 = vset.pattern.permute.xlu0 0
    %1955 = vperm.xlu0 %1954, %v1922
    %v1956 = vpop.permute.xlu0 %1955
    %1959 = vset.pattern.permute.xlu0 0
    %1960 = vperm.xlu0 %1959, %v1924
    %v1961 = vpop.permute.xlu0 %1960
    %1964 = vset.pattern.permute.xlu0 0
    %1965 = vperm.xlu0 %1964, %v1926
    %v1966 = vpop.permute.xlu0 %1965
    %1969 = vset.pattern.permute.xlu0 0
    %1970 = vperm.xlu0 %1969, %v1928
    %v1971 = vpop.permute.xlu0 %1970
    %1974 = vset.pattern.permute.xlu0 0
    %1975 = vperm.xlu0 %1974, %v1930
    %v1976 = vpop.permute.xlu0 %1975
    %1979 = vset.pattern.permute.xlu0 0
    %1980 = vperm.xlu0 %1979, %v1932
    %v1981 = vpop.permute.xlu0 %1980
    %1984 = vset.pattern.permute.xlu0 0
    %1985 = vperm.xlu0 %1984, %v1934
    %v1986 = vpop.permute.xlu0 %1985
    %1989 = vset.pattern.permute.xlu0 0
    %1990 = vperm.xlu0 %1989, %v1936
    %v1991 = vpop.permute.xlu0 %1990
    %1994 = vset.pattern.permute.xlu0 0
    %1995 = vperm.xlu0 %1994, %v1938
    %v1996 = vpop.permute.xlu0 %1995
    %1999 = vset.pattern.permute.xlu0 0
    %2000 = vperm.xlu0 %1999, %v1940
    %v2001 = vpop.permute.xlu0 %2000
    %2004 = vset.pattern.permute.xlu0 0
    %2005 = vperm.xlu0 %2004, %v1942
    %v2006 = vpop.permute.xlu0 %2005
    %2009 = vset.pattern.permute.xlu0 0
    %2010 = vperm.xlu0 %2009, %v1944
    %v2011 = vpop.permute.xlu0 %2010
    %2014 = vset.pattern.permute.xlu0 0
    %2015 = vperm.xlu0 %2014, %v1946
    %v2016 = vpop.permute.xlu0 %2015
    %2019 = vset.pattern.permute.xlu0 0
    %2020 = vperm.xlu0 %2019, %v1948
    %v2021 = vpop.permute.xlu0 %2020
    %2024 = vset.pattern.permute.xlu0 0
    %2025 = vperm.xlu0 %2024, %v1950
    %v2026 = vpop.permute.xlu0 %2025
    %2029 = vset.pattern.permute.xlu0 0
    %2030 = vperm.xlu0 %2029, %v1952
    %v2031 = vpop.permute.xlu0 %2030
    %v2033 = vmul.f32 %v1956, %v51
    %v2034 = vmul.f32 %v1961, %v52
    %v2035 = vmul.f32 %v1966, %v53
    %v2036 = vmul.f32 %v1971, %v54
    %v2037 = vmul.f32 %v1976, %v55
    %v2038 = vmul.f32 %v1981, %v56
    %v2039 = vmul.f32 %v1986, %v57
    %v2040 = vmul.f32 %v1991, %v58
    %v2041 = vmul.f32 %v1996, %v59
    %v2042 = vmul.f32 %v2001, %v60
    %v2043 = vmul.f32 %v2006, %v61
    %v2044 = vmul.f32 %v2011, %v62
    %v2045 = vmul.f32 %v2016, %v63
    %v2046 = vmul.f32 %v2021, %v64
    %v2047 = vmul.f32 %v2026, %v65
    %v2048 = vmul.f32 %v2031, %v66
    %v2049 = vsel %vm160, %v2033, 0.0
    %v2050 = vrot.slane %v2049, 4
    %v2051 = vadd.f32 %v2049, %v2050
    %v2052 = vrot.slane %v2051, 2
    %v2053 = vadd.f32 %v2051, %v2052
    %v2054 = vrot.slane %v2053, 1
    %v2055 = vadd.f32 %v2053, %v2054
    %v2056 = vsel %vm160, %v2034, 0.0
    %v2057 = vrot.slane %v2056, 4
    %v2058 = vadd.f32 %v2056, %v2057
    %v2059 = vrot.slane %v2058, 2
    %v2060 = vadd.f32 %v2058, %v2059
    %v2061 = vrot.slane %v2060, 1
    %v2062 = vadd.f32 %v2060, %v2061
    %v2063 = vsel %vm160, %v2035, 0.0
    %v2064 = vrot.slane %v2063, 4
    %v2065 = vadd.f32 %v2063, %v2064
    %v2066 = vrot.slane %v2065, 2
    %v2067 = vadd.f32 %v2065, %v2066
    %v2068 = vrot.slane %v2067, 1
    %v2069 = vadd.f32 %v2067, %v2068
    %v2070 = vsel %vm160, %v2036, 0.0
    %v2071 = vrot.slane %v2070, 4
    %v2072 = vadd.f32 %v2070, %v2071
    %v2073 = vrot.slane %v2072, 2
    %v2074 = vadd.f32 %v2072, %v2073
    %v2075 = vrot.slane %v2074, 1
    %v2076 = vadd.f32 %v2074, %v2075
    %v2077 = vsel %vm160, %v2037, 0.0
    %v2078 = vrot.slane %v2077, 4
    %v2079 = vadd.f32 %v2077, %v2078
    %v2080 = vrot.slane %v2079, 2
    %v2081 = vadd.f32 %v2079, %v2080
    %v2082 = vrot.slane %v2081, 1
    %v2083 = vadd.f32 %v2081, %v2082
    %v2084 = vsel %vm160, %v2038, 0.0
    %v2085 = vrot.slane %v2084, 4
    %v2086 = vadd.f32 %v2084, %v2085
    %v2087 = vrot.slane %v2086, 2
    %v2088 = vadd.f32 %v2086, %v2087
    %v2089 = vrot.slane %v2088, 1
    %v2090 = vadd.f32 %v2088, %v2089
    %v2091 = vsel %vm160, %v2039, 0.0
    %v2092 = vrot.slane %v2091, 4
    %v2093 = vadd.f32 %v2091, %v2092
    %v2094 = vrot.slane %v2093, 2
    %v2095 = vadd.f32 %v2093, %v2094
    %v2096 = vrot.slane %v2095, 1
    %v2097 = vadd.f32 %v2095, %v2096
    %v2098 = vsel %vm160, %v2040, 0.0
    %v2099 = vrot.slane %v2098, 4
    %v2100 = vadd.f32 %v2098, %v2099
    %v2101 = vrot.slane %v2100, 2
    %v2102 = vadd.f32 %v2100, %v2101
    %v2103 = vrot.slane %v2102, 1
    %v2104 = vadd.f32 %v2102, %v2103
    %v2105 = vsel %vm160, %v2041, 0.0
    %v2106 = vrot.slane %v2105, 4
    %v2107 = vadd.f32 %v2105, %v2106
    %v2108 = vrot.slane %v2107, 2
    %v2109 = vadd.f32 %v2107, %v2108
    %v2110 = vrot.slane %v2109, 1
    %v2111 = vadd.f32 %v2109, %v2110
    %v2112 = vsel %vm160, %v2042, 0.0
    %v2113 = vrot.slane %v2112, 4
    %v2114 = vadd.f32 %v2112, %v2113
    %v2115 = vrot.slane %v2114, 2
    %v2116 = vadd.f32 %v2114, %v2115
    %v2117 = vrot.slane %v2116, 1
    %v2118 = vadd.f32 %v2116, %v2117
    %v2119 = vsel %vm160, %v2043, 0.0
    %v2120 = vrot.slane %v2119, 4
    %v2121 = vadd.f32 %v2119, %v2120
    %v2122 = vrot.slane %v2121, 2
    %v2123 = vadd.f32 %v2121, %v2122
    %v2124 = vrot.slane %v2123, 1
    %v2125 = vadd.f32 %v2123, %v2124
    %v2126 = vsel %vm160, %v2044, 0.0
    %v2127 = vrot.slane %v2126, 4
    %v2128 = vadd.f32 %v2126, %v2127
    %v2129 = vrot.slane %v2128, 2
    %v2130 = vadd.f32 %v2128, %v2129
    %v2131 = vrot.slane %v2130, 1
    %v2132 = vadd.f32 %v2130, %v2131
    %v2133 = vsel %vm160, %v2045, 0.0
    %v2134 = vrot.slane %v2133, 4
    %v2135 = vadd.f32 %v2133, %v2134
    %v2136 = vrot.slane %v2135, 2
    %v2137 = vadd.f32 %v2135, %v2136
    %v2138 = vrot.slane %v2137, 1
    %v2139 = vadd.f32 %v2137, %v2138
    %v2140 = vsel %vm160, %v2046, 0.0
    %v2141 = vrot.slane %v2140, 4
    %v2142 = vadd.f32 %v2140, %v2141
    %v2143 = vrot.slane %v2142, 2
    %v2144 = vadd.f32 %v2142, %v2143
    %v2145 = vrot.slane %v2144, 1
    %v2146 = vadd.f32 %v2144, %v2145
    %v2147 = vsel %vm160, %v2047, 0.0
    %v2148 = vrot.slane %v2147, 4
    %v2149 = vadd.f32 %v2147, %v2148
    %v2150 = vrot.slane %v2149, 2
    %v2151 = vadd.f32 %v2149, %v2150
    %v2152 = vrot.slane %v2151, 1
    %v2153 = vadd.f32 %v2151, %v2152
    %v2154 = vsel %vm160, %v2048, 0.0
    %v2155 = vrot.slane %v2154, 4
    %v2156 = vadd.f32 %v2154, %v2155
    %v2157 = vrot.slane %v2156, 2
    %v2158 = vadd.f32 %v2156, %v2157
    %v2159 = vrot.slane %v2158, 1
    %v2160 = vadd.f32 %v2158, %v2159
    %v2177 = vsel %vm697, %v1230, %v1223
    %v2178 = vsel %vm699, %v1237, %v2177
    %v2179 = vsel %vm701, %v1244, %v2178
    %v2180 = vsel %vm703, %v1251, %v2179
    %v2181 = vsel %vm705, %v1258, %v2180
    %v2182 = vsel %vm707, %v1265, %v2181
    %v2183 = vsel %vm709, %v1272, %v2182
    %v2184 = vsel %vm697, %v1286, %v1279
    %v2185 = vsel %vm699, %v1293, %v2184
    %v2186 = vsel %vm701, %v1300, %v2185
    %v2187 = vsel %vm703, %v1307, %v2186
    %v2188 = vsel %vm705, %v1314, %v2187
    %v2189 = vsel %vm707, %v1321, %v2188
    %v2190 = vsel %vm709, %v1328, %v2189
    %v2209 = vsel %vm697, %v2062, %v2055
    %v2210 = vsel %vm699, %v2069, %v2209
    %v2211 = vsel %vm701, %v2076, %v2210
    %v2212 = vsel %vm703, %v2083, %v2211
    %v2213 = vsel %vm705, %v2090, %v2212
    %v2214 = vsel %vm707, %v2097, %v2213
    %v2215 = vsel %vm709, %v2104, %v2214
    %v2216 = vsel %vm697, %v2118, %v2111
    %v2217 = vsel %vm699, %v2125, %v2216
    %v2218 = vsel %vm701, %v2132, %v2217
    %v2219 = vsel %vm703, %v2139, %v2218
    %v2220 = vsel %vm705, %v2146, %v2219
    %v2221 = vsel %vm707, %v2153, %v2220
    %v2222 = vsel %vm709, %v2160, %v2221
    %2223 = vrot.lane.b32.xlu0 %v2215, 16
    %v2224 = vpop.permute.xlu0 %2223
    %2225 = vrot.lane.b32.xlu0 %v2222, 16
    %v2226 = vpop.permute.xlu0 %2225
    %v2229 = vsel %vm160, %v2183, %v2224
    %v2230 = vsel %vm160, %v2190, %v2226
    %v2231 = vsel %vm550, %v2229, 0.0
    %v2232 = vsel %vm550, %v2230, 0.0
    %v2233 = vadd.f32 %v2231, %v2232
    %v2234 = vrot.slane %v2233, 4
    %v2235 = vadd.f32 %v2233, %v2234
    %v2236 = vrot.slane %v2235, 2
    %v2237 = vadd.f32 %v2235, %v2236
    %v2238 = vrot.slane %v2237, 1
    %v2239 = vadd.f32 %v2237, %v2238
    %v2240 = vrcp.pop 16.0
    %v2241 = vmul.f32 %v2239, %v2240
    %v2242 = vsub.f32 %v2229, %v2241
    %v2243 = vsub.f32 %v2230, %v2241
    %v2244 = vmul.f32 %v2242, %v2242
    %v2245 = vmul.f32 %v2243, %v2243
    %v2246 = vsel %vm550, %v2244, 0.0
    %v2247 = vsel %vm550, %v2245, 0.0
    %v2248 = vadd.f32 %v2246, %v2247
    %v2249 = vrot.slane %v2248, 4
    %v2250 = vadd.f32 %v2248, %v2249
    %v2251 = vrot.slane %v2250, 2
    %v2252 = vadd.f32 %v2250, %v2251
    %v2253 = vrot.slane %v2252, 1
    %v2254 = vadd.f32 %v2252, %v2253
    %v2255 = vmul.f32 %v2254, %v2240
    %v2256 = vadd.f32 %v2255, 1e-05
    %v2257 = vrsqrt.pop %v2256
    %v2258 = vmul.f32 %v2242, %v2257
    %v2259 = vmul.f32 %v2243, %v2257
    %v2260 = vld [vmem:[%s4] sm:$0x1]
    %v2262 = vlaneseq
    %v2263 = vshrl.u32 %v2262, 7
    %v2264 = vsub.s32 0, %v2263
    %v2265 = vrot.slane %v2260, %v2264
    %v2267 = vmul.f32 %v2258, %v2265
    %v2268 = vmul.f32 %v2259, %v2265
    %v2269 = vld [vmem:[%s5] sm:$0x1]
    %v2271 = vlaneseq
    %v2272 = vshrl.u32 %v2271, 7
    %v2273 = vsub.s32 0, %v2272
    %v2274 = vrot.slane %v2269, %v2273
    %v2276 = vadd.f32 %v2267, %v2274
    %v2277 = vadd.f32 %v2268, %v2274
    %v2278 = vld [vmem:[%s6] sm:$0xff]
    %v2279 = vld [vmem:[%s6 + $0x8] sm:$0xff]
    %v2280 = vld [vmem:[%s6 + $0x10] sm:$0xff]
    %v2281 = vld [vmem:[%s6 + $0x18] sm:$0xff]
    %v2282 = vld [vmem:[%s8] sm:$0x1]
    %v2284 = vlaneseq
    %v2285 = vshrl.u32 %v2284, 7
    %v2286 = vsub.s32 0, %v2285
    %v2287 = vrot.slane %v2282, %v2286
    %v2290 = vsel %vm550, %v2276, 0
    %v2293 = vsel %vm550, %v2277, 0
    %2295 = vmatprep.subr.mxu0 0.0
    %2296 = vmatpush1.msra.mxu0 %v2278
    %2297 = vmatprep.subr.mxu0 0.0
    %2298 = vmatpush1.msra.mxu0 %v2279
    %2299 = vmatprep.subr.mxu0 0.0
    %2300 = vmatpush1.msra.mxu0 %v2280
    %2301 = vmatprep.subr.mxu0 0.0
    %2302 = vmatpush1.msra.mxu0 %v2281
    %2303 = vmatprep.subr.mxu0 0.0
    %2304 = vmatpush1.msra.mxu0 0.0
    %2305 = vmatprep.subr.mxu0 0.0
    %2306 = vmatpush1.msra.mxu0 0.0
    %2307 = vmatprep.subr.mxu0 0.0
    %2308 = vmatpush1.msra.mxu0 0.0
    %2309 = vmatprep.subr.mxu0 0.0
    %2310 = vmatpush1.msra.mxu0 0.0
    %2311 = vmatprep.subr.mxu0 0.0
    %2312 = vmatpush1.msra.mxu0 0.0
    %2313 = vmatprep.subr.mxu0 0.0
    %2314 = vmatpush1.msra.mxu0 0.0
    %2315 = vmatprep.subr.mxu0 0.0
    %2316 = vmatpush1.msra.mxu0 0.0
    %2317 = vmatprep.subr.mxu0 0.0
    %2318 = vmatpush1.msra.mxu0 0.0
    %2319 = vmatprep.subr.mxu0 0.0
    %2320 = vmatpush1.msra.mxu0 0.0
    %2321 = vmatprep.subr.mxu0 0.0
    %2322 = vmatpush1.msra.mxu0 0.0
    %2323 = vmatprep.subr.mxu0 0.0
    %2324 = vmatpush1.msra.mxu0 0.0
    %2325 = vmatprep.subr.mxu0 0.0
    %2326 = vmatpush1.msra.mxu0 0.0
    %2327 = vmatprep.subr.mxu0 0.0
    %2328 = vmatpush1.msra.mxu0 0.0
    %2329 = vmatprep.subr.mxu0 0.0
    %2330 = vmatpush1.msra.mxu0 0.0
    %2331 = vmatprep.subr.mxu0 0.0
    %2332 = vmatpush1.msra.mxu0 0.0
    %2333 = vmatprep.subr.mxu0 0.0
    %2334 = vmatpush1.msra.mxu0 0.0
    %2335 = vmatprep.subr.mxu0 0.0
    %2336 = vmatpush1.msra.mxu0 0.0
    %2337 = vmatprep.subr.mxu0 0.0
    %2338 = vmatpush1.msra.mxu0 0.0
    %2339 = vmatprep.subr.mxu0 0.0
    %2340 = vmatpush1.msra.mxu0 0.0
    %2341 = vmatprep.subr.mxu0 0.0
    %2342 = vmatpush1.msra.mxu0 0.0
    %2343 = vmatprep.subr.mxu0 0.0
    %2344 = vmatpush1.msra.mxu0 0.0
    %2345 = vmatprep.subr.mxu0 0.0
    %2346 = vmatpush1.msra.mxu0 0.0
    %2347 = vmatprep.subr.mxu0 0.0
    %2348 = vmatpush1.msra.mxu0 0.0
    %2349 = vmatprep.subr.mxu0 0.0
    %2350 = vmatpush1.msra.mxu0 0.0
    %2351 = vmatprep.subr.mxu0 0.0
    %2352 = vmatpush1.msra.mxu0 0.0
    %2353 = vmatprep.subr.mxu0 0.0
    %2354 = vmatpush1.msra.mxu0 0.0
    %2355 = vmatprep.subr.mxu0 0.0
    %2356 = vmatpush1.msra.mxu0 0.0
    %2357 = vmatprep.subr.mxu0 0.0
    %2358 = vmatpush1.msra.mxu0 0.0
    %2359 = vmatprep.mubr.f32.mxu0 0.0
    %2360 = vmatmul.mubr.f32.gmra.mrb[0].mxu0 %v2290
    %v2361 = vpop.f32.mrb[0].mxu0
    %v2362 = vadd.f32 %v2287, %v2361
    %v2363 = vpop.f32.mrb[0].mxu0
    %2364 = vmatprep.mubr.f32.mxu0 0.0
    %2365 = vmatmul.mubr.f32.gmra.mrb[0].mxu0 %v2293
    %v2366 = vpop.f32.mrb[0].mxu0
    %v2367 = vadd.f32 %v2287, %v2366
    %v2368 = vpop.f32.mrb[0].mxu0
    %2369 = vdwg.mxu0
    %v2370 = vld [vmem:[%s7] sm:$0xff]
    %v2371 = vld [vmem:[%s7 + $0x8] sm:$0xff]
    %v2372 = vld [vmem:[%s7 + $0x10] sm:$0xff]
    %v2373 = vld [vmem:[%s7 + $0x18] sm:$0xff]
    %v2374 = vld [vmem:[%s9] sm:$0x1]
    %v2376 = vlaneseq
    %v2377 = vshrl.u32 %v2376, 7
    %v2378 = vsub.s32 0, %v2377
    %v2379 = vrot.slane %v2374, %v2378
    %v2382 = vsel %vm550, 0.0, 0
    %2384 = vmatprep.subr.mxu0 0.0
    %2385 = vmatpush1.msra.mxu0 %v2370
    %2386 = vmatprep.subr.mxu0 0.0
    %2387 = vmatpush1.msra.mxu0 %v2371
    %2388 = vmatprep.subr.mxu0 0.0
    %2389 = vmatpush1.msra.mxu0 %v2372
    %2390 = vmatprep.subr.mxu0 0.0
    %2391 = vmatpush1.msra.mxu0 %v2373
    %2392 = vmatprep.subr.mxu0 0.0
    %2393 = vmatpush1.msra.mxu0 0.0
    %2394 = vmatprep.subr.mxu0 0.0
    %2395 = vmatpush1.msra.mxu0 0.0
    %2396 = vmatprep.subr.mxu0 0.0
    %2397 = vmatpush1.msra.mxu0 0.0
    %2398 = vmatprep.subr.mxu0 0.0
    %2399 = vmatpush1.msra.mxu0 0.0
    %2400 = vmatprep.subr.mxu0 0.0
    %2401 = vmatpush1.msra.mxu0 0.0
    %2402 = vmatprep.subr.mxu0 0.0
    %2403 = vmatpush1.msra.mxu0 0.0
    %2404 = vmatprep.subr.mxu0 0.0
    %2405 = vmatpush1.msra.mxu0 0.0
    %2406 = vmatprep.subr.mxu0 0.0
    %2407 = vmatpush1.msra.mxu0 0.0
    %2408 = vmatprep.subr.mxu0 0.0
    %2409 = vmatpush1.msra.mxu0 0.0
    %2410 = vmatprep.subr.mxu0 0.0
    %2411 = vmatpush1.msra.mxu0 0.0
    %2412 = vmatprep.subr.mxu0 0.0
    %2413 = vmatpush1.msra.mxu0 0.0
    %2414 = vmatprep.subr.mxu0 0.0
    %2415 = vmatpush1.msra.mxu0 0.0
    %2416 = vmatprep.subr.mxu0 0.0
    %2417 = vmatpush1.msra.mxu0 0.0
    %2418 = vmatprep.subr.mxu0 0.0
    %2419 = vmatpush1.msra.mxu0 0.0
    %2420 = vmatprep.subr.mxu0 0.0
    %2421 = vmatpush1.msra.mxu0 0.0
    %2422 = vmatprep.subr.mxu0 0.0
    %2423 = vmatpush1.msra.mxu0 0.0
    %2424 = vmatprep.subr.mxu0 0.0
    %2425 = vmatpush1.msra.mxu0 0.0
    %2426 = vmatprep.subr.mxu0 0.0
    %2427 = vmatpush1.msra.mxu0 0.0
    %2428 = vmatprep.subr.mxu0 0.0
    %2429 = vmatpush1.msra.mxu0 0.0
    %2430 = vmatprep.subr.mxu0 0.0
    %2431 = vmatpush1.msra.mxu0 0.0
    %2432 = vmatprep.subr.mxu0 0.0
    %2433 = vmatpush1.msra.mxu0 0.0
    %2434 = vmatprep.subr.mxu0 0.0
    %2435 = vmatpush1.msra.mxu0 0.0
    %2436 = vmatprep.subr.mxu0 0.0
    %2437 = vmatpush1.msra.mxu0 0.0
    %2438 = vmatprep.subr.mxu0 0.0
    %2439 = vmatpush1.msra.mxu0 0.0
    %2440 = vmatprep.subr.mxu0 0.0
    %2441 = vmatpush1.msra.mxu0 0.0
    %2442 = vmatprep.subr.mxu0 0.0
    %2443 = vmatpush1.msra.mxu0 0.0
    %2444 = vmatprep.subr.mxu0 0.0
    %2445 = vmatpush1.msra.mxu0 0.0
    %2446 = vmatprep.subr.mxu0 0.0
    %2447 = vmatpush1.msra.mxu0 0.0
    %2448 = vmatprep.mubr.f32.mxu0 0.0
    %2449 = vmatmul.mubr.f32.gmra.mrb[0].mxu0 %v2382
    %v2450 = vpop.f32.mrb[0].mxu0
    %v2451 = vadd.f32 %v2379, %v2450
    %v2452 = vpop.f32.mrb[0].mxu0
    %2453 = vdwg.mxu0
    %v2454 = vadd.f32 %v2362, %v2451
    %v2455 = vsub.f32 0.0, %v2454
    %v2456 = vmul.f32 %v2455, 1.442695
    %v2457 = vpow.pop %v2456
    %v2458 = vadd.f32 %v2457, 1.0
    %v2459 = vrcp.pop %v2458
    %v2460 = vmul.f32 1.0, %v2459
    %2462 = vrot.lane.b32.xlu0 %v2451, 64
    %v2463 = vpop.permute.xlu0 %2462
    %v2465 = vmul.f32 %v2460, %v2463
    %2467 = vrot.lane.b32.xlu0 %v2465, 64
    %v2468 = vpop.permute.xlu0 %2467
    %v2470 = vadd.f32 %v2362, %v2468
    %v2471 = vtanh.pop %v2470
    %v2472 = vsub.f32 1.0, %v2460
    %2474 = vrot.lane.b32.xlu0 %v2471, 96
    %v2475 = vpop.permute.xlu0 %2474
    %v2477 = vmul.f32 %v2472, %v2475
    %v2478 = vmul.f32 %v2460, 0.0
    %v2479 = vadd.f32 %v2477, %v2478
    %2481 = vrot.lane.b32.xlu0 %v2479, 96
    %v2482 = vpop.permute.xlu0 %2481
    %v2483 = vsel %vm550, %v2482, 0
    %2485 = vmatprep.subr.mxu0 0.0
    %2486 = vmatpush1.msra.mxu0 %v2370
    %2487 = vmatprep.subr.mxu0 0.0
    %2488 = vmatpush1.msra.mxu0 %v2371
    %2489 = vmatprep.subr.mxu0 0.0
    %2490 = vmatpush1.msra.mxu0 %v2372
    %2491 = vmatprep.subr.mxu0 0.0
    %2492 = vmatpush1.msra.mxu0 %v2373
    %2493 = vmatprep.subr.mxu0 0.0
    %2494 = vmatpush1.msra.mxu0 0.0
    %2495 = vmatprep.subr.mxu0 0.0
    %2496 = vmatpush1.msra.mxu0 0.0
    %2497 = vmatprep.subr.mxu0 0.0
    %2498 = vmatpush1.msra.mxu0 0.0
    %2499 = vmatprep.subr.mxu0 0.0
    %2500 = vmatpush1.msra.mxu0 0.0
    %2501 = vmatprep.subr.mxu0 0.0
    %2502 = vmatpush1.msra.mxu0 0.0
    %2503 = vmatprep.subr.mxu0 0.0
    %2504 = vmatpush1.msra.mxu0 0.0
    %2505 = vmatprep.subr.mxu0 0.0
    %2506 = vmatpush1.msra.mxu0 0.0
    %2507 = vmatprep.subr.mxu0 0.0
    %2508 = vmatpush1.msra.mxu0 0.0
    %2509 = vmatprep.subr.mxu0 0.0
    %2510 = vmatpush1.msra.mxu0 0.0
    %2511 = vmatprep.subr.mxu0 0.0
    %2512 = vmatpush1.msra.mxu0 0.0
    %2513 = vmatprep.subr.mxu0 0.0
    %2514 = vmatpush1.msra.mxu0 0.0
    %2515 = vmatprep.subr.mxu0 0.0
    %2516 = vmatpush1.msra.mxu0 0.0
    %2517 = vmatprep.subr.mxu0 0.0
    %2518 = vmatpush1.msra.mxu0 0.0
    %2519 = vmatprep.subr.mxu0 0.0
    %2520 = vmatpush1.msra.mxu0 0.0
    %2521 = vmatprep.subr.mxu0 0.0
    %2522 = vmatpush1.msra.mxu0 0.0
    %2523 = vmatprep.subr.mxu0 0.0
    %2524 = vmatpush1.msra.mxu0 0.0
    %2525 = vmatprep.subr.mxu0 0.0
    %2526 = vmatpush1.msra.mxu0 0.0
    %2527 = vmatprep.subr.mxu0 0.0
    %2528 = vmatpush1.msra.mxu0 0.0
    %2529 = vmatprep.subr.mxu0 0.0
    %2530 = vmatpush1.msra.mxu0 0.0
    %2531 = vmatprep.subr.mxu0 0.0
    %2532 = vmatpush1.msra.mxu0 0.0
    %2533 = vmatprep.subr.mxu0 0.0
    %2534 = vmatpush1.msra.mxu0 0.0
    %2535 = vmatprep.subr.mxu0 0.0
    %2536 = vmatpush1.msra.mxu0 0.0
    %2537 = vmatprep.subr.mxu0 0.0
    %2538 = vmatpush1.msra.mxu0 0.0
    %2539 = vmatprep.subr.mxu0 0.0
    %2540 = vmatpush1.msra.mxu0 0.0
    %2541 = vmatprep.subr.mxu0 0.0
    %2542 = vmatpush1.msra.mxu0 0.0
    %2543 = vmatprep.subr.mxu0 0.0
    %2544 = vmatpush1.msra.mxu0 0.0
    %2545 = vmatprep.subr.mxu0 0.0
    %2546 = vmatpush1.msra.mxu0 0.0
    %2547 = vmatprep.subr.mxu0 0.0
    %2548 = vmatpush1.msra.mxu0 0.0
    %2549 = vmatprep.mubr.f32.mxu0 0.0
    %2550 = vmatmul.mubr.f32.gmra.mrb[0].mxu0 %v2483
    %v2551 = vpop.f32.mrb[0].mxu0
    %v2552 = vadd.f32 %v2379, %v2551
    %v2553 = vpop.f32.mrb[0].mxu0
    %2554 = vdwg.mxu0
    %v2556 = vrot.slane %v2552, 6
    %v2558 = vadd.f32 %v2362, %v2556
    %v2559 = vsub.f32 0.0, %v2558
    %v2560 = vmul.f32 %v2559, 1.442695
    %v2561 = vpow.pop %v2560
    %v2562 = vadd.f32 %v2561, 1.0
    %v2563 = vrcp.pop %v2562
    %v2564 = vmul.f32 1.0, %v2563
    %2565 = vrot.lane.b32.xlu0 %v2556, 64
    %v2566 = vpop.permute.xlu0 %2565
    %v2568 = vmul.f32 %v2564, %v2566
    %2570 = vrot.lane.b32.xlu0 %v2568, 64
    %v2571 = vpop.permute.xlu0 %2570
    %v2573 = vadd.f32 %v2362, %v2571
    %v2574 = vtanh.pop %v2573
    %v2575 = vsub.f32 1.0, %v2564
    %2577 = vrot.lane.b32.xlu0 %v2574, 96
    %v2578 = vpop.permute.xlu0 %2577
    %v2580 = vmul.f32 %v2575, %v2578
    %v2581 = vrot.slane %v2479, 6
    %v2583 = vmul.f32 %v2564, %v2581
    %v2584 = vadd.f32 %v2580, %v2583
    %v2586 = vrot.slane %v2584, 2
    %2587 = vrot.lane.b32.xlu0 %v2586, 96
    %v2588 = vpop.permute.xlu0 %2587
    %v2589 = vsel %vm550, %v2588, 0
    %2591 = vmatprep.subr.mxu0 0.0
    %2592 = vmatpush1.msra.mxu0 %v2370
    %2593 = vmatprep.subr.mxu0 0.0
    %2594 = vmatpush1.msra.mxu0 %v2371
    %2595 = vmatprep.subr.mxu0 0.0
    %2596 = vmatpush1.msra.mxu0 %v2372
    %2597 = vmatprep.subr.mxu0 0.0
    %2598 = vmatpush1.msra.mxu0 %v2373
    %2599 = vmatprep.subr.mxu0 0.0
    %2600 = vmatpush1.msra.mxu0 0.0
    %2601 = vmatprep.subr.mxu0 0.0
    %2602 = vmatpush1.msra.mxu0 0.0
    %2603 = vmatprep.subr.mxu0 0.0
    %2604 = vmatpush1.msra.mxu0 0.0
    %2605 = vmatprep.subr.mxu0 0.0
    %2606 = vmatpush1.msra.mxu0 0.0
    %2607 = vmatprep.subr.mxu0 0.0
    %2608 = vmatpush1.msra.mxu0 0.0
    %2609 = vmatprep.subr.mxu0 0.0
    %2610 = vmatpush1.msra.mxu0 0.0
    %2611 = vmatprep.subr.mxu0 0.0
    %2612 = vmatpush1.msra.mxu0 0.0
    %2613 = vmatprep.subr.mxu0 0.0
    %2614 = vmatpush1.msra.mxu0 0.0
    %2615 = vmatprep.subr.mxu0 0.0
    %2616 = vmatpush1.msra.mxu0 0.0
    %2617 = vmatprep.subr.mxu0 0.0
    %2618 = vmatpush1.msra.mxu0 0.0
    %2619 = vmatprep.subr.mxu0 0.0
    %2620 = vmatpush1.msra.mxu0 0.0
    %2621 = vmatprep.subr.mxu0 0.0
    %2622 = vmatpush1.msra.mxu0 0.0
    %2623 = vmatprep.subr.mxu0 0.0
    %2624 = vmatpush1.msra.mxu0 0.0
    %2625 = vmatprep.subr.mxu0 0.0
    %2626 = vmatpush1.msra.mxu0 0.0
    %2627 = vmatprep.subr.mxu0 0.0
    %2628 = vmatpush1.msra.mxu0 0.0
    %2629 = vmatprep.subr.mxu0 0.0
    %2630 = vmatpush1.msra.mxu0 0.0
    %2631 = vmatprep.subr.mxu0 0.0
    %2632 = vmatpush1.msra.mxu0 0.0
    %2633 = vmatprep.subr.mxu0 0.0
    %2634 = vmatpush1.msra.mxu0 0.0
    %2635 = vmatprep.subr.mxu0 0.0
    %2636 = vmatpush1.msra.mxu0 0.0
    %2637 = vmatprep.subr.mxu0 0.0
    %2638 = vmatpush1.msra.mxu0 0.0
    %2639 = vmatprep.subr.mxu0 0.0
    %2640 = vmatpush1.msra.mxu0 0.0
    %2641 = vmatprep.subr.mxu0 0.0
    %2642 = vmatpush1.msra.mxu0 0.0
    %2643 = vmatprep.subr.mxu0 0.0
    %2644 = vmatpush1.msra.mxu0 0.0
    %2645 = vmatprep.subr.mxu0 0.0
    %2646 = vmatpush1.msra.mxu0 0.0
    %2647 = vmatprep.subr.mxu0 0.0
    %2648 = vmatpush1.msra.mxu0 0.0
    %2649 = vmatprep.subr.mxu0 0.0
    %2650 = vmatpush1.msra.mxu0 0.0
    %2651 = vmatprep.subr.mxu0 0.0
    %2652 = vmatpush1.msra.mxu0 0.0
    %2653 = vmatprep.subr.mxu0 0.0
    %2654 = vmatpush1.msra.mxu0 0.0
    %2655 = vmatprep.mubr.f32.mxu0 0.0
    %2656 = vmatmul.mubr.f32.gmra.mrb[0].mxu0 %v2589
    %v2657 = vpop.f32.mrb[0].mxu0
    %v2658 = vadd.f32 %v2379, %v2657
    %v2659 = vpop.f32.mrb[0].mxu0
    %2660 = vdwg.mxu0
    %v2662 = vrot.slane %v2658, 4
    %v2664 = vadd.f32 %v2362, %v2662
    %v2665 = vsub.f32 0.0, %v2664
    %v2666 = vmul.f32 %v2665, 1.442695
    %v2667 = vpow.pop %v2666
    %v2668 = vadd.f32 %v2667, 1.0
    %v2669 = vrcp.pop %v2668
    %v2670 = vmul.f32 1.0, %v2669
    %2671 = vrot.lane.b32.xlu0 %v2662, 64
    %v2672 = vpop.permute.xlu0 %2671
    %v2674 = vmul.f32 %v2670, %v2672
    %2676 = vrot.lane.b32.xlu0 %v2674, 64
    %v2677 = vpop.permute.xlu0 %2676
    %v2679 = vadd.f32 %v2362, %v2677
    %v2680 = vtanh.pop %v2679
    %v2681 = vsub.f32 1.0, %v2670
    %2683 = vrot.lane.b32.xlu0 %v2680, 96
    %v2684 = vpop.permute.xlu0 %2683
    %v2686 = vmul.f32 %v2681, %v2684
    %v2687 = vrot.slane %v2584, 6
    %v2689 = vmul.f32 %v2670, %v2687
    %v2690 = vadd.f32 %v2686, %v2689
    %v2692 = vrot.slane %v2690, 4
    %2693 = vrot.lane.b32.xlu0 %v2692, 96
    %v2694 = vpop.permute.xlu0 %2693
    %v2695 = vsel %vm550, %v2694, 0
    %2697 = vmatprep.subr.mxu0 0.0
    %2698 = vmatpush1.msra.mxu0 %v2370
    %2699 = vmatprep.subr.mxu0 0.0
    %2700 = vmatpush1.msra.mxu0 %v2371
    %2701 = vmatprep.subr.mxu0 0.0
    %2702 = vmatpush1.msra.mxu0 %v2372
    %2703 = vmatprep.subr.mxu0 0.0
    %2704 = vmatpush1.msra.mxu0 %v2373
    %2705 = vmatprep.subr.mxu0 0.0
    %2706 = vmatpush1.msra.mxu0 0.0
    %2707 = vmatprep.subr.mxu0 0.0
    %2708 = vmatpush1.msra.mxu0 0.0
    %2709 = vmatprep.subr.mxu0 0.0
    %2710 = vmatpush1.msra.mxu0 0.0
    %2711 = vmatprep.subr.mxu0 0.0
    %2712 = vmatpush1.msra.mxu0 0.0
    %2713 = vmatprep.subr.mxu0 0.0
    %2714 = vmatpush1.msra.mxu0 0.0
    %2715 = vmatprep.subr.mxu0 0.0
    %2716 = vmatpush1.msra.mxu0 0.0
    %2717 = vmatprep.subr.mxu0 0.0
    %2718 = vmatpush1.msra.mxu0 0.0
    %2719 = vmatprep.subr.mxu0 0.0
    %2720 = vmatpush1.msra.mxu0 0.0
    %2721 = vmatprep.subr.mxu0 0.0
    %2722 = vmatpush1.msra.mxu0 0.0
    %2723 = vmatprep.subr.mxu0 0.0
    %2724 = vmatpush1.msra.mxu0 0.0
    %2725 = vmatprep.subr.mxu0 0.0
    %2726 = vmatpush1.msra.mxu0 0.0
    %2727 = vmatprep.subr.mxu0 0.0
    %2728 = vmatpush1.msra.mxu0 0.0
    %2729 = vmatprep.subr.mxu0 0.0
    %2730 = vmatpush1.msra.mxu0 0.0
    %2731 = vmatprep.subr.mxu0 0.0
    %2732 = vmatpush1.msra.mxu0 0.0
    %2733 = vmatprep.subr.mxu0 0.0
    %2734 = vmatpush1.msra.mxu0 0.0
    %2735 = vmatprep.subr.mxu0 0.0
    %2736 = vmatpush1.msra.mxu0 0.0
    %2737 = vmatprep.subr.mxu0 0.0
    %2738 = vmatpush1.msra.mxu0 0.0
    %2739 = vmatprep.subr.mxu0 0.0
    %2740 = vmatpush1.msra.mxu0 0.0
    %2741 = vmatprep.subr.mxu0 0.0
    %2742 = vmatpush1.msra.mxu0 0.0
    %2743 = vmatprep.subr.mxu0 0.0
    %2744 = vmatpush1.msra.mxu0 0.0
    %2745 = vmatprep.subr.mxu0 0.0
    %2746 = vmatpush1.msra.mxu0 0.0
    %2747 = vmatprep.subr.mxu0 0.0
    %2748 = vmatpush1.msra.mxu0 0.0
    %2749 = vmatprep.subr.mxu0 0.0
    %2750 = vmatpush1.msra.mxu0 0.0
    %2751 = vmatprep.subr.mxu0 0.0
    %2752 = vmatpush1.msra.mxu0 0.0
    %2753 = vmatprep.subr.mxu0 0.0
    %2754 = vmatpush1.msra.mxu0 0.0
    %2755 = vmatprep.subr.mxu0 0.0
    %2756 = vmatpush1.msra.mxu0 0.0
    %2757 = vmatprep.subr.mxu0 0.0
    %2758 = vmatpush1.msra.mxu0 0.0
    %2759 = vmatprep.subr.mxu0 0.0
    %2760 = vmatpush1.msra.mxu0 0.0
    %2761 = vmatprep.mubr.f32.mxu0 0.0
    %2762 = vmatmul.mubr.f32.gmra.mrb[0].mxu0 %v2695
    %v2763 = vpop.f32.mrb[0].mxu0
    %v2764 = vadd.f32 %v2379, %v2763
    %v2765 = vpop.f32.mrb[0].mxu0
    %2766 = vdwg.mxu0
    %v2768 = vrot.slane %v2764, 2
    %v2770 = vadd.f32 %v2362, %v2768
    %v2771 = vsub.f32 0.0, %v2770
    %v2772 = vmul.f32 %v2771, 1.442695
    %v2773 = vpow.pop %v2772
    %v2774 = vadd.f32 %v2773, 1.0
    %v2775 = vrcp.pop %v2774
    %v2776 = vmul.f32 1.0, %v2775
    %2777 = vrot.lane.b32.xlu0 %v2768, 64
    %v2778 = vpop.permute.xlu0 %2777
    %v2780 = vmul.f32 %v2776, %v2778
    %2782 = vrot.lane.b32.xlu0 %v2780, 64
    %v2783 = vpop.permute.xlu0 %2782
    %v2785 = vadd.f32 %v2362, %v2783
    %v2786 = vtanh.pop %v2785
    %v2787 = vsub.f32 1.0, %v2776
    %2789 = vrot.lane.b32.xlu0 %v2786, 96
    %v2790 = vpop.permute.xlu0 %2789
    %v2792 = vmul.f32 %v2787, %v2790
    %v2793 = vrot.slane %v2690, 6
    %v2795 = vmul.f32 %v2776, %v2793
    %v2796 = vadd.f32 %v2792, %v2795
    %v2798 = vrot.slane %v2796, 6
    %2799 = vrot.lane.b32.xlu0 %v2798, 96
    %v2800 = vpop.permute.xlu0 %2799
    %v2801 = vsel %vm550, %v2800, 0
    %2803 = vmatprep.subr.mxu0 0.0
    %2804 = vmatpush1.msra.mxu0 %v2370
    %2805 = vmatprep.subr.mxu0 0.0
    %2806 = vmatpush1.msra.mxu0 %v2371
    %2807 = vmatprep.subr.mxu0 0.0
    %2808 = vmatpush1.msra.mxu0 %v2372
    %2809 = vmatprep.subr.mxu0 0.0
    %2810 = vmatpush1.msra.mxu0 %v2373
    %2811 = vmatprep.subr.mxu0 0.0
    %2812 = vmatpush1.msra.mxu0 0.0
    %2813 = vmatprep.subr.mxu0 0.0
    %2814 = vmatpush1.msra.mxu0 0.0
    %2815 = vmatprep.subr.mxu0 0.0
    %2816 = vmatpush1.msra.mxu0 0.0
    %2817 = vmatprep.subr.mxu0 0.0
    %2818 = vmatpush1.msra.mxu0 0.0
    %2819 = vmatprep.subr.mxu0 0.0
    %2820 = vmatpush1.msra.mxu0 0.0
    %2821 = vmatprep.subr.mxu0 0.0
    %2822 = vmatpush1.msra.mxu0 0.0
    %2823 = vmatprep.subr.mxu0 0.0
    %2824 = vmatpush1.msra.mxu0 0.0
    %2825 = vmatprep.subr.mxu0 0.0
    %2826 = vmatpush1.msra.mxu0 0.0
    %2827 = vmatprep.subr.mxu0 0.0
    %2828 = vmatpush1.msra.mxu0 0.0
    %2829 = vmatprep.subr.mxu0 0.0
    %2830 = vmatpush1.msra.mxu0 0.0
    %2831 = vmatprep.subr.mxu0 0.0
    %2832 = vmatpush1.msra.mxu0 0.0
    %2833 = vmatprep.subr.mxu0 0.0
    %2834 = vmatpush1.msra.mxu0 0.0
    %2835 = vmatprep.subr.mxu0 0.0
    %2836 = vmatpush1.msra.mxu0 0.0
    %2837 = vmatprep.subr.mxu0 0.0
    %2838 = vmatpush1.msra.mxu0 0.0
    %2839 = vmatprep.subr.mxu0 0.0
    %2840 = vmatpush1.msra.mxu0 0.0
    %2841 = vmatprep.subr.mxu0 0.0
    %2842 = vmatpush1.msra.mxu0 0.0
    %2843 = vmatprep.subr.mxu0 0.0
    %2844 = vmatpush1.msra.mxu0 0.0
    %2845 = vmatprep.subr.mxu0 0.0
    %2846 = vmatpush1.msra.mxu0 0.0
    %2847 = vmatprep.subr.mxu0 0.0
    %2848 = vmatpush1.msra.mxu0 0.0
    %2849 = vmatprep.subr.mxu0 0.0
    %2850 = vmatpush1.msra.mxu0 0.0
    %2851 = vmatprep.subr.mxu0 0.0
    %2852 = vmatpush1.msra.mxu0 0.0
    %2853 = vmatprep.subr.mxu0 0.0
    %2854 = vmatpush1.msra.mxu0 0.0
    %2855 = vmatprep.subr.mxu0 0.0
    %2856 = vmatpush1.msra.mxu0 0.0
    %2857 = vmatprep.subr.mxu0 0.0
    %2858 = vmatpush1.msra.mxu0 0.0
    %2859 = vmatprep.subr.mxu0 0.0
    %2860 = vmatpush1.msra.mxu0 0.0
    %2861 = vmatprep.subr.mxu0 0.0
    %2862 = vmatpush1.msra.mxu0 0.0
    %2863 = vmatprep.subr.mxu0 0.0
    %2864 = vmatpush1.msra.mxu0 0.0
    %2865 = vmatprep.subr.mxu0 0.0
    %2866 = vmatpush1.msra.mxu0 0.0
    %2867 = vmatprep.mubr.f32.mxu0 0.0
    %2868 = vmatmul.mubr.f32.gmra.mrb[0].mxu0 %v2801
    %v2869 = vpop.f32.mrb[0].mxu0
    %v2870 = vadd.f32 %v2379, %v2869
    %v2871 = vpop.f32.mrb[0].mxu0
    %2872 = vdwg.mxu0
    %v2873 = vadd.f32 %v2367, %v2870
    %v2874 = vsub.f32 0.0, %v2873
    %v2875 = vmul.f32 %v2874, 1.442695
    %v2876 = vpow.pop %v2875
    %v2877 = vadd.f32 %v2876, 1.0
    %v2878 = vrcp.pop %v2877
    %v2879 = vmul.f32 1.0, %v2878
    %2881 = vrot.lane.b32.xlu0 %v2870, 64
    %v2882 = vpop.permute.xlu0 %2881
    %v2884 = vmul.f32 %v2879, %v2882
    %2886 = vrot.lane.b32.xlu0 %v2884, 64
    %v2887 = vpop.permute.xlu0 %2886
    %v2889 = vadd.f32 %v2367, %v2887
    %v2890 = vtanh.pop %v2889
    %v2891 = vsub.f32 1.0, %v2879
    %2893 = vrot.lane.b32.xlu0 %v2890, 96
    %v2894 = vpop.permute.xlu0 %2893
    %v2896 = vmul.f32 %v2891, %v2894
    %v2898 = vmul.f32 %v2879, %v2798
    %v2899 = vadd.f32 %v2896, %v2898
    %2901 = vrot.lane.b32.xlu0 %v2899, 96
    %v2902 = vpop.permute.xlu0 %2901
    %v2903 = vsel %vm550, %v2902, 0
    %2905 = vmatprep.subr.mxu0 0.0
    %2906 = vmatpush1.msra.mxu0 %v2370
    %2907 = vmatprep.subr.mxu0 0.0
    %2908 = vmatpush1.msra.mxu0 %v2371
    %2909 = vmatprep.subr.mxu0 0.0
    %2910 = vmatpush1.msra.mxu0 %v2372
    %2911 = vmatprep.subr.mxu0 0.0
    %2912 = vmatpush1.msra.mxu0 %v2373
    %2913 = vmatprep.subr.mxu0 0.0
    %2914 = vmatpush1.msra.mxu0 0.0
    %2915 = vmatprep.subr.mxu0 0.0
    %2916 = vmatpush1.msra.mxu0 0.0
    %2917 = vmatprep.subr.mxu0 0.0
    %2918 = vmatpush1.msra.mxu0 0.0
    %2919 = vmatprep.subr.mxu0 0.0
    %2920 = vmatpush1.msra.mxu0 0.0
    %2921 = vmatprep.subr.mxu0 0.0
    %2922 = vmatpush1.msra.mxu0 0.0
    %2923 = vmatprep.subr.mxu0 0.0
    %2924 = vmatpush1.msra.mxu0 0.0
    %2925 = vmatprep.subr.mxu0 0.0
    %2926 = vmatpush1.msra.mxu0 0.0
    %2927 = vmatprep.subr.mxu0 0.0
    %2928 = vmatpush1.msra.mxu0 0.0
    %2929 = vmatprep.subr.mxu0 0.0
    %2930 = vmatpush1.msra.mxu0 0.0
    %2931 = vmatprep.subr.mxu0 0.0
    %2932 = vmatpush1.msra.mxu0 0.0
    %2933 = vmatprep.subr.mxu0 0.0
    %2934 = vmatpush1.msra.mxu0 0.0
    %2935 = vmatprep.subr.mxu0 0.0
    %2936 = vmatpush1.msra.mxu0 0.0
    %2937 = vmatprep.subr.mxu0 0.0
    %2938 = vmatpush1.msra.mxu0 0.0
    %2939 = vmatprep.subr.mxu0 0.0
    %2940 = vmatpush1.msra.mxu0 0.0
    %2941 = vmatprep.subr.mxu0 0.0
    %2942 = vmatpush1.msra.mxu0 0.0
    %2943 = vmatprep.subr.mxu0 0.0
    %2944 = vmatpush1.msra.mxu0 0.0
    %2945 = vmatprep.subr.mxu0 0.0
    %2946 = vmatpush1.msra.mxu0 0.0
    %2947 = vmatprep.subr.mxu0 0.0
    %2948 = vmatpush1.msra.mxu0 0.0
    %2949 = vmatprep.subr.mxu0 0.0
    %2950 = vmatpush1.msra.mxu0 0.0
    %2951 = vmatprep.subr.mxu0 0.0
    %2952 = vmatpush1.msra.mxu0 0.0
    %2953 = vmatprep.subr.mxu0 0.0
    %2954 = vmatpush1.msra.mxu0 0.0
    %2955 = vmatprep.subr.mxu0 0.0
    %2956 = vmatpush1.msra.mxu0 0.0
    %2957 = vmatprep.subr.mxu0 0.0
    %2958 = vmatpush1.msra.mxu0 0.0
    %2959 = vmatprep.subr.mxu0 0.0
    %2960 = vmatpush1.msra.mxu0 0.0
    %2961 = vmatprep.subr.mxu0 0.0
    %2962 = vmatpush1.msra.mxu0 0.0
    %2963 = vmatprep.subr.mxu0 0.0
    %2964 = vmatpush1.msra.mxu0 0.0
    %2965 = vmatprep.subr.mxu0 0.0
    %2966 = vmatpush1.msra.mxu0 0.0
    %2967 = vmatprep.subr.mxu0 0.0
    %2968 = vmatpush1.msra.mxu0 0.0
    %2969 = vmatprep.mubr.f32.mxu0 0.0
    %2970 = vmatmul.mubr.f32.gmra.mrb[0].mxu0 %v2903
    %v2971 = vpop.f32.mrb[0].mxu0
    %v2972 = vadd.f32 %v2379, %v2971
    %v2973 = vpop.f32.mrb[0].mxu0
    %2974 = vdwg.mxu0
    %v2976 = vrot.slane %v2972, 6
    %v2978 = vadd.f32 %v2367, %v2976
    %v2979 = vsub.f32 0.0, %v2978
    %v2980 = vmul.f32 %v2979, 1.442695
    %v2981 = vpow.pop %v2980
    %v2982 = vadd.f32 %v2981, 1.0
    %v2983 = vrcp.pop %v2982
    %v2984 = vmul.f32 1.0, %v2983
    %2985 = vrot.lane.b32.xlu0 %v2976, 64
    %v2986 = vpop.permute.xlu0 %2985
    %v2988 = vmul.f32 %v2984, %v2986
    %2990 = vrot.lane.b32.xlu0 %v2988, 64
    %v2991 = vpop.permute.xlu0 %2990
    %v2993 = vadd.f32 %v2367, %v2991
    %v2994 = vtanh.pop %v2993
    %v2995 = vsub.f32 1.0, %v2984
    %2997 = vrot.lane.b32.xlu0 %v2994, 96
    %v2998 = vpop.permute.xlu0 %2997
    %v3000 = vmul.f32 %v2995, %v2998
    %v3001 = vrot.slane %v2899, 6
    %v3003 = vmul.f32 %v2984, %v3001
    %v3004 = vadd.f32 %v3000, %v3003
    %v3006 = vrot.slane %v3004, 2
    %3007 = vrot.lane.b32.xlu0 %v3006, 96
    %v3008 = vpop.permute.xlu0 %3007
    %v3009 = vsel %vm550, %v3008, 0
    %3011 = vmatprep.subr.mxu0 0.0
    %3012 = vmatpush1.msra.mxu0 %v2370
    %3013 = vmatprep.subr.mxu0 0.0
    %3014 = vmatpush1.msra.mxu0 %v2371
    %3015 = vmatprep.subr.mxu0 0.0
    %3016 = vmatpush1.msra.mxu0 %v2372
    %3017 = vmatprep.subr.mxu0 0.0
    %3018 = vmatpush1.msra.mxu0 %v2373
    %3019 = vmatprep.subr.mxu0 0.0
    %3020 = vmatpush1.msra.mxu0 0.0
    %3021 = vmatprep.subr.mxu0 0.0
    %3022 = vmatpush1.msra.mxu0 0.0
    %3023 = vmatprep.subr.mxu0 0.0
    %3024 = vmatpush1.msra.mxu0 0.0
    %3025 = vmatprep.subr.mxu0 0.0
    %3026 = vmatpush1.msra.mxu0 0.0
    %3027 = vmatprep.subr.mxu0 0.0
    %3028 = vmatpush1.msra.mxu0 0.0
    %3029 = vmatprep.subr.mxu0 0.0
    %3030 = vmatpush1.msra.mxu0 0.0
    %3031 = vmatprep.subr.mxu0 0.0
    %3032 = vmatpush1.msra.mxu0 0.0
    %3033 = vmatprep.subr.mxu0 0.0
    %3034 = vmatpush1.msra.mxu0 0.0
    %3035 = vmatprep.subr.mxu0 0.0
    %3036 = vmatpush1.msra.mxu0 0.0
    %3037 = vmatprep.subr.mxu0 0.0
    %3038 = vmatpush1.msra.mxu0 0.0
    %3039 = vmatprep.subr.mxu0 0.0
    %3040 = vmatpush1.msra.mxu0 0.0
    %3041 = vmatprep.subr.mxu0 0.0
    %3042 = vmatpush1.msra.mxu0 0.0
    %3043 = vmatprep.subr.mxu0 0.0
    %3044 = vmatpush1.msra.mxu0 0.0
    %3045 = vmatprep.subr.mxu0 0.0
    %3046 = vmatpush1.msra.mxu0 0.0
    %3047 = vmatprep.subr.mxu0 0.0
    %3048 = vmatpush1.msra.mxu0 0.0
    %3049 = vmatprep.subr.mxu0 0.0
    %3050 = vmatpush1.msra.mxu0 0.0
    %3051 = vmatprep.subr.mxu0 0.0
    %3052 = vmatpush1.msra.mxu0 0.0
    %3053 = vmatprep.subr.mxu0 0.0
    %3054 = vmatpush1.msra.mxu0 0.0
    %3055 = vmatprep.subr.mxu0 0.0
    %3056 = vmatpush1.msra.mxu0 0.0
    %3057 = vmatprep.subr.mxu0 0.0
    %3058 = vmatpush1.msra.mxu0 0.0
    %3059 = vmatprep.subr.mxu0 0.0
    %3060 = vmatpush1.msra.mxu0 0.0
    %3061 = vmatprep.subr.mxu0 0.0
    %3062 = vmatpush1.msra.mxu0 0.0
    %3063 = vmatprep.subr.mxu0 0.0
    %3064 = vmatpush1.msra.mxu0 0.0
    %3065 = vmatprep.subr.mxu0 0.0
    %3066 = vmatpush1.msra.mxu0 0.0
    %3067 = vmatprep.subr.mxu0 0.0
    %3068 = vmatpush1.msra.mxu0 0.0
    %3069 = vmatprep.subr.mxu0 0.0
    %3070 = vmatpush1.msra.mxu0 0.0
    %3071 = vmatprep.subr.mxu0 0.0
    %3072 = vmatpush1.msra.mxu0 0.0
    %3073 = vmatprep.subr.mxu0 0.0
    %3074 = vmatpush1.msra.mxu0 0.0
    %3075 = vmatprep.mubr.f32.mxu0 0.0
    %3076 = vmatmul.mubr.f32.gmra.mrb[0].mxu0 %v3009
    %v3077 = vpop.f32.mrb[0].mxu0
    %v3078 = vadd.f32 %v2379, %v3077
    %v3079 = vpop.f32.mrb[0].mxu0
    %3080 = vdwg.mxu0
    %v3082 = vrot.slane %v3078, 4
    %v3084 = vadd.f32 %v2367, %v3082
    %v3085 = vsub.f32 0.0, %v3084
    %v3086 = vmul.f32 %v3085, 1.442695
    %v3087 = vpow.pop %v3086
    %v3088 = vadd.f32 %v3087, 1.0
    %v3089 = vrcp.pop %v3088
    %v3090 = vmul.f32 1.0, %v3089
    %3091 = vrot.lane.b32.xlu0 %v3082, 64
    %v3092 = vpop.permute.xlu0 %3091
    %v3094 = vmul.f32 %v3090, %v3092
    %3096 = vrot.lane.b32.xlu0 %v3094, 64
    %v3097 = vpop.permute.xlu0 %3096
    %v3099 = vadd.f32 %v2367, %v3097
    %v3100 = vtanh.pop %v3099
    %v3101 = vsub.f32 1.0, %v3090
    %3103 = vrot.lane.b32.xlu0 %v3100, 96
    %v3104 = vpop.permute.xlu0 %3103
    %v3106 = vmul.f32 %v3101, %v3104
    %v3107 = vrot.slane %v3004, 6
    %v3109 = vmul.f32 %v3090, %v3107
    %v3110 = vadd.f32 %v3106, %v3109
    %v3112 = vrot.slane %v3110, 4
    %3113 = vrot.lane.b32.xlu0 %v3112, 96
    %v3114 = vpop.permute.xlu0 %3113
    %v3115 = vsel %vm550, %v3114, 0
    %3117 = vmatprep.subr.mxu0 0.0
    %3118 = vmatpush1.msra.mxu0 %v2370
    %3119 = vmatprep.subr.mxu0 0.0
    %3120 = vmatpush1.msra.mxu0 %v2371
    %3121 = vmatprep.subr.mxu0 0.0
    %3122 = vmatpush1.msra.mxu0 %v2372
    %3123 = vmatprep.subr.mxu0 0.0
    %3124 = vmatpush1.msra.mxu0 %v2373
    %3125 = vmatprep.subr.mxu0 0.0
    %3126 = vmatpush1.msra.mxu0 0.0
    %3127 = vmatprep.subr.mxu0 0.0
    %3128 = vmatpush1.msra.mxu0 0.0
    %3129 = vmatprep.subr.mxu0 0.0
    %3130 = vmatpush1.msra.mxu0 0.0
    %3131 = vmatprep.subr.mxu0 0.0
    %3132 = vmatpush1.msra.mxu0 0.0
    %3133 = vmatprep.subr.mxu0 0.0
    %3134 = vmatpush1.msra.mxu0 0.0
    %3135 = vmatprep.subr.mxu0 0.0
    %3136 = vmatpush1.msra.mxu0 0.0
    %3137 = vmatprep.subr.mxu0 0.0
    %3138 = vmatpush1.msra.mxu0 0.0
    %3139 = vmatprep.subr.mxu0 0.0
    %3140 = vmatpush1.msra.mxu0 0.0
    %3141 = vmatprep.subr.mxu0 0.0
    %3142 = vmatpush1.msra.mxu0 0.0
    %3143 = vmatprep.subr.mxu0 0.0
    %3144 = vmatpush1.msra.mxu0 0.0
    %3145 = vmatprep.subr.mxu0 0.0
    %3146 = vmatpush1.msra.mxu0 0.0
    %3147 = vmatprep.subr.mxu0 0.0
    %3148 = vmatpush1.msra.mxu0 0.0
    %3149 = vmatprep.subr.mxu0 0.0
    %3150 = vmatpush1.msra.mxu0 0.0
    %3151 = vmatprep.subr.mxu0 0.0
    %3152 = vmatpush1.msra.mxu0 0.0
    %3153 = vmatprep.subr.mxu0 0.0
    %3154 = vmatpush1.msra.mxu0 0.0
    %3155 = vmatprep.subr.mxu0 0.0
    %3156 = vmatpush1.msra.mxu0 0.0
    %3157 = vmatprep.subr.mxu0 0.0
    %3158 = vmatpush1.msra.mxu0 0.0
    %3159 = vmatprep.subr.mxu0 0.0
    %3160 = vmatpush1.msra.mxu0 0.0
    %3161 = vmatprep.subr.mxu0 0.0
    %3162 = vmatpush1.msra.mxu0 0.0
    %3163 = vmatprep.subr.mxu0 0.0
    %3164 = vmatpush1.msra.mxu0 0.0
    %3165 = vmatprep.subr.mxu0 0.0
    %3166 = vmatpush1.msra.mxu0 0.0
    %3167 = vmatprep.subr.mxu0 0.0
    %3168 = vmatpush1.msra.mxu0 0.0
    %3169 = vmatprep.subr.mxu0 0.0
    %3170 = vmatpush1.msra.mxu0 0.0
    %3171 = vmatprep.subr.mxu0 0.0
    %3172 = vmatpush1.msra.mxu0 0.0
    %3173 = vmatprep.subr.mxu0 0.0
    %3174 = vmatpush1.msra.mxu0 0.0
    %3175 = vmatprep.subr.mxu0 0.0
    %3176 = vmatpush1.msra.mxu0 0.0
    %3177 = vmatprep.subr.mxu0 0.0
    %3178 = vmatpush1.msra.mxu0 0.0
    %3179 = vmatprep.subr.mxu0 0.0
    %3180 = vmatpush1.msra.mxu0 0.0
    %3181 = vmatprep.mubr.f32.mxu0 0.0
    %3182 = vmatmul.mubr.f32.gmra.mrb[0].mxu0 %v3115
    %v3183 = vpop.f32.mrb[0].mxu0
    %v3184 = vadd.f32 %v2379, %v3183
    %v3185 = vpop.f32.mrb[0].mxu0
    %3186 = vdwg.mxu0
    %v3188 = vrot.slane %v3184, 2
    %v3190 = vadd.f32 %v2367, %v3188
    %v3191 = vsub.f32 0.0, %v3190
    %v3192 = vmul.f32 %v3191, 1.442695
    %v3193 = vpow.pop %v3192
    %v3194 = vadd.f32 %v3193, 1.0
    %v3195 = vrcp.pop %v3194
    %v3196 = vmul.f32 1.0, %v3195
    %3197 = vrot.lane.b32.xlu0 %v3188, 64
    %v3198 = vpop.permute.xlu0 %3197
    %v3200 = vmul.f32 %v3196, %v3198
    %3202 = vrot.lane.b32.xlu0 %v3200, 64
    %v3203 = vpop.permute.xlu0 %3202
    %v3205 = vadd.f32 %v2367, %v3203
    %v3206 = vtanh.pop %v3205
    %v3207 = vsub.f32 1.0, %v3196
    %3209 = vrot.lane.b32.xlu0 %v3206, 96
    %v3210 = vpop.permute.xlu0 %3209
    %v3212 = vmul.f32 %v3207, %v3210
    %v3213 = vrot.slane %v3110, 6
    %v3215 = vmul.f32 %v3196, %v3213
    %v3216 = vadd.f32 %v3212, %v3215
    %v3217 = vld [vmem:[%s10] sm:$0xff]
    %v3218 = vld [vmem:[%s10 + $0x8] sm:$0xff]
    %v3219 = vld [vmem:[%s10 + $0x10] sm:$0xff]
    %v3220 = vld [vmem:[%s10 + $0x18] sm:$0xff]
    %v3221 = vld [vmem:[#allocation2] sm:$0x1]
    %v3223 = vlaneseq
    %v3224 = vshrl.u32 %v3223, 7
    %v3225 = vsub.s32 0, %v3224
    %v3226 = vrot.slane %v3221, %v3225
    %v3229 = vrot.slane %v3216, 6
    %3230 = vrot.lane.b32.xlu0 %v3229, 96
    %v3231 = vpop.permute.xlu0 %3230
    %v3232 = vsel %vm550, %v3231, 0
    %3234 = vmatprep.subr.mxu0 0.0
    %3235 = vmatpush1.msra.mxu0 %v3217
    %3236 = vmatprep.subr.mxu0 0.0
    %3237 = vmatpush1.msra.mxu0 %v3218
    %3238 = vmatprep.subr.mxu0 0.0
    %3239 = vmatpush1.msra.mxu0 %v3219
    %3240 = vmatprep.subr.mxu0 0.0
    %3241 = vmatpush1.msra.mxu0 %v3220
    %3242 = vmatprep.subr.mxu0 0.0
    %3243 = vmatpush1.msra.mxu0 0.0
    %3244 = vmatprep.subr.mxu0 0.0
    %3245 = vmatpush1.msra.mxu0 0.0
    %3246 = vmatprep.subr.mxu0 0.0
    %3247 = vmatpush1.msra.mxu0 0.0
    %3248 = vmatprep.subr.mxu0 0.0
    %3249 = vmatpush1.msra.mxu0 0.0
    %3250 = vmatprep.subr.mxu0 0.0
    %3251 = vmatpush1.msra.mxu0 0.0
    %3252 = vmatprep.subr.mxu0 0.0
    %3253 = vmatpush1.msra.mxu0 0.0
    %3254 = vmatprep.subr.mxu0 0.0
    %3255 = vmatpush1.msra.mxu0 0.0
    %3256 = vmatprep.subr.mxu0 0.0
    %3257 = vmatpush1.msra.mxu0 0.0
    %3258 = vmatprep.subr.mxu0 0.0
    %3259 = vmatpush1.msra.mxu0 0.0
    %3260 = vmatprep.subr.mxu0 0.0
    %3261 = vmatpush1.msra.mxu0 0.0
    %3262 = vmatprep.subr.mxu0 0.0
    %3263 = vmatpush1.msra.mxu0 0.0
    %3264 = vmatprep.subr.mxu0 0.0
    %3265 = vmatpush1.msra.mxu0 0.0
    %3266 = vmatprep.subr.mxu0 0.0
    %3267 = vmatpush1.msra.mxu0 0.0
    %3268 = vmatprep.subr.mxu0 0.0
    %3269 = vmatpush1.msra.mxu0 0.0
    %3270 = vmatprep.subr.mxu0 0.0
    %3271 = vmatpush1.msra.mxu0 0.0
    %3272 = vmatprep.subr.mxu0 0.0
    %3273 = vmatpush1.msra.mxu0 0.0
    %3274 = vmatprep.subr.mxu0 0.0
    %3275 = vmatpush1.msra.mxu0 0.0
    %3276 = vmatprep.subr.mxu0 0.0
    %3277 = vmatpush1.msra.mxu0 0.0
    %3278 = vmatprep.subr.mxu0 0.0
    %3279 = vmatpush1.msra.mxu0 0.0
    %3280 = vmatprep.subr.mxu0 0.0
    %3281 = vmatpush1.msra.mxu0 0.0
    %3282 = vmatprep.subr.mxu0 0.0
    %3283 = vmatpush1.msra.mxu0 0.0
    %3284 = vmatprep.subr.mxu0 0.0
    %3285 = vmatpush1.msra.mxu0 0.0
    %3286 = vmatprep.subr.mxu0 0.0
    %3287 = vmatpush1.msra.mxu0 0.0
    %3288 = vmatprep.subr.mxu0 0.0
    %3289 = vmatpush1.msra.mxu0 0.0
    %3290 = vmatprep.subr.mxu0 0.0
    %3291 = vmatpush1.msra.mxu0 0.0
    %3292 = vmatprep.subr.mxu0 0.0
    %3293 = vmatpush1.msra.mxu0 0.0
    %3294 = vmatprep.subr.mxu0 0.0
    %3295 = vmatpush1.msra.mxu0 0.0
    %3296 = vmatprep.subr.mxu0 0.0
    %3297 = vmatpush1.msra.mxu0 0.0
    %3298 = vmatprep.mubr.f32.mxu0 0.0
    %3299 = vmatmul.mubr.f32.gmra.mrb[0].mxu0 %v3232
    %v3300 = vpop.f32.mrb[0].mxu0
    %v3301 = vadd.f32 %v3226, %v3300
    %v3302 = vpop.f32.mrb[0].mxu0
    %3303 = vdwg.mxu0
    %v3304 = vld [vmem:[%s12] sm:$0x3]
    %v3305 = vmax.f32 %v3301, 0.0
    %v3306 = vmul.f32 %v3301, %v3304
    %v3307 = vsub.f32 %v3305, %v3306
    %v3308 = vand.u32 2147483647, %v3301
    %v3309 = vsub.f32 0.0, %v3308
    %v3310 = vmul.f32 %v3309, 1.442695
    %v3311 = vpow.pop %v3310
    %v3312 = vadd.f32 %v3311, 1.0
    %v3313 = vlog2.pop %v3312
    %v3314 = vmul.f32 %v3313, 0.6931472
    %v3315 = vmul.f32 -0.5, %v3311
    %v3316 = vadd.f32 %v3315, 1.0
    %v3317 = vmul.f32 %v3316, %v3311
    %v3318 = vand.u32 2147483647, %v3311
    %vm3319 = vcmp.lt.f32.partialorder %v3318, 0.0004427343
    %v3320 = vsel %vm3319, %v3317, %v3314
    %v3321 = vadd.f32 %v3307, %v3320
    %vm3322 = vcmask 1024
    %v3323 = vsel %vm3322, %v3321, 0.0
    %3324 = vadd.xlane.f32.xlu0 %v3323
    %v3325 = vpop.xlane.xlu0 %3324
    %v3326 = vrot.slane %v3325, 4
    %v3327 = vadd.f32 %v3325, %v3326
    %v3328 = vrot.slane %v3327, 2
    %v3329 = vadd.f32 %v3327, %v3328
    %v3330 = vrot.slane %v3329, 1
    %v3331 = vadd.f32 %v3329, %v3330
    %s3332 = vtos %v3331
    %v3333 = vstv %s3332
    %v3334 = vrcp.pop 2.0
    %v3335 = vmul.f32 %v3333, %v3334
    %vm3336 = vcmask 0
    %3337 = vst.msk [vmem:[#allocation3] sm:$0x1] %vm3336, %v3335
    %v3338 = vsub.f32 0.0, %v3301
    %v3339 = vmul.f32 %v3338, 1.442695
    %v3340 = vpow.pop %v3339
    %v3341 = vadd.f32 %v3340, 1.0
    %v3342 = vrcp.pop %v3341
    %v3343 = vmul.f32 1.0, %v3342
    %3344 = vst.msk [vmem:[%s14] sm:$0x3] %vm3322, %v3343
    // Predicated region
    $region54: #{model_forward.1} parent=1 // pred_check
      _
    $region55: #{model_forward.1} parent=1 // pred_check_branch
      %3346 = sbr.rel (0) target = $region57
    $region56: #{model_forward.1} parent=1 // pred_region
      %s3348 = ssub.s32 16, 16
      %3349 = vsyncadd [#allocation4], %s3348
      %s3351 = sshll.u32 [#allocation3], 4
      %s3352 = int_to_ptr.vmem [resolvable:$true] %s3351
      %3354 = dma.vmem_to_hbm [thread:$0]  %s3352, 16, %s13, [#allocation4]
    $region57: #{model_forward.1} parent=1 // pred_fallthru
      _
    // Predicated region
    $region58: #{model_forward.1} parent=1 // pred_check
      _
    $region59: #{model_forward.1} parent=1 // pred_check_branch
      %3356 = sbr.rel (0) target = $region61
    $region60: #{model_forward.1} parent=1 // pred_region
      _
    $region61: #{model_forward.1} parent=1 // pred_fallthru
      _
    // Predicated region
    $region62: #{model_forward.1} parent=1 // pred_check
      _
    $region63: #{model_forward.1} parent=1 // pred_check_branch
      %3358 = sbr.rel (0) target = $region65
    $region64: #{model_forward.1} parent=1 // pred_region
      %3359 = dma.done [#allocation4], 16
    $region65: #{model_forward.1} parent=1 // pred_fallthru
      _
    // Predicated region
    $region66: #{model_forward.1} parent=1 // pred_check
      _
    $region67: #{model_forward.1} parent=1 // pred_check_branch
      %3361 = sbr.rel (0) target = $region69
    $region68: #{model_forward.1} parent=1 // pred_region
      _
    $region69: #{model_forward.1} parent=1 // pred_fallthru
      _
    %3362 = vsyncpa [#allocation4], 1

</llo_original>
